<compile_context>
chip_gen: v5e
topology: v5e:2x2
jax: 0.10.0
libtpu: 0.0.40
codegen_flags: <defaults>
</compile_context>

<pallas_src>
import jax
import jax.numpy as jnp
from jax import lax
from jax.experimental import pallas as pl
from jax.experimental.pallas import tpu as pltpu


def _flow_kernel(z_ref, tccol_ref,
                 wst_ref, bst_ref,
                 freqs_ref,
                 wih_ref, whh_ref,
                 bx_ref, bnh_ref,
                 wproj_ref, bproj_ref,
                 out_ref):
    B, D = z_ref.shape
    Dh = D // 2                     # latent_dim // 2
    H = Dh                          # GRU hidden size
    T = wproj_ref.shape[0]          # number of time steps (static)
    TBP = tccol_ref.shape[0]        # T * BP (time-major, sublane-padded rows)
    BP = TBP // T                   # padded rows per step (multiple of 8)

    # --- affine coupling: one fused [Dh, 2Dh] matmul, lane-slice into s / t ---
    z = z_ref[...]
    z1 = z[:, :Dh]
    z2 = z[:, Dh:]
    z1b = z1.astype(jnp.bfloat16)
    st = jnp.dot(z1b, wst_ref[...], preferred_element_type=jnp.float32) + bst_ref[...]
    s = jax.nn.sigmoid(st[:, :Dh])
    t = st[:, Dh:]
    z2_new = s * z2 + t

    # --- Fourier time embedding, hoisted for ALL T*BP rows at once ---
    sin_in = tccol_ref[...] * freqs_ref[...]                       # [T*BP, Dh] f32
    emb = jnp.concatenate([jnp.sin(sin_in), jnp.cos(sin_in)],
                          axis=-1).astype(jnp.bfloat16)            # [T*BP, D] bf16

    # --- hoisted input projection: ONE matmul for all steps & all gates ---
    # bx folds b_ih (+ b_hh for r/z) per gate along the 3H lane dim.
    gx_all = (jnp.dot(emb, wih_ref[...], preferred_element_type=jnp.float32)
              + bx_ref[...])                                       # [T*BP, 3H] f32

    whh = whh_ref[...]                                             # [H, 3H] bf16
    bnh = jnp.broadcast_to(bnh_ref[...], (BP, H))                  # hoisted b_hn broadcast

    h = jnp.zeros((BP, H), dtype=jnp.float32)
    hs = []

    # Serial recurrence: one h @ W_hh MXU pass + gate math per step (T=8, static unroll).
    for step in range(T):
        r0 = step * BP                                             # 8-sublane aligned
        gx_t = gx_all[r0:r0 + BP, :]                               # [BP, 3H], off-chain

        hb = h.astype(jnp.bfloat16)
        gh = jnp.dot(hb, whh, preferred_element_type=jnp.float32)  # [BP, 3H] single dot

        r = jax.nn.sigmoid(gx_t[:, :H] + gh[:, :H])
        zg = jax.nn.sigmoid(gx_t[:, H:2 * H] + gh[:, H:2 * H])
        n = jnp.tanh(gx_t[:, 2 * H:] + r * (gh[:, 2 * H:] + bnh))
        h = n + zg * (h - n)                                       # == (1-zg)*n + zg*h
        hs.append(h)

    # Time projection as one weighted reduce AFTER the loop (off the serial chain).
    acc = hs[0] * wproj_ref[0]
    for step in range(1, T):
        acc = acc + hs[step] * wproj_ref[step]

    z2_final = z2_new + acc[:B, :] + bproj_ref[0]

    # Single lane-dense full (B, D) store: z1 copied through in-kernel (no wrapper concat).
    out_ref[...] = jnp.concatenate([z1, z2_final], axis=-1)


def temporal_realnvp_flow(z, time_context, params):
    B, D = z.shape
    T = time_context.shape[1]
    BP = ((B + 7) // 8) * 8          # pad batch rows per step to a sublane multiple

    # time-major, sublane-padded column vector: row t*BP + b holds time_context[b, t]
    tc_t = jnp.pad(time_context.T, ((0, 0), (0, BP - B)))          # [T, BP]
    tc_col = jnp.reshape(tc_t, (T * BP, 1))

    vmem = pl.BlockSpec(memory_space=pltpu.MemorySpace.VMEM)
    smem = pl.BlockSpec(memory_space=pltpu.MemorySpace.SMEM)

    out = pl.pallas_call(
        _flow_kernel,
        out_shape=jax.ShapeDtypeStruct((B, D), jnp.float32),
        in_specs=[vmem, vmem,                   # z, tc_col
                  vmem, vmem,                   # fused coupling W / b
                  vmem,                         # freqs
                  vmem, vmem,                   # W_ih [D,3H], W_hh [H,3H]
                  vmem, vmem,                   # folded gate biases [1,3H], b_hn [1,H]
                  smem, smem],                  # time-projection weight [T] / bias [1]
        out_specs=vmem,
    )(z, tc_col,
      params["wst"], params["bst"],
      params["freqs"],
      params["wih"], params["whh"],
      params["bx"], params["bnh"],
      params["wproj"], params["bproj"])

    return out


def make_params(key, latent_dim, input_dim):
    Dh = latent_dim // 2
    H = Dh
    D = latent_dim
    T = input_dim
    ks = jax.random.split(key, 8)
    sc = 0.2

    # PyTorch-layout parameters (reference ground truth, f32).
    w_scale = sc * jax.random.normal(ks[0], (Dh, Dh), jnp.float32)   # [out, in]
    b_scale = sc * jax.random.normal(ks[1], (Dh,), jnp.float32)
    w_trans = sc * jax.random.normal(ks[2], (Dh, Dh), jnp.float32)
    b_trans = sc * jax.random.normal(ks[3], (Dh,), jnp.float32)
    # FourierTimeEmbedding: freqs = exp(linspace(0, time_steps, embedding_dim//2))
    freqs = jnp.exp(jnp.linspace(0.0, float(T), Dh)).astype(jnp.float32)
    # nn.GRU(latent_dim, latent_dim//2): weight_ih [3H, D], weight_hh [3H, H], biases [3H]
    w_ih = sc * jax.random.normal(ks[4], (3 * H, D), jnp.float32)
    w_hh = sc * jax.random.normal(ks[5], (3 * H, H), jnp.float32)
    b_ih = sc * jax.random.normal(ks[6], (3 * H,), jnp.float32)
    b_hh = sc * jax.random.normal(ks[7], (3 * H,), jnp.float32)
    # nn.Linear(input_dim, 1): W [1, T], b [1]
    w_proj = sc * jax.random.normal(jax.random.fold_in(key, 100), (1, T), jnp.float32)
    b_proj = sc * jax.random.normal(jax.random.fold_in(key, 101), (1,), jnp.float32)

    # ---- kernel-side layouts (fused, pre-transposed, bf16 MXU operands) ----
    wihT = w_ih.T                                     # [D, 3H]  (lanes ordered r | z | n)
    whhT = w_hh.T                                     # [H, 3H]

    # fused coupling weight/bias: [Dh, 2Dh] (scale | translate)
    wst = jnp.concatenate([w_scale.T, w_trans.T], axis=1)
    bst = jnp.concatenate([b_scale, b_trans])[None, :]

    # folded input-side biases per gate along the 3H lane dim:
    #   r: b_ir + b_hr, z: b_iz + b_hz, n: b_in (b_hn stays inside r*(.))
    bx = jnp.concatenate([b_ih[:H] + b_hh[:H],
                          b_ih[H:2 * H] + b_hh[H:2 * H],
                          b_ih[2 * H:]])[None, :]     # [1, 3H]
    bnh = b_hh[2 * H:][None, :]                       # [1, H]

    return {
        # kernel params
        "wst": wst.astype(jnp.bfloat16), "bst": bst,
        "freqs": freqs[None, :],
        "wih": wihT.astype(jnp.bfloat16),
        "whh": whhT.astype(jnp.bfloat16),
        "bx": bx, "bnh": bnh,
        "wproj": w_proj[0], "bproj": b_proj,
        # f32 reference params (x @ W layouts)
        "ref_ws": w_scale.T, "ref_bs": b_scale,
        "ref_wt": w_trans.T, "ref_bt": b_trans,
        "ref_freqs": freqs,
        "ref_wih": wihT, "ref_whh": whhT,
        "ref_bih": b_ih, "ref_bhh": b_hh,
        "ref_wproj": w_proj[0], "ref_bproj": b_proj,
    }


def reference(z, tc, p):
    """Pure-JAX f32 reference mirroring the PyTorch forward (for correctness check)."""
    Dh = z.shape[1] // 2
    H = Dh
    z1, z2 = z[:, :Dh], z[:, Dh:]
    s = jax.nn.sigmoid(z1 @ p["ref_ws"] + p["ref_bs"])
    t = z1 @ p["ref_wt"] + p["ref_bt"]
    z2 = s * z2 + t
    sin_in = tc[..., None] * p["ref_freqs"]                              # [B,T,Dh]
    emb = jnp.concatenate([jnp.sin(sin_in), jnp.cos(sin_in)], axis=-1)   # [B,T,D]

    def gru_step(h, x):
        gx = x @ p["ref_wih"] + p["ref_bih"]
        gh = h @ p["ref_whh"] + p["ref_bhh"]
        r = jax.nn.sigmoid(gx[:, :H] + gh[:, :H])
        zg = jax.nn.sigmoid(gx[:, H:2 * H] + gh[:, H:2 * H])
        n = jnp.tanh(gx[:, 2 * H:] + r * gh[:, 2 * H:])
        h = (1.0 - zg) * n + zg * h
        return h, h

    h0 = jnp.zeros((z.shape[0], H), jnp.float32)
    _, hs = lax.scan(gru_step, h0, jnp.swapaxes(emb, 0, 1))              # [T,B,H]
    time_out = jnp.einsum("tbh,t->bh", hs, p["ref_wproj"]) + p["ref_bproj"][0]
    z2 = z2 + time_out
    return jnp.concatenate([z1, z2], axis=1)


if __name__ == "__main__":
    latent_dim = 32   # D
    input_dim = 8     # T (time steps)
    batch = 4

    key = jax.random.PRNGKey(0)
    kz, kp = jax.random.split(key)
    z = jax.random.normal(kz, (batch, latent_dim), jnp.float32)
    # integer time indices 0..T-1 per sample (as floats, matching PyTorch math)
    time_context = jnp.tile(jnp.arange(input_dim, dtype=jnp.float32)[None, :], (batch, 1))

    params = make_params(kp, latent_dim, input_dim)

    out = temporal_realnvp_flow(z, time_context, params)
    out = jax.block_until_ready(out)

    ref = reference(z, time_context, params)
    assert out.shape == (batch, latent_dim)
    # tolerance relaxed vs an all-f32 version: matmul operands are bf16 (f32 accumulation)
    assert jnp.allclose(out, ref, atol=2.5e-2, rtol=2.5e-2), "mismatch vs JAX reference"

    print("KERNEL_OK")
</pallas_src>

<mosaic_0001>
module attributes {stable_mosaic.version = 11 : i64} {
  func.func @_flow_kernel(%arg0: memref<4x32xf32, #tpu.memory_space<vmem>>, %arg1: memref<64x1xf32, #tpu.memory_space<vmem>>, %arg2: memref<16x32xbf16, #tpu.memory_space<vmem>>, %arg3: memref<1x32xf32, #tpu.memory_space<vmem>>, %arg4: memref<1x16xf32, #tpu.memory_space<vmem>>, %arg5: memref<32x48xbf16, #tpu.memory_space<vmem>>, %arg6: memref<16x48xbf16, #tpu.memory_space<vmem>>, %arg7: memref<1x48xf32, #tpu.memory_space<vmem>>, %arg8: memref<1x16xf32, #tpu.memory_space<vmem>>, %arg9: memref<8xf32, #tpu.memory_space<smem>>, %arg10: memref<1xf32, #tpu.memory_space<smem>>, %arg11: memref<4x32xf32, #tpu.memory_space<vmem>>) attributes {dimension_semantics = [], scalar_prefetch = 0 : i64, scratch_operands = 0 : i64, tpu.core_type = #tpu.core_type<tc>} {
    %c0 = arith.constant 0 : index
    %c0_0 = arith.constant 0 : index
    %0 = vector.load %arg0[%c0, %c0_0] : memref<4x32xf32, #tpu.memory_space<vmem>>, vector<4x32xf32>
    %1 = vector.extract_strided_slice %0 {offsets = [0, 0], sizes = [4, 16], strides = [1, 1]} : vector<4x32xf32> to vector<4x16xf32>
    %2 = vector.extract_strided_slice %0 {offsets = [0, 16], sizes = [4, 16], strides = [1, 1]} : vector<4x32xf32> to vector<4x16xf32>
    %3 = arith.truncf %1 : vector<4x16xf32> to vector<4x16xbf16>
    %c0_1 = arith.constant 0 : index
    %c0_2 = arith.constant 0 : index
    %4 = vector.load %arg2[%c0_1, %c0_2] : memref<16x32xbf16, #tpu.memory_space<vmem>>, vector<16x32xbf16>
    %cst = arith.constant dense<0.000000e+00> : vector<4x32xf32>
    %5 = tpu.matmul %3, %4, %cst {dimension_numbers = #tpu.dot_dimension_numbers<[1], [0], [0], [1], [0, 0, 1, 1], [], []>} : vector<4x16xbf16>, vector<16x32xbf16>, vector<4x32xf32> -> vector<4x32xf32>
    %c0_3 = arith.constant 0 : index
    %c0_4 = arith.constant 0 : index
    %6 = vector.load %arg3[%c0_3, %c0_4] : memref<1x32xf32, #tpu.memory_space<vmem>>, vector<1x32xf32>
    %7 = vector.broadcast %6 : vector<1x32xf32> to vector<4x32xf32>
    %8 = arith.addf %5, %7 : vector<4x32xf32>
    %9 = vector.extract_strided_slice %8 {offsets = [0, 0], sizes = [4, 16], strides = [1, 1]} : vector<4x32xf32> to vector<4x16xf32>
    %10 = arith.negf %9 : vector<4x16xf32>
    %11 = math.exp %10 : vector<4x16xf32>
    %cst_5 = arith.constant 1.000000e+00 : f32
    %12 = vector.broadcast %cst_5 : f32 to vector<4x16xf32>
    %13 = arith.addf %12, %11 : vector<4x16xf32>
    %14 = arith.divf %12, %13 : vector<4x16xf32>
    %15 = vector.extract_strided_slice %8 {offsets = [0, 16], sizes = [4, 16], strides = [1, 1]} : vector<4x32xf32> to vector<4x16xf32>
    %16 = arith.mulf %14, %2 : vector<4x16xf32>
    %17 = arith.addf %16, %15 : vector<4x16xf32>
    %c0_6 = arith.constant 0 : index
    %c0_7 = arith.constant 0 : index
    %18 = vector.load %arg1[%c0_6, %c0_7] : memref<64x1xf32, #tpu.memory_space<vmem>>, vector<64x1xf32>
    %c0_8 = arith.constant 0 : index
    %c0_9 = arith.constant 0 : index
    %19 = vector.load %arg4[%c0_8, %c0_9] : memref<1x16xf32, #tpu.memory_space<vmem>>, vector<1x16xf32>
    %20 = vector.broadcast %18 : vector<64x1xf32> to vector<64x16xf32>
    %21 = vector.broadcast %19 : vector<1x16xf32> to vector<64x16xf32>
    %22 = arith.mulf %20, %21 : vector<64x16xf32>
    %23 = math.sin %22 : vector<64x16xf32>
    %24 = math.cos %22 : vector<64x16xf32>
    %25 = tpu.concatenate %23, %24 in 1 : vector<64x16xf32>, vector<64x16xf32> -> vector<64x32xf32>
    %26 = arith.truncf %25 : vector<64x32xf32> to vector<64x32xbf16>
    %c0_10 = arith.constant 0 : index
    %c0_11 = arith.constant 0 : index
    %27 = vector.load %arg5[%c0_10, %c0_11] : memref<32x48xbf16, #tpu.memory_space<vmem>>, vector<32x48xbf16>
    %cst_12 = arith.constant dense<0.000000e+00> : vector<64x48xf32>
    %28 = tpu.matmul %26, %27, %cst_12 {dimension_numbers = #tpu.dot_dimension_numbers<[1], [0], [0], [1], [0, 0, 1, 1], [], []>} : vector<64x32xbf16>, vector<32x48xbf16>, vector<64x48xf32> -> vector<64x48xf32>
    %c0_13 = arith.constant 0 : index
    %c0_14 = arith.constant 0 : index
    %29 = vector.load %arg7[%c0_13, %c0_14] : memref<1x48xf32, #tpu.memory_space<vmem>>, vector<1x48xf32>
    %30 = vector.broadcast %29 : vector<1x48xf32> to vector<64x48xf32>
    %31 = arith.addf %28, %30 : vector<64x48xf32>
    %c0_15 = arith.constant 0 : index
    %c0_16 = arith.constant 0 : index
    %32 = vector.load %arg6[%c0_15, %c0_16] : memref<16x48xbf16, #tpu.memory_space<vmem>>, vector<16x48xbf16>
    %c0_17 = arith.constant 0 : index
    %c0_18 = arith.constant 0 : index
    %33 = vector.load %arg8[%c0_17, %c0_18] : memref<1x16xf32, #tpu.memory_space<vmem>>, vector<1x16xf32>
    %34 = vector.shape_cast %33 : vector<1x16xf32> to vector<1x16xf32>
    %35 = vector.broadcast %34 : vector<1x16xf32> to vector<8x16xf32>
    %cst_19 = arith.constant 0.000000e+00 : f32
    %36 = vector.broadcast %cst_19 : f32 to vector<8x16xf32>
    %37 = vector.extract_strided_slice %31 {offsets = [0, 0], sizes = [8, 48], strides = [1, 1]} : vector<64x48xf32> to vector<8x48xf32>
    %38 = arith.truncf %36 : vector<8x16xf32> to vector<8x16xbf16>
    %cst_20 = arith.constant dense<0.000000e+00> : vector<8x48xf32>
    %39 = tpu.matmul %38, %32, %cst_20 {dimension_numbers = #tpu.dot_dimension_numbers<[1], [0], [0], [1], [0, 0, 1, 1], [], []>} : vector<8x16xbf16>, vector<16x48xbf16>, vector<8x48xf32> -> vector<8x48xf32>
    %40 = vector.extract_strided_slice %37 {offsets = [0, 0], sizes = [8, 16], strides = [1, 1]} : vector<8x48xf32> to vector<8x16xf32>
    %41 = vector.extract_strided_slice %39 {offsets = [0, 0], sizes = [8, 16], strides = [1, 1]} : vector<8x48xf32> to vector<8x16xf32>
    %42 = arith.addf %40, %41 : vector<8x16xf32>
    %43 = arith.negf %42 : vector<8x16xf32>
    %44 = math.exp %43 : vector<8x16xf32>
    %cst_21 = arith.constant 1.000000e+00 : f32
    %45 = vector.broadcast %cst_21 : f32 to vector<8x16xf32>
    %46 = arith.addf %45, %44 : vector<8x16xf32>
    %47 = arith.divf %45, %46 : vector<8x16xf32>
    %48 = vector.extract_strided_slice %37 {offsets = [0, 16], sizes = [8, 16], strides = [1, 1]} : vector<8x48xf32> to vector<8x16xf32>
    %49 = vector.extract_strided_slice %39 {offsets = [0, 16], sizes = [8, 16], strides = [1, 1]} : vector<8x48xf32> to vector<8x16xf32>
    %50 = arith.addf %48, %49 : vector<8x16xf32>
    %51 = arith.negf %50 : vector<8x16xf32>
    %52 = math.exp %51 : vector<8x16xf32>
    %cst_22 = arith.constant 1.000000e+00 : f32
    %53 = vector.broadcast %cst_22 : f32 to vector<8x16xf32>
    %54 = arith.addf %53, %52 : vector<8x16xf32>
    %55 = arith.divf %53, %54 : vector<8x16xf32>
    %56 = vector.extract_strided_slice %37 {offsets = [0, 32], sizes = [8, 16], strides = [1, 1]} : vector<8x48xf32> to vector<8x16xf32>
    %57 = vector.extract_strided_slice %39 {offsets = [0, 32], sizes = [8, 16], strides = [1, 1]} : vector<8x48xf32> to vector<8x16xf32>
    %58 = arith.addf %57, %35 : vector<8x16xf32>
    %59 = arith.mulf %47, %58 : vector<8x16xf32>
    %60 = arith.addf %56, %59 : vector<8x16xf32>
    %61 = math.tanh %60 : vector<8x16xf32>
    %62 = arith.subf %36, %61 : vector<8x16xf32>
    %63 = arith.mulf %55, %62 : vector<8x16xf32>
    %64 = arith.addf %61, %63 : vector<8x16xf32>
    %65 = vector.extract_strided_slice %31 {offsets = [8, 0], sizes = [8, 48], strides = [1, 1]} : vector<64x48xf32> to vector<8x48xf32>
    %66 = arith.truncf %64 : vector<8x16xf32> to vector<8x16xbf16>
    %cst_23 = arith.constant dense<0.000000e+00> : vector<8x48xf32>
    %67 = tpu.matmul %66, %32, %cst_23 {dimension_numbers = #tpu.dot_dimension_numbers<[1], [0], [0], [1], [0, 0, 1, 1], [], []>} : vector<8x16xbf16>, vector<16x48xbf16>, vector<8x48xf32> -> vector<8x48xf32>
    %68 = vector.extract_strided_slice %65 {offsets = [0, 0], sizes = [8, 16], strides = [1, 1]} : vector<8x48xf32> to vector<8x16xf32>
    %69 = vector.extract_strided_slice %67 {offsets = [0, 0], sizes = [8, 16], strides = [1, 1]} : vector<8x48xf32> to vector<8x16xf32>
    %70 = arith.addf %68, %69 : vector<8x16xf32>
    %71 = arith.negf %70 : vector<8x16xf32>
    %72 = math.exp %71 : vector<8x16xf32>
    %cst_24 = arith.constant 1.000000e+00 : f32
    %73 = vector.broadcast %cst_24 : f32 to vector<8x16xf32>
    %74 = arith.addf %73, %72 : vector<8x16xf32>
    %75 = arith.divf %73, %74 : vector<8x16xf32>
    %76 = vector.extract_strided_slice %65 {offsets = [0, 16], sizes = [8, 16], strides = [1, 1]} : vector<8x48xf32> to vector<8x16xf32>
    %77 = vector.extract_strided_slice %67 {offsets = [0, 16], sizes = [8, 16], strides = [1, 1]} : vector<8x48xf32> to vector<8x16xf32>
    %78 = arith.addf %76, %77 : vector<8x16xf32>
    %79 = arith.negf %78 : vector<8x16xf32>
    %80 = math.exp %79 : vector<8x16xf32>
    %cst_25 = arith.constant 1.000000e+00 : f32
    %81 = vector.broadcast %cst_25 : f32 to vector<8x16xf32>
    %82 = arith.addf %81, %80 : vector<8x16xf32>
    %83 = arith.divf %81, %82 : vector<8x16xf32>
    %84 = vector.extract_strided_slice %65 {offsets = [0, 32], sizes = [8, 16], strides = [1, 1]} : vector<8x48xf32> to vector<8x16xf32>
    %85 = vector.extract_strided_slice %67 {offsets = [0, 32], sizes = [8, 16], strides = [1, 1]} : vector<8x48xf32> to vector<8x16xf32>
    %86 = arith.addf %85, %35 : vector<8x16xf32>
    %87 = arith.mulf %75, %86 : vector<8x16xf32>
    %88 = arith.addf %84, %87 : vector<8x16xf32>
    %89 = math.tanh %88 : vector<8x16xf32>
    %90 = arith.subf %64, %89 : vector<8x16xf32>
    %91 = arith.mulf %83, %90 : vector<8x16xf32>
    %92 = arith.addf %89, %91 : vector<8x16xf32>
    %93 = vector.extract_strided_slice %31 {offsets = [16, 0], sizes = [8, 48], strides = [1, 1]} : vector<64x48xf32> to vector<8x48xf32>
    %94 = arith.truncf %92 : vector<8x16xf32> to vector<8x16xbf16>
    %cst_26 = arith.constant dense<0.000000e+00> : vector<8x48xf32>
    %95 = tpu.matmul %94, %32, %cst_26 {dimension_numbers = #tpu.dot_dimension_numbers<[1], [0], [0], [1], [0, 0, 1, 1], [], []>} : vector<8x16xbf16>, vector<16x48xbf16>, vector<8x48xf32> -> vector<8x48xf32>
    %96 = vector.extract_strided_slice %93 {offsets = [0, 0], sizes = [8, 16], strides = [1, 1]} : vector<8x48xf32> to vector<8x16xf32>
    %97 = vector.extract_strided_slice %95 {offsets = [0, 0], sizes = [8, 16], strides = [1, 1]} : vector<8x48xf32> to vector<8x16xf32>
    %98 = arith.addf %96, %97 : vector<8x16xf32>
    %99 = arith.negf %98 : vector<8x16xf32>
    %100 = math.exp %99 : vector<8x16xf32>
    %cst_27 = arith.constant 1.000000e+00 : f32
    %101 = vector.broadcast %cst_27 : f32 to vector<8x16xf32>
    %102 = arith.addf %101, %100 : vector<8x16xf32>
    %103 = arith.divf %101, %102 : vector<8x16xf32>
    %104 = vector.extract_strided_slice %93 {offsets = [0, 16], sizes = [8, 16], strides = [1, 1]} : vector<8x48xf32> to vector<8x16xf32>
    %105 = vector.extract_strided_slice %95 {offsets = [0, 16], sizes = [8, 16], strides = [1, 1]} : vector<8x48xf32> to vector<8x16xf32>
    %106 = arith.addf %104, %105 : vector<8x16xf32>
    %107 = arith.negf %106 : vector<8x16xf32>
    %108 = math.exp %107 : vector<8x16xf32>
    %cst_28 = arith.constant 1.000000e+00 : f32
    %109 = vector.broadcast %cst_28 : f32 to vector<8x16xf32>
    %110 = arith.addf %109, %108 : vector<8x16xf32>
    %111 = arith.divf %109, %110 : vector<8x16xf32>
    %112 = vector.extract_strided_slice %93 {offsets = [0, 32], sizes = [8, 16], strides = [1, 1]} : vector<8x48xf32> to vector<8x16xf32>
    %113 = vector.extract_strided_slice %95 {offsets = [0, 32], sizes = [8, 16], strides = [1, 1]} : vector<8x48xf32> to vector<8x16xf32>
    %114 = arith.addf %113, %35 : vector<8x16xf32>
    %115 = arith.mulf %103, %114 : vector<8x16xf32>
    %116 = arith.addf %112, %115 : vector<8x16xf32>
    %117 = math.tanh %116 : vector<8x16xf32>
    %118 = arith.subf %92, %117 : vector<8x16xf32>
    %119 = arith.mulf %111, %118 : vector<8x16xf32>
    %120 = arith.addf %117, %119 : vector<8x16xf32>
    %121 = vector.extract_strided_slice %31 {offsets = [24, 0], sizes = [8, 48], strides = [1, 1]} : vector<64x48xf32> to vector<8x48xf32>
    %122 = arith.truncf %120 : vector<8x16xf32> to vector<8x16xbf16>
    %cst_29 = arith.constant dense<0.000000e+00> : vector<8x48xf32>
    %123 = tpu.matmul %122, %32, %cst_29 {dimension_numbers = #tpu.dot_dimension_numbers<[1], [0], [0], [1], [0, 0, 1, 1], [], []>} : vector<8x16xbf16>, vector<16x48xbf16>, vector<8x48xf32> -> vector<8x48xf32>
    %124 = vector.extract_strided_slice %121 {offsets = [0, 0], sizes = [8, 16], strides = [1, 1]} : vector<8x48xf32> to vector<8x16xf32>
    %125 = vector.extract_strided_slice %123 {offsets = [0, 0], sizes = [8, 16], strides = [1, 1]} : vector<8x48xf32> to vector<8x16xf32>
    %126 = arith.addf %124, %125 : vector<8x16xf32>
    %127 = arith.negf %126 : vector<8x16xf32>
    %128 = math.exp %127 : vector<8x16xf32>
    %cst_30 = arith.constant 1.000000e+00 : f32
    %129 = vector.broadcast %cst_30 : f32 to vector<8x16xf32>
    %130 = arith.addf %129, %128 : vector<8x16xf32>
    %131 = arith.divf %129, %130 : vector<8x16xf32>
    %132 = vector.extract_strided_slice %121 {offsets = [0, 16], sizes = [8, 16], strides = [1, 1]} : vector<8x48xf32> to vector<8x16xf32>
    %133 = vector.extract_strided_slice %123 {offsets = [0, 16], sizes = [8, 16], strides = [1, 1]} : vector<8x48xf32> to vector<8x16xf32>
    %134 = arith.addf %132, %133 : vector<8x16xf32>
    %135 = arith.negf %134 : vector<8x16xf32>
    %136 = math.exp %135 : vector<8x16xf32>
    %cst_31 = arith.constant 1.000000e+00 : f32
    %137 = vector.broadcast %cst_31 : f32 to vector<8x16xf32>
    %138 = arith.addf %137, %136 : vector<8x16xf32>
    %139 = arith.divf %137, %138 : vector<8x16xf32>
    %140 = vector.extract_strided_slice %121 {offsets = [0, 32], sizes = [8, 16], strides = [1, 1]} : vector<8x48xf32> to vector<8x16xf32>
    %141 = vector.extract_strided_slice %123 {offsets = [0, 32], sizes = [8, 16], strides = [1, 1]} : vector<8x48xf32> to vector<8x16xf32>
    %142 = arith.addf %141, %35 : vector<8x16xf32>
    %143 = arith.mulf %131, %142 : vector<8x16xf32>
    %144 = arith.addf %140, %143 : vector<8x16xf32>
    %145 = math.tanh %144 : vector<8x16xf32>
    %146 = arith.subf %120, %145 : vector<8x16xf32>
    %147 = arith.mulf %139, %146 : vector<8x16xf32>
    %148 = arith.addf %145, %147 : vector<8x16xf32>
    %149 = vector.extract_strided_slice %31 {offsets = [32, 0], sizes = [8, 48], strides = [1, 1]} : vector<64x48xf32> to vector<8x48xf32>
    %150 = arith.truncf %148 : vector<8x16xf32> to vector<8x16xbf16>
    %cst_32 = arith.constant dense<0.000000e+00> : vector<8x48xf32>
    %151 = tpu.matmul %150, %32, %cst_32 {dimension_numbers = #tpu.dot_dimension_numbers<[1], [0], [0], [1], [0, 0, 1, 1], [], []>} : vector<8x16xbf16>, vector<16x48xbf16>, vector<8x48xf32> -> vector<8x48xf32>
    %152 = vector.extract_strided_slice %149 {offsets = [0, 0], sizes = [8, 16], strides = [1, 1]} : vector<8x48xf32> to vector<8x16xf32>
    %153 = vector.extract_strided_slice %151 {offsets = [0, 0], sizes = [8, 16], strides = [1, 1]} : vector<8x48xf32> to vector<8x16xf32>
    %154 = arith.addf %152, %153 : vector<8x16xf32>
    %155 = arith.negf %154 : vector<8x16xf32>
    %156 = math.exp %155 : vector<8x16xf32>
    %cst_33 = arith.constant 1.000000e+00 : f32
    %157 = vector.broadcast %cst_33 : f32 to vector<8x16xf32>
    %158 = arith.addf %157, %156 : vector<8x16xf32>
    %159 = arith.divf %157, %158 : vector<8x16xf32>
    %160 = vector.extract_strided_slice %149 {offsets = [0, 16], sizes = [8, 16], strides = [1, 1]} : vector<8x48xf32> to vector<8x16xf32>
    %161 = vector.extract_strided_slice %151 {offsets = [0, 16], sizes = [8, 16], strides = [1, 1]} : vector<8x48xf32> to vector<8x16xf32>
    %162 = arith.addf %160, %161 : vector<8x16xf32>
    %163 = arith.negf %162 : vector<8x16xf32>
    %164 = math.exp %163 : vector<8x16xf32>
    %cst_34 = arith.constant 1.000000e+00 : f32
    %165 = vector.broadcast %cst_34 : f32 to vector<8x16xf32>
    %166 = arith.addf %165, %164 : vector<8x16xf32>
    %167 = arith.divf %165, %166 : vector<8x16xf32>
    %168 = vector.extract_strided_slice %149 {offsets = [0, 32], sizes = [8, 16], strides = [1, 1]} : vector<8x48xf32> to vector<8x16xf32>
    %169 = vector.extract_strided_slice %151 {offsets = [0, 32], sizes = [8, 16], strides = [1, 1]} : vector<8x48xf32> to vector<8x16xf32>
    %170 = arith.addf %169, %35 : vector<8x16xf32>
    %171 = arith.mulf %159, %170 : vector<8x16xf32>
    %172 = arith.addf %168, %171 : vector<8x16xf32>
    %173 = math.tanh %172 : vector<8x16xf32>
    %174 = arith.subf %148, %173 : vector<8x16xf32>
    %175 = arith.mulf %167, %174 : vector<8x16xf32>
    %176 = arith.addf %173, %175 : vector<8x16xf32>
    %177 = vector.extract_strided_slice %31 {offsets = [40, 0], sizes = [8, 48], strides = [1, 1]} : vector<64x48xf32> to vector<8x48xf32>
    %178 = arith.truncf %176 : vector<8x16xf32> to vector<8x16xbf16>
    %cst_35 = arith.constant dense<0.000000e+00> : vector<8x48xf32>
    %179 = tpu.matmul %178, %32, %cst_35 {dimension_numbers = #tpu.dot_dimension_numbers<[1], [0], [0], [1], [0, 0, 1, 1], [], []>} : vector<8x16xbf16>, vector<16x48xbf16>, vector<8x48xf32> -> vector<8x48xf32>
    %180 = vector.extract_strided_slice %177 {offsets = [0, 0], sizes = [8, 16], strides = [1, 1]} : vector<8x48xf32> to vector<8x16xf32>
    %181 = vector.extract_strided_slice %179 {offsets = [0, 0], sizes = [8, 16], strides = [1, 1]} : vector<8x48xf32> to vector<8x16xf32>
    %182 = arith.addf %180, %181 : vector<8x16xf32>
    %183 = arith.negf %182 : vector<8x16xf32>
    %184 = math.exp %183 : vector<8x16xf32>
    %cst_36 = arith.constant 1.000000e+00 : f32
    %185 = vector.broadcast %cst_36 : f32 to vector<8x16xf32>
    %186 = arith.addf %185, %184 : vector<8x16xf32>
    %187 = arith.divf %185, %186 : vector<8x16xf32>
    %188 = vector.extract_strided_slice %177 {offsets = [0, 16], sizes = [8, 16], strides = [1, 1]} : vector<8x48xf32> to vector<8x16xf32>
    %189 = vector.extract_strided_slice %179 {offsets = [0, 16], sizes = [8, 16], strides = [1, 1]} : vector<8x48xf32> to vector<8x16xf32>
    %190 = arith.addf %188, %189 : vector<8x16xf32>
    %191 = arith.negf %190 : vector<8x16xf32>
    %192 = math.exp %191 : vector<8x16xf32>
    %cst_37 = arith.constant 1.000000e+00 : f32
    %193 = vector.broadcast %cst_37 : f32 to vector<8x16xf32>
    %194 = arith.addf %193, %192 : vector<8x16xf32>
    %195 = arith.divf %193, %194 : vector<8x16xf32>
    %196 = vector.extract_strided_slice %177 {offsets = [0, 32], sizes = [8, 16], strides = [1, 1]} : vector<8x48xf32> to vector<8x16xf32>
    %197 = vector.extract_strided_slice %179 {offsets = [0, 32], sizes = [8, 16], strides = [1, 1]} : vector<8x48xf32> to vector<8x16xf32>
    %198 = arith.addf %197, %35 : vector<8x16xf32>
    %199 = arith.mulf %187, %198 : vector<8x16xf32>
    %200 = arith.addf %196, %199 : vector<8x16xf32>
    %201 = math.tanh %200 : vector<8x16xf32>
    %202 = arith.subf %176, %201 : vector<8x16xf32>
    %203 = arith.mulf %195, %202 : vector<8x16xf32>
    %204 = arith.addf %201, %203 : vector<8x16xf32>
    %205 = vector.extract_strided_slice %31 {offsets = [48, 0], sizes = [8, 48], strides = [1, 1]} : vector<64x48xf32> to vector<8x48xf32>
    %206 = arith.truncf %204 : vector<8x16xf32> to vector<8x16xbf16>
    %cst_38 = arith.constant dense<0.000000e+00> : vector<8x48xf32>
    %207 = tpu.matmul %206, %32, %cst_38 {dimension_numbers = #tpu.dot_dimension_numbers<[1], [0], [0], [1], [0, 0, 1, 1], [], []>} : vector<8x16xbf16>, vector<16x48xbf16>, vector<8x48xf32> -> vector<8x48xf32>
    %208 = vector.extract_strided_slice %205 {offsets = [0, 0], sizes = [8, 16], strides = [1, 1]} : vector<8x48xf32> to vector<8x16xf32>
    %209 = vector.extract_strided_slice %207 {offsets = [0, 0], sizes = [8, 16], strides = [1, 1]} : vector<8x48xf32> to vector<8x16xf32>
    %210 = arith.addf %208, %209 : vector<8x16xf32>
    %211 = arith.negf %210 : vector<8x16xf32>
    %212 = math.exp %211 : vector<8x16xf32>
    %cst_39 = arith.constant 1.000000e+00 : f32
    %213 = vector.broadcast %cst_39 : f32 to vector<8x16xf32>
    %214 = arith.addf %213, %212 : vector<8x16xf32>
    %215 = arith.divf %213, %214 : vector<8x16xf32>
    %216 = vector.extract_strided_slice %205 {offsets = [0, 16], sizes = [8, 16], strides = [1, 1]} : vector<8x48xf32> to vector<8x16xf32>
    %217 = vector.extract_strided_slice %207 {offsets = [0, 16], sizes = [8, 16], strides = [1, 1]} : vector<8x48xf32> to vector<8x16xf32>
    %218 = arith.addf %216, %217 : vector<8x16xf32>
    %219 = arith.negf %218 : vector<8x16xf32>
    %220 = math.exp %219 : vector<8x16xf32>
    %cst_40 = arith.constant 1.000000e+00 : f32
    %221 = vector.broadcast %cst_40 : f32 to vector<8x16xf32>
    %222 = arith.addf %221, %220 : vector<8x16xf32>
    %223 = arith.divf %221, %222 : vector<8x16xf32>
    %224 = vector.extract_strided_slice %205 {offsets = [0, 32], sizes = [8, 16], strides = [1, 1]} : vector<8x48xf32> to vector<8x16xf32>
    %225 = vector.extract_strided_slice %207 {offsets = [0, 32], sizes = [8, 16], strides = [1, 1]} : vector<8x48xf32> to vector<8x16xf32>
    %226 = arith.addf %225, %35 : vector<8x16xf32>
    %227 = arith.mulf %215, %226 : vector<8x16xf32>
    %228 = arith.addf %224, %227 : vector<8x16xf32>
    %229 = math.tanh %228 : vector<8x16xf32>
    %230 = arith.subf %204, %229 : vector<8x16xf32>
    %231 = arith.mulf %223, %230 : vector<8x16xf32>
    %232 = arith.addf %229, %231 : vector<8x16xf32>
    %233 = vector.extract_strided_slice %31 {offsets = [56, 0], sizes = [8, 48], strides = [1, 1]} : vector<64x48xf32> to vector<8x48xf32>
    %234 = arith.truncf %232 : vector<8x16xf32> to vector<8x16xbf16>
    %cst_41 = arith.constant dense<0.000000e+00> : vector<8x48xf32>
    %235 = tpu.matmul %234, %32, %cst_41 {dimension_numbers = #tpu.dot_dimension_numbers<[1], [0], [0], [1], [0, 0, 1, 1], [], []>} : vector<8x16xbf16>, vector<16x48xbf16>, vector<8x48xf32> -> vector<8x48xf32>
    %236 = vector.extract_strided_slice %233 {offsets = [0, 0], sizes = [8, 16], strides = [1, 1]} : vector<8x48xf32> to vector<8x16xf32>
    %237 = vector.extract_strided_slice %235 {offsets = [0, 0], sizes = [8, 16], strides = [1, 1]} : vector<8x48xf32> to vector<8x16xf32>
    %238 = arith.addf %236, %237 : vector<8x16xf32>
    %239 = arith.negf %238 : vector<8x16xf32>
    %240 = math.exp %239 : vector<8x16xf32>
    %cst_42 = arith.constant 1.000000e+00 : f32
    %241 = vector.broadcast %cst_42 : f32 to vector<8x16xf32>
    %242 = arith.addf %241, %240 : vector<8x16xf32>
    %243 = arith.divf %241, %242 : vector<8x16xf32>
    %244 = vector.extract_strided_slice %233 {offsets = [0, 16], sizes = [8, 16], strides = [1, 1]} : vector<8x48xf32> to vector<8x16xf32>
    %245 = vector.extract_strided_slice %235 {offsets = [0, 16], sizes = [8, 16], strides = [1, 1]} : vector<8x48xf32> to vector<8x16xf32>
    %246 = arith.addf %244, %245 : vector<8x16xf32>
    %247 = arith.negf %246 : vector<8x16xf32>
    %248 = math.exp %247 : vector<8x16xf32>
    %cst_43 = arith.constant 1.000000e+00 : f32
    %249 = vector.broadcast %cst_43 : f32 to vector<8x16xf32>
    %250 = arith.addf %249, %248 : vector<8x16xf32>
    %251 = arith.divf %249, %250 : vector<8x16xf32>
    %252 = vector.extract_strided_slice %233 {offsets = [0, 32], sizes = [8, 16], strides = [1, 1]} : vector<8x48xf32> to vector<8x16xf32>
    %253 = vector.extract_strided_slice %235 {offsets = [0, 32], sizes = [8, 16], strides = [1, 1]} : vector<8x48xf32> to vector<8x16xf32>
    %254 = arith.addf %253, %35 : vector<8x16xf32>
    %255 = arith.mulf %243, %254 : vector<8x16xf32>
    %256 = arith.addf %252, %255 : vector<8x16xf32>
    %257 = math.tanh %256 : vector<8x16xf32>
    %258 = arith.subf %232, %257 : vector<8x16xf32>
    %259 = arith.mulf %251, %258 : vector<8x16xf32>
    %260 = arith.addf %257, %259 : vector<8x16xf32>
    %c0_44 = arith.constant 0 : index
    %261 = memref.load %arg9[%c0_44] : memref<8xf32, #tpu.memory_space<smem>>
    %262 = vector.broadcast %261 : f32 to vector<8x16xf32>
    %263 = arith.mulf %64, %262 : vector<8x16xf32>
    %c1 = arith.constant 1 : index
    %264 = memref.load %arg9[%c1] : memref<8xf32, #tpu.memory_space<smem>>
    %265 = vector.broadcast %264 : f32 to vector<8x16xf32>
    %266 = arith.mulf %92, %265 : vector<8x16xf32>
    %267 = arith.addf %263, %266 : vector<8x16xf32>
    %c2 = arith.constant 2 : index
    %268 = memref.load %arg9[%c2] : memref<8xf32, #tpu.memory_space<smem>>
    %269 = vector.broadcast %268 : f32 to vector<8x16xf32>
    %270 = arith.mulf %120, %269 : vector<8x16xf32>
    %271 = arith.addf %267, %270 : vector<8x16xf32>
    %c3 = arith.constant 3 : index
    %272 = memref.load %arg9[%c3] : memref<8xf32, #tpu.memory_space<smem>>
    %273 = vector.broadcast %272 : f32 to vector<8x16xf32>
    %274 = arith.mulf %148, %273 : vector<8x16xf32>
    %275 = arith.addf %271, %274 : vector<8x16xf32>
    %c4 = arith.constant 4 : index
    %276 = memref.load %arg9[%c4] : memref<8xf32, #tpu.memory_space<smem>>
    %277 = vector.broadcast %276 : f32 to vector<8x16xf32>
    %278 = arith.mulf %176, %277 : vector<8x16xf32>
    %279 = arith.addf %275, %278 : vector<8x16xf32>
    %c5 = arith.constant 5 : index
    %280 = memref.load %arg9[%c5] : memref<8xf32, #tpu.memory_space<smem>>
    %281 = vector.broadcast %280 : f32 to vector<8x16xf32>
    %282 = arith.mulf %204, %281 : vector<8x16xf32>
    %283 = arith.addf %279, %282 : vector<8x16xf32>
    %c6 = arith.constant 6 : index
    %284 = memref.load %arg9[%c6] : memref<8xf32, #tpu.memory_space<smem>>
    %285 = vector.broadcast %284 : f32 to vector<8x16xf32>
    %286 = arith.mulf %232, %285 : vector<8x16xf32>
    %287 = arith.addf %283, %286 : vector<8x16xf32>
    %c7 = arith.constant 7 : index
    %288 = memref.load %arg9[%c7] : memref<8xf32, #tpu.memory_space<smem>>
    %289 = vector.broadcast %288 : f32 to vector<8x16xf32>
    %290 = arith.mulf %260, %289 : vector<8x16xf32>
    %291 = arith.addf %287, %290 : vector<8x16xf32>
    %292 = vector.extract_strided_slice %291 {offsets = [0, 0], sizes = [4, 16], strides = [1, 1]} : vector<8x16xf32> to vector<4x16xf32>
    %293 = arith.addf %17, %292 : vector<4x16xf32>
    %c0_45 = arith.constant 0 : index
    %294 = memref.load %arg10[%c0_45] : memref<1xf32, #tpu.memory_space<smem>>
    %295 = vector.broadcast %294 : f32 to vector<4x16xf32>
    %296 = arith.addf %293, %295 : vector<4x16xf32>
    %297 = tpu.concatenate %1, %296 in 1 : vector<4x16xf32>, vector<4x16xf32> -> vector<4x32xf32>
    %c0_46 = arith.constant 0 : index
    %c0_47 = arith.constant 0 : index
    %298 = vector.load %arg11[%c0_46, %c0_47] : memref<4x32xf32, #tpu.memory_space<vmem>>, vector<4x32xf32>
    tpu.vector_store %arg11[%c0_46, %c0_47], %297 {strides = array<i32>} : memref<4x32xf32, #tpu.memory_space<vmem>>, vector<4x32xf32>,
    return
  }
}

</mosaic_0001>

<llo_original>
// kernel: tpu_custom_call.1
$region0: #{tpu_custom_call.1}
  #allocation0 [shape = 'u32[]', space=smem, size = 0x4, offset = 0x4, fixed_abs, tag = 'smem constant byte address 0x4 - core index']
  #allocation1 [shape = 'u32[72,128]{1,0:T(1,128)}', space=vmem, size = 0x9000, scoped, tag = 'internal scratch']
  #allocation2 [shape = 'f32[1]{0:T(128)S(6)}', space=smem, size = 0x200, scoped, tag = 'scoped memory for tpu_custom_call.1']
  %s0 = inlined_call_operand.vmem [shape: f32[4,32], index: 0, kind: input, shape index: {}]
  %s1 = inlined_call_operand.vmem [shape: f32[64,1], index: 1, kind: input, shape index: {}]
  %s2 = inlined_call_operand.vmem [shape: bf16[16,32], index: 2, kind: input, shape index: {}]
  %s3 = inlined_call_operand.vmem [shape: f32[1,32], index: 3, kind: input, shape index: {}]
  %s4 = inlined_call_operand.vmem [shape: f32[1,16], index: 4, kind: input, shape index: {}]
  %s5 = inlined_call_operand.vmem [shape: bf16[32,48], index: 5, kind: input, shape index: {}]
  %s6 = inlined_call_operand.vmem [shape: bf16[16,48], index: 6, kind: input, shape index: {}]
  %s7 = inlined_call_operand.vmem [shape: f32[1,48], index: 7, kind: input, shape index: {}]
  %s8 = inlined_call_operand.vmem [shape: f32[1,16], index: 8, kind: input, shape index: {}]
  %s9 = inlined_call_operand.vmem [shape: f32[8], index: 9, kind: input, shape index: {}]
  %s10 = inlined_call_operand.<no memory space> [shape: f32[1], index: 10, kind: input, shape index: {}]
  %s11 = inlined_call_operand.hbm [shape: f32[4,32], index: 11, kind: output, shape index: {}]
  %s12 = sld [smem:[#allocation0]]
  $region58: #{tpu_custom_call.1} parent=0
    _
  %s14 = ssub.s32 1, %s12
  %s15 = scalar_select 0, %s14, %s12
  %16 = sst [smem:[#allocation2]] %s10
  $region1: #{tpu_custom_call.1} parent=0
    #allocation3 [shape = 'u8[512]{0}', space=smem, size = 0x200, scoped, tag = 'input window, operand 9, single buffered']
    #allocation4 [shape = 's32[1]{0}', space=sflag, size = 0x4, scoped, tag = 'scoped memory for tpu_custom_call.1']
    #allocation5 [shape = 's32[1]{0}', space=sflag, size = 0x4, scoped, tag = 'scoped memory for tpu_custom_call.1']
    #allocation6 [shape = 'u8[2048]{0}', space=vmem, size = 0x800, scoped, tag = 'output window, operand 0, single buffered']
    %17 = vsyncpa [#allocation5], 0
    %18 = vsyncpa [#allocation4], 0
    // Predicated region
    $region2: #{tpu_custom_call.1} parent=1 // pred_check
      _
    $region3: #{tpu_custom_call.1} parent=1 // pred_check_branch
      %20 = sbr.rel (0) target = $region5
    $region4: #{tpu_custom_call.1} parent=1 // pred_region
      _
    $region5: #{tpu_custom_call.1} parent=1 // pred_fallthru
      _
    // Predicated region
    $region6: #{tpu_custom_call.1} parent=1 // pred_check
      _
    $region7: #{tpu_custom_call.1} parent=1 // pred_check_branch
      %22 = sbr.rel (0) target = $region9
    $region8: #{tpu_custom_call.1} parent=1 // pred_region
      _
    $region9: #{tpu_custom_call.1} parent=1 // pred_fallthru
      _
    // Predicated region
    $region10: #{tpu_custom_call.1} parent=1 // pred_check
      _
    $region11: #{tpu_custom_call.1} parent=1 // pred_check_branch
      %24 = sbr.rel (0) target = $region13
    $region12: #{tpu_custom_call.1} parent=1 // pred_region
      _
    $region13: #{tpu_custom_call.1} parent=1 // pred_fallthru
      _
    // Predicated region
    $region14: #{tpu_custom_call.1} parent=1 // pred_check
      _
    $region15: #{tpu_custom_call.1} parent=1 // pred_check_branch
      %26 = sbr.rel (0) target = $region17
    $region16: #{tpu_custom_call.1} parent=1 // pred_region
      _
    $region17: #{tpu_custom_call.1} parent=1 // pred_fallthru
      _
    // Predicated region
    $region18: #{tpu_custom_call.1} parent=1 // pred_check
      _
    $region19: #{tpu_custom_call.1} parent=1 // pred_check_branch
      %28 = sbr.rel (0) target = $region21
    $region20: #{tpu_custom_call.1} parent=1 // pred_region
      _
    $region21: #{tpu_custom_call.1} parent=1 // pred_fallthru
      _
    // Predicated region
    $region22: #{tpu_custom_call.1} parent=1 // pred_check
      _
    $region23: #{tpu_custom_call.1} parent=1 // pred_check_branch
      %30 = sbr.rel (0) target = $region25
    $region24: #{tpu_custom_call.1} parent=1 // pred_region
      _
    $region25: #{tpu_custom_call.1} parent=1 // pred_fallthru
      _
    // Predicated region
    $region26: #{tpu_custom_call.1} parent=1 // pred_check
      _
    $region27: #{tpu_custom_call.1} parent=1 // pred_check_branch
      %32 = sbr.rel (0) target = $region29
    $region28: #{tpu_custom_call.1} parent=1 // pred_region
      _
    $region29: #{tpu_custom_call.1} parent=1 // pred_fallthru
      _
    // Predicated region
    $region30: #{tpu_custom_call.1} parent=1 // pred_check
      _
    $region31: #{tpu_custom_call.1} parent=1 // pred_check_branch
      %34 = sbr.rel (0) target = $region33
    $region32: #{tpu_custom_call.1} parent=1 // pred_region
      _
    $region33: #{tpu_custom_call.1} parent=1 // pred_fallthru
      _
    // Predicated region
    $region34: #{tpu_custom_call.1} parent=1 // pred_check
      _
    $region35: #{tpu_custom_call.1} parent=1 // pred_check_branch
      %36 = sbr.rel (0) target = $region37
    $region36: #{tpu_custom_call.1} parent=1 // pred_region
      _
    $region37: #{tpu_custom_call.1} parent=1 // pred_fallthru
      _
    // Predicated region
    $region38: #{tpu_custom_call.1} parent=1 // pred_check
      _
    $region39: #{tpu_custom_call.1} parent=1 // pred_check_branch
      %38 = sbr.rel (0) target = $region41
    $region40: #{tpu_custom_call.1} parent=1 // pred_region
      %40 = vsyncadd [#allocation5], 0
      %s42 = sshll.u32 %s9, 4
      %s43 = int_to_ptr.vmem [resolvable:$true] %s42
      %45 = dma.vmem_to_smem %s43, 16, [#allocation3], [#allocation5]
    $region41: #{tpu_custom_call.1} parent=1 // pred_fallthru
      _
    // Predicated region
    $region42: #{tpu_custom_call.1} parent=1 // pred_check
      _
    $region43: #{tpu_custom_call.1} parent=1 // pred_check_branch
      %47 = sbr.rel (0) target = $region45
    $region44: #{tpu_custom_call.1} parent=1 // pred_region
      _
    $region45: #{tpu_custom_call.1} parent=1 // pred_fallthru
      _
    // Predicated region
    $region46: #{tpu_custom_call.1} parent=1 // pred_check
      _
    $region47: #{tpu_custom_call.1} parent=1 // pred_check_branch
      %49 = sbr.rel (0) target = $region49
    $region48: #{tpu_custom_call.1} parent=1 // pred_region
      %51 = dma.done [#allocation5], 16
    $region49: #{tpu_custom_call.1} parent=1 // pred_fallthru
      _
    %52 = sfence
    %v54 = vld [vmem:[%s0] sm:$0xf]
    %v55 = vpack.c.bf16 %v54, %v54
    %v56 = vld [vmem:[%s2] sm:$0xf]
    %v57 = vld [vmem:[%s2 + $0x4] sm:$0xf]
    %v58 = vld [vmem:[%s3] sm:$0x1]
    %v60 = vperm.slane %v58, 0
    %v64 = vunpack.c.l.b16 %v56
    %v65 = vunpack.c.l.b16 %v57
    %v66 = vpack.c.b16 %v65, %v64
    %vm68 = vcmask 130048
    %v70 = vsel %vm68, %v55, 0
    %72 = vmatpush.bf16.msra.mxu0 0
    %73 = vmatpush.bf16.msra.mxu0 0
    %74 = vmatpush.bf16.msra.mxu0 0
    %75 = vmatpush.bf16.msra.mxu0 0
    %76 = vmatpush.bf16.msra.mxu0 0
    %77 = vmatpush.bf16.msra.mxu0 0
    %78 = vmatpush.bf16.msra.mxu0 0
    %79 = vmatpush.bf16.msra.mxu0 %v66
    %80 = vmatmul.bf16.gmra.mxu0 %v70
    %v81 = vpop.f32.mrf.mxu0
    %v82 = vadd.f32 %v60, %v81
    %v83 = vpop.f32.mrf.mxu0
    %84 = vdwg.mxu0
    %v85 = vxor.u32 %v82, 2147483648
    %v86 = vmul.f32 %v85, 1.442695
    %v87 = vpow.pop %v86
    %v88 = vadd.f32 %v87, 1.0
    %v89 = vrcp.pop %v88
    %v90 = vmul.f32 %v88, %v89
    %v91 = vsub.f32 1.0, %v90
    %v92 = vmul.f32 %v89, %v91
    %v93 = vadd.f32 %v89, %v92
    %vm94 = vweird.f32 %v88
    %vm95 = vweird.f32 %v89
    %vm96 = vmor %vm94, %vm95
    %v97 = vsel %vm96, %v89, %v93
    %v98 = vand.u32 2147483647, %v88
    %vm99 = vcmp.eq.f32.partialorder %v98, 8.507059e+37
    %v100 = vand.u32 %v88, 2147483648
    %v101 = vor.u32 1.1754944e-38, %v100
    %v102 = vsel %vm99, %v101, %v97
    %v103 = vmul.f32 1.0, %v102
    %105 = vrot.lane.b32.xlu0 %v54, 112
    %v106 = vpop.permute.xlu0 %105
    %v108 = vmul.f32 %v103, %v106
    %110 = vrot.lane.b32.xlu0 %v82, 112
    %v111 = vpop.permute.xlu0 %110
    %v113 = vadd.f32 %v108, %v111
    %v114 = vld [vmem:[%s1] sm:$0xff]
    %v115 = vld [vmem:[%s1 + $0x8] sm:$0xff]
    %v116 = vld [vmem:[%s1 + $0x10] sm:$0xff]
    %v117 = vld [vmem:[%s1 + $0x18] sm:$0xff]
    %v118 = vld [vmem:[%s1 + $0x20] sm:$0xff]
    %v119 = vld [vmem:[%s1 + $0x28] sm:$0xff]
    %v120 = vld [vmem:[%s1 + $0x30] sm:$0xff]
    %v121 = vld [vmem:[%s1 + $0x38] sm:$0xff]
    %v122 = vld [vmem:[%s4] sm:$0x1]
    %124 = vset.pattern.permute.xlu0 0
    %125 = vperm.xlu0 %124, %v114
    %v126 = vpop.permute.xlu0 %125
    %129 = vset.pattern.permute.xlu0 0
    %130 = vperm.xlu0 %129, %v115
    %v131 = vpop.permute.xlu0 %130
    %134 = vset.pattern.permute.xlu0 0
    %135 = vperm.xlu0 %134, %v116
    %v136 = vpop.permute.xlu0 %135
    %139 = vset.pattern.permute.xlu0 0
    %140 = vperm.xlu0 %139, %v117
    %v141 = vpop.permute.xlu0 %140
    %144 = vset.pattern.permute.xlu0 0
    %145 = vperm.xlu0 %144, %v118
    %v146 = vpop.permute.xlu0 %145
    %149 = vset.pattern.permute.xlu0 0
    %150 = vperm.xlu0 %149, %v119
    %v151 = vpop.permute.xlu0 %150
    %154 = vset.pattern.permute.xlu0 0
    %155 = vperm.xlu0 %154, %v120
    %v156 = vpop.permute.xlu0 %155
    %159 = vset.pattern.permute.xlu0 0
    %160 = vperm.xlu0 %159, %v121
    %v161 = vpop.permute.xlu0 %160
    %v164 = vperm.slane %v122, 0
    %v166 = vmul.f32 %v126, %v164
    %v167 = vmul.f32 %v131, %v164
    %v168 = vmul.f32 %v136, %v164
    %v169 = vmul.f32 %v141, %v164
    %v170 = vmul.f32 %v146, %v164
    %v171 = vmul.f32 %v151, %v164
    %v172 = vmul.f32 %v156, %v164
    %v173 = vmul.f32 %v161, %v164
    %v174 = vand.u32 2147483647, %v166
    %vm175 = vcmp.le.f32.partialorder %v174, 0.7853982
    %vm176 = vcmp.lt.s32.totalorder %v166, 0
    %v177 = vand.u32 %v166, 2139095040
    %v178 = vshrl.u32 %v177, 23
    %v179 = vsub.s32 %v178, 127
    %v180 = vand.u32 2147483647, %v166
    %v181 = vand.u32 %v180, 8388607
    %v182 = vor.u32 %v181, 8388608
    %v183 = vsub.s32 0, %v182
    %v184 = vadd.s32 %v179, 1
    %vm185 = vcmp.gt.s32.totalorder %v184, 0
    %v186 = vsel %vm185, %v184, 0
    %v187 = vshrl.u32 %v186, 5
    %v188 = vand.u32 %v186, 31
    %v189 = vsub.s32 32, %v188
    %v190 = vshrl.u32 683565275, %v189
    %v191 = vshll.u32 683565275, %v188
    %v192 = vshrl.u32 2475754826, %v189
    %v193 = vor.u32 %v191, %v192
    %v194 = vshll.u32 2475754826, %v188
    %v195 = vshrl.u32 2131351028, %v189
    %v196 = vor.u32 %v194, %v195
    %v197 = vshll.u32 2131351028, %v188
    %v198 = vshrl.u32 2102212464, %v189
    %v199 = vor.u32 %v197, %v198
    %v200 = vshll.u32 2102212464, %v188
    %v201 = vshrl.u32 920167782, %v189
    %v202 = vor.u32 %v200, %v201
    %v203 = vshll.u32 920167782, %v188
    %v204 = vshrl.u32 1326507024, %v189
    %v205 = vor.u32 %v203, %v204
    %vm206 = vcmp.lt.s32.totalorder %v187, 1
    %vm207 = vcmp.lt.s32.totalorder %v187, 2
    %vm208 = vcmp.lt.s32.totalorder %v187, 3
    %vm209 = vcmp.lt.s32.totalorder %v187, 4
    %v210 = vsel %vm206, %v190, %v193
    %v211 = vsel %vm209, %v199, 2102212464
    %v212 = vsel %vm208, %v196, %v211
    %v213 = vsel %vm207, %v210, %v212
    %v214 = vsel %vm206, %v193, %v196
    %v215 = vsel %vm209, %v202, 920167782
    %v216 = vsel %vm208, %v199, %v215
    %v217 = vsel %vm207, %v214, %v216
    %v218 = vsel %vm206, %v196, %v199
    %v219 = vsel %vm209, %v205, 1326507024
    %v220 = vsel %vm208, %v202, %v219
    %v221 = vsel %vm207, %v218, %v220
    %v222 = vshll.u32 %v182, 8
    %v223 = vand.u32 %v222, 65535
    %v224 = vshrl.u32 %v222, 16
    %v225 = vand.u32 %v221, 65535
    %v226 = vshrl.u32 %v221, 16
    %v227 = vmul.u32 %v223, %v225
    %v228 = vmul.u32 %v223, %v226
    %v229 = vmul.u32 %v224, %v225
    %v230 = vmul.u32 %v224, %v226
    %v231 = vshll.u32 %v228, 16
    %v232 = vshrl.u32 %v228, 16
    %v233 = vshll.u32 %v229, 16
    %v234 = vshrl.u32 %v229, 16
    %vm235 = vc.u32 %v227, %v231
    %v236 = vsel %vm235, 1, 0
    %v237 = vadd.s32 %v227, %v231
    %v238 = vadd.s32 %v230, %v236
    %vm239 = vc.u32 %v237, %v233
    %v240 = vsel %vm239, 1, 0
    %v241 = vadd.s32 %v237, %v233
    %v242 = vadd.s32 %v238, %v240
    %v243 = vadd.s32 %v242, %v232
    %v244 = vadd.s32 %v243, %v234
    %v245 = vand.u32 %v222, 65535
    %v246 = vshrl.u32 %v222, 16
    %v247 = vand.u32 %v217, 65535
    %v248 = vshrl.u32 %v217, 16
    %v249 = vmul.u32 %v245, %v247
    %v250 = vmul.u32 %v245, %v248
    %v251 = vmul.u32 %v246, %v247
    %v252 = vmul.u32 %v246, %v248
    %v253 = vshll.u32 %v250, 16
    %v254 = vshrl.u32 %v250, 16
    %v255 = vshll.u32 %v251, 16
    %v256 = vshrl.u32 %v251, 16
    %vm257 = vc.u32 %v249, %v253
    %v258 = vsel %vm257, 1, 0
    %v259 = vadd.s32 %v249, %v253
    %v260 = vadd.s32 %v252, %v258
    %vm261 = vc.u32 %v259, %v255
    %v262 = vsel %vm261, 1, 0
    %v263 = vadd.s32 %v259, %v255
    %v264 = vadd.s32 %v260, %v262
    %v265 = vadd.s32 %v264, %v254
    %v266 = vadd.s32 %v265, %v256
    %v267 = vmul.u32 %v222, %v213
    %v268 = vadd.s32 %v244, %v263
    %vm269 = vc.u32 %v244, %v263
    %v270 = vadd.s32 %v266, 1
    %v271 = vsel %vm269, %v270, %v266
    %v272 = vadd.s32 %v267, %v271
    %v273 = vadd.s32 %v272, 536870912
    %v274 = vshrl.u32 %v273, 30
    %v275 = vshll.u32 %v274, 30
    %v276 = vsub.s32 %v272, %v275
    %vm277 = vcmp.lt.s32.totalorder %v276, 0
    %v278 = vsub.s32 0, %v276
    %v279 = vsel %vm277, %v278, %v276
    %v280 = vclz %v279
    %v281 = vsub.s32 %v280, 2
    %vm282 = vcmp.gt.s32.totalorder 0, %v281
    %v283 = vsel %vm282, 0, %v281
    %v284 = vsub.s32 32, %v283
    %v285 = vshll.u32 %v276, %v283
    %v286 = vshrl.u32 %v268, %v284
    %v287 = vor.u32 %v285, %v286
    %v288 = vsub.s32 4294967266, %v283
    %v289 = vadd.s32 %v288, 127
    %v290 = vshll.u32 %v289, 23
    %v291 = vor.u32 4788187, %v290
    %v292 = vand.u32 2147483647, %v291
    %v294 = vcvt.s32.f32 %v287
    %v295 = vmul.f32 %v294, %v292
    %v296 = vxor.u32 %v295, 2147483648
    %v297 = vsel %vm176, %v296, %v295
    %v298 = vsub.s32 4, %v274
    %v299 = vsel %vm176, %v298, %v274
    %v300 = vsel %vm175, %v166, %v297
    %v301 = vsel %vm175, 0, %v299
    %v302 = vmul.f32 %v300, %v300
    %v303 = vmul.f32 %v302, -0.001358992
    %v304 = vadd.f32 %v303, 0.041655596
    %v305 = vmul.f32 %v302, %v304
    %v306 = vadd.f32 %v305, -0.4999988
    %v307 = vmul.f32 %v302, %v306
    %v308 = vadd.f32 1.0, %v307
    %v309 = vmul.f32 %v300, %v300
    %v310 = vmul.f32 %v309, -0.00019511016
    %v311 = vadd.f32 %v310, 0.008332121
    %v312 = vmul.f32 %v309, %v311
    %v313 = vadd.f32 %v312, -0.16666654
    %v314 = vmul.f32 %v309, %v313
    %v315 = vadd.f32 %v314, 1.0
    %v316 = vmul.f32 %v315, %v300
    %vm317 = vweird.f32 %v166
    %v318 = vadd.s32 %v301, 3
    %v319 = vand.u32 %v318, 3
    %vm320 = vcmp.lt.s32.totalorder %v319, 2
    %vm321 = vcmp.eq.s32.totalorder %v319, 0
    %v322 = vxor.u32 %v316, 2147483648
    %v323 = vsel %vm321, %v308, %v322
    %vm324 = vcmp.eq.s32.totalorder %v319, 2
    %v325 = vxor.u32 %v308, 2147483648
    %v326 = vsel %vm324, %v325, %v316
    %v327 = vsel %vm320, %v323, %v326
    %v328 = vsel %vm317, nan, %v327
    %v329 = vand.u32 2147483647, %v167
    %vm330 = vcmp.le.f32.partialorder %v329, 0.7853982
    %vm331 = vcmp.lt.s32.totalorder %v167, 0
    %v332 = vand.u32 %v167, 2139095040
    %v333 = vshrl.u32 %v332, 23
    %v334 = vsub.s32 %v333, 127
    %v335 = vand.u32 2147483647, %v167
    %v336 = vand.u32 %v335, 8388607
    %v337 = vor.u32 %v336, 8388608
    %v338 = vsub.s32 0, %v337
    %v339 = vadd.s32 %v334, 1
    %vm340 = vcmp.gt.s32.totalorder %v339, 0
    %v341 = vsel %vm340, %v339, 0
    %v342 = vshrl.u32 %v341, 5
    %v343 = vand.u32 %v341, 31
    %v344 = vsub.s32 32, %v343
    %v345 = vshrl.u32 683565275, %v344
    %v346 = vshll.u32 683565275, %v343
    %v347 = vshrl.u32 2475754826, %v344
    %v348 = vor.u32 %v346, %v347
    %v349 = vshll.u32 2475754826, %v343
    %v350 = vshrl.u32 2131351028, %v344
    %v351 = vor.u32 %v349, %v350
    %v352 = vshll.u32 2131351028, %v343
    %v353 = vshrl.u32 2102212464, %v344
    %v354 = vor.u32 %v352, %v353
    %v355 = vshll.u32 2102212464, %v343
    %v356 = vshrl.u32 920167782, %v344
    %v357 = vor.u32 %v355, %v356
    %v358 = vshll.u32 920167782, %v343
    %v359 = vshrl.u32 1326507024, %v344
    %v360 = vor.u32 %v358, %v359
    %vm361 = vcmp.lt.s32.totalorder %v342, 1
    %vm362 = vcmp.lt.s32.totalorder %v342, 2
    %vm363 = vcmp.lt.s32.totalorder %v342, 3
    %vm364 = vcmp.lt.s32.totalorder %v342, 4
    %v365 = vsel %vm361, %v345, %v348
    %v366 = vsel %vm364, %v354, 2102212464
    %v367 = vsel %vm363, %v351, %v366
    %v368 = vsel %vm362, %v365, %v367
    %v369 = vsel %vm361, %v348, %v351
    %v370 = vsel %vm364, %v357, 920167782
    %v371 = vsel %vm363, %v354, %v370
    %v372 = vsel %vm362, %v369, %v371
    %v373 = vsel %vm361, %v351, %v354
    %v374 = vsel %vm364, %v360, 1326507024
    %v375 = vsel %vm363, %v357, %v374
    %v376 = vsel %vm362, %v373, %v375
    %v377 = vshll.u32 %v337, 8
    %v378 = vand.u32 %v377, 65535
    %v379 = vshrl.u32 %v377, 16
    %v380 = vand.u32 %v376, 65535
    %v381 = vshrl.u32 %v376, 16
    %v382 = vmul.u32 %v378, %v380
    %v383 = vmul.u32 %v378, %v381
    %v384 = vmul.u32 %v379, %v380
    %v385 = vmul.u32 %v379, %v381
    %v386 = vshll.u32 %v383, 16
    %v387 = vshrl.u32 %v383, 16
    %v388 = vshll.u32 %v384, 16
    %v389 = vshrl.u32 %v384, 16
    %vm390 = vc.u32 %v382, %v386
    %v391 = vsel %vm390, 1, 0
    %v392 = vadd.s32 %v382, %v386
    %v393 = vadd.s32 %v385, %v391
    %vm394 = vc.u32 %v392, %v388
    %v395 = vsel %vm394, 1, 0
    %v396 = vadd.s32 %v392, %v388
    %v397 = vadd.s32 %v393, %v395
    %v398 = vadd.s32 %v397, %v387
    %v399 = vadd.s32 %v398, %v389
    %v400 = vand.u32 %v377, 65535
    %v401 = vshrl.u32 %v377, 16
    %v402 = vand.u32 %v372, 65535
    %v403 = vshrl.u32 %v372, 16
    %v404 = vmul.u32 %v400, %v402
    %v405 = vmul.u32 %v400, %v403
    %v406 = vmul.u32 %v401, %v402
    %v407 = vmul.u32 %v401, %v403
    %v408 = vshll.u32 %v405, 16
    %v409 = vshrl.u32 %v405, 16
    %v410 = vshll.u32 %v406, 16
    %v411 = vshrl.u32 %v406, 16
    %vm412 = vc.u32 %v404, %v408
    %v413 = vsel %vm412, 1, 0
    %v414 = vadd.s32 %v404, %v408
    %v415 = vadd.s32 %v407, %v413
    %vm416 = vc.u32 %v414, %v410
    %v417 = vsel %vm416, 1, 0
    %v418 = vadd.s32 %v414, %v410
    %v419 = vadd.s32 %v415, %v417
    %v420 = vadd.s32 %v419, %v409
    %v421 = vadd.s32 %v420, %v411
    %v422 = vmul.u32 %v377, %v368
    %v423 = vadd.s32 %v399, %v418
    %vm424 = vc.u32 %v399, %v418
    %v425 = vadd.s32 %v421, 1
    %v426 = vsel %vm424, %v425, %v421
    %v427 = vadd.s32 %v422, %v426
    %v428 = vadd.s32 %v427, 536870912
    %v429 = vshrl.u32 %v428, 30
    %v430 = vshll.u32 %v429, 30
    %v431 = vsub.s32 %v427, %v430
    %vm432 = vcmp.lt.s32.totalorder %v431, 0
    %v433 = vsub.s32 0, %v431
    %v434 = vsel %vm432, %v433, %v431
    %v435 = vclz %v434
    %v436 = vsub.s32 %v435, 2
    %vm437 = vcmp.gt.s32.totalorder 0, %v436
    %v438 = vsel %vm437, 0, %v436
    %v439 = vsub.s32 32, %v438
    %v440 = vshll.u32 %v431, %v438
    %v441 = vshrl.u32 %v423, %v439
    %v442 = vor.u32 %v440, %v441
    %v443 = vsub.s32 4294967266, %v438
    %v444 = vadd.s32 %v443, 127
    %v445 = vshll.u32 %v444, 23
    %v446 = vor.u32 4788187, %v445
    %v447 = vand.u32 2147483647, %v446
    %v449 = vcvt.s32.f32 %v442
    %v450 = vmul.f32 %v449, %v447
    %v451 = vxor.u32 %v450, 2147483648
    %v452 = vsel %vm331, %v451, %v450
    %v453 = vsub.s32 4, %v429
    %v454 = vsel %vm331, %v453, %v429
    %v455 = vsel %vm330, %v167, %v452
    %v456 = vsel %vm330, 0, %v454
    %v457 = vmul.f32 %v455, %v455
    %v458 = vmul.f32 %v457, -0.001358992
    %v459 = vadd.f32 %v458, 0.041655596
    %v460 = vmul.f32 %v457, %v459
    %v461 = vadd.f32 %v460, -0.4999988
    %v462 = vmul.f32 %v457, %v461
    %v463 = vadd.f32 1.0, %v462
    %v464 = vmul.f32 %v455, %v455
    %v465 = vmul.f32 %v464, -0.00019511016
    %v466 = vadd.f32 %v465, 0.008332121
    %v467 = vmul.f32 %v464, %v466
    %v468 = vadd.f32 %v467, -0.16666654
    %v469 = vmul.f32 %v464, %v468
    %v470 = vadd.f32 %v469, 1.0
    %v471 = vmul.f32 %v470, %v455
    %vm472 = vweird.f32 %v167
    %v473 = vadd.s32 %v456, 3
    %v474 = vand.u32 %v473, 3
    %vm475 = vcmp.lt.s32.totalorder %v474, 2
    %vm476 = vcmp.eq.s32.totalorder %v474, 0
    %v477 = vxor.u32 %v471, 2147483648
    %v478 = vsel %vm476, %v463, %v477
    %vm479 = vcmp.eq.s32.totalorder %v474, 2
    %v480 = vxor.u32 %v463, 2147483648
    %v481 = vsel %vm479, %v480, %v471
    %v482 = vsel %vm475, %v478, %v481
    %v483 = vsel %vm472, nan, %v482
    %v484 = vand.u32 2147483647, %v168
    %vm485 = vcmp.le.f32.partialorder %v484, 0.7853982
    %vm486 = vcmp.lt.s32.totalorder %v168, 0
    %v487 = vand.u32 %v168, 2139095040
    %v488 = vshrl.u32 %v487, 23
    %v489 = vsub.s32 %v488, 127
    %v490 = vand.u32 2147483647, %v168
    %v491 = vand.u32 %v490, 8388607
    %v492 = vor.u32 %v491, 8388608
    %v493 = vsub.s32 0, %v492
    %v494 = vadd.s32 %v489, 1
    %vm495 = vcmp.gt.s32.totalorder %v494, 0
    %v496 = vsel %vm495, %v494, 0
    %v497 = vshrl.u32 %v496, 5
    %v498 = vand.u32 %v496, 31
    %v499 = vsub.s32 32, %v498
    %v500 = vshrl.u32 683565275, %v499
    %v501 = vshll.u32 683565275, %v498
    %v502 = vshrl.u32 2475754826, %v499
    %v503 = vor.u32 %v501, %v502
    %v504 = vshll.u32 2475754826, %v498
    %v505 = vshrl.u32 2131351028, %v499
    %v506 = vor.u32 %v504, %v505
    %v507 = vshll.u32 2131351028, %v498
    %v508 = vshrl.u32 2102212464, %v499
    %v509 = vor.u32 %v507, %v508
    %v510 = vshll.u32 2102212464, %v498
    %v511 = vshrl.u32 920167782, %v499
    %v512 = vor.u32 %v510, %v511
    %v513 = vshll.u32 920167782, %v498
    %v514 = vshrl.u32 1326507024, %v499
    %v515 = vor.u32 %v513, %v514
    %vm516 = vcmp.lt.s32.totalorder %v497, 1
    %vm517 = vcmp.lt.s32.totalorder %v497, 2
    %vm518 = vcmp.lt.s32.totalorder %v497, 3
    %vm519 = vcmp.lt.s32.totalorder %v497, 4
    %v520 = vsel %vm516, %v500, %v503
    %v521 = vsel %vm519, %v509, 2102212464
    %v522 = vsel %vm518, %v506, %v521
    %v523 = vsel %vm517, %v520, %v522
    %v524 = vsel %vm516, %v503, %v506
    %v525 = vsel %vm519, %v512, 920167782
    %v526 = vsel %vm518, %v509, %v525
    %v527 = vsel %vm517, %v524, %v526
    %v528 = vsel %vm516, %v506, %v509
    %v529 = vsel %vm519, %v515, 1326507024
    %v530 = vsel %vm518, %v512, %v529
    %v531 = vsel %vm517, %v528, %v530
    %v532 = vshll.u32 %v492, 8
    %v533 = vand.u32 %v532, 65535
    %v534 = vshrl.u32 %v532, 16
    %v535 = vand.u32 %v531, 65535
    %v536 = vshrl.u32 %v531, 16
    %v537 = vmul.u32 %v533, %v535
    %v538 = vmul.u32 %v533, %v536
    %v539 = vmul.u32 %v534, %v535
    %v540 = vmul.u32 %v534, %v536
    %v541 = vshll.u32 %v538, 16
    %v542 = vshrl.u32 %v538, 16
    %v543 = vshll.u32 %v539, 16
    %v544 = vshrl.u32 %v539, 16
    %vm545 = vc.u32 %v537, %v541
    %v546 = vsel %vm545, 1, 0
    %v547 = vadd.s32 %v537, %v541
    %v548 = vadd.s32 %v540, %v546
    %vm549 = vc.u32 %v547, %v543
    %v550 = vsel %vm549, 1, 0
    %v551 = vadd.s32 %v547, %v543
    %v552 = vadd.s32 %v548, %v550
    %v553 = vadd.s32 %v552, %v542
    %v554 = vadd.s32 %v553, %v544
    %v555 = vand.u32 %v532, 65535
    %v556 = vshrl.u32 %v532, 16
    %v557 = vand.u32 %v527, 65535
    %v558 = vshrl.u32 %v527, 16
    %v559 = vmul.u32 %v555, %v557
    %v560 = vmul.u32 %v555, %v558
    %v561 = vmul.u32 %v556, %v557
    %v562 = vmul.u32 %v556, %v558
    %v563 = vshll.u32 %v560, 16
    %v564 = vshrl.u32 %v560, 16
    %v565 = vshll.u32 %v561, 16
    %v566 = vshrl.u32 %v561, 16
    %vm567 = vc.u32 %v559, %v563
    %v568 = vsel %vm567, 1, 0
    %v569 = vadd.s32 %v559, %v563
    %v570 = vadd.s32 %v562, %v568
    %vm571 = vc.u32 %v569, %v565
    %v572 = vsel %vm571, 1, 0
    %v573 = vadd.s32 %v569, %v565
    %v574 = vadd.s32 %v570, %v572
    %v575 = vadd.s32 %v574, %v564
    %v576 = vadd.s32 %v575, %v566
    %v577 = vmul.u32 %v532, %v523
    %v578 = vadd.s32 %v554, %v573
    %vm579 = vc.u32 %v554, %v573
    %v580 = vadd.s32 %v576, 1
    %v581 = vsel %vm579, %v580, %v576
    %v582 = vadd.s32 %v577, %v581
    %v583 = vadd.s32 %v582, 536870912
    %v584 = vshrl.u32 %v583, 30
    %v585 = vshll.u32 %v584, 30
    %v586 = vsub.s32 %v582, %v585
    %vm587 = vcmp.lt.s32.totalorder %v586, 0
    %v588 = vsub.s32 0, %v586
    %v589 = vsel %vm587, %v588, %v586
    %v590 = vclz %v589
    %v591 = vsub.s32 %v590, 2
    %vm592 = vcmp.gt.s32.totalorder 0, %v591
    %v593 = vsel %vm592, 0, %v591
    %v594 = vsub.s32 32, %v593
    %v595 = vshll.u32 %v586, %v593
    %v596 = vshrl.u32 %v578, %v594
    %v597 = vor.u32 %v595, %v596
    %v598 = vsub.s32 4294967266, %v593
    %v599 = vadd.s32 %v598, 127
    %v600 = vshll.u32 %v599, 23
    %v601 = vor.u32 4788187, %v600
    %v602 = vand.u32 2147483647, %v601
    %v604 = vcvt.s32.f32 %v597
    %v605 = vmul.f32 %v604, %v602
    %v606 = vxor.u32 %v605, 2147483648
    %v607 = vsel %vm486, %v606, %v605
    %v608 = vsub.s32 4, %v584
    %v609 = vsel %vm486, %v608, %v584
    %v610 = vsel %vm485, %v168, %v607
    %v611 = vsel %vm485, 0, %v609
    %v612 = vmul.f32 %v610, %v610
    %v613 = vmul.f32 %v612, -0.001358992
    %v614 = vadd.f32 %v613, 0.041655596
    %v615 = vmul.f32 %v612, %v614
    %v616 = vadd.f32 %v615, -0.4999988
    %v617 = vmul.f32 %v612, %v616
    %v618 = vadd.f32 1.0, %v617
    %v619 = vmul.f32 %v610, %v610
    %v620 = vmul.f32 %v619, -0.00019511016
    %v621 = vadd.f32 %v620, 0.008332121
    %v622 = vmul.f32 %v619, %v621
    %v623 = vadd.f32 %v622, -0.16666654
    %v624 = vmul.f32 %v619, %v623
    %v625 = vadd.f32 %v624, 1.0
    %v626 = vmul.f32 %v625, %v610
    %vm627 = vweird.f32 %v168
    %v628 = vadd.s32 %v611, 3
    %v629 = vand.u32 %v628, 3
    %vm630 = vcmp.lt.s32.totalorder %v629, 2
    %vm631 = vcmp.eq.s32.totalorder %v629, 0
    %v632 = vxor.u32 %v626, 2147483648
    %v633 = vsel %vm631, %v618, %v632
    %vm634 = vcmp.eq.s32.totalorder %v629, 2
    %v635 = vxor.u32 %v618, 2147483648
    %v636 = vsel %vm634, %v635, %v626
    %v637 = vsel %vm630, %v633, %v636
    %v638 = vsel %vm627, nan, %v637
    %v639 = vand.u32 2147483647, %v169
    %vm640 = vcmp.le.f32.partialorder %v639, 0.7853982
    %vm641 = vcmp.lt.s32.totalorder %v169, 0
    %v642 = vand.u32 %v169, 2139095040
    %v643 = vshrl.u32 %v642, 23
    %v644 = vsub.s32 %v643, 127
    %v645 = vand.u32 2147483647, %v169
    %v646 = vand.u32 %v645, 8388607
    %v647 = vor.u32 %v646, 8388608
    %v648 = vsub.s32 0, %v647
    %v649 = vadd.s32 %v644, 1
    %vm650 = vcmp.gt.s32.totalorder %v649, 0
    %v651 = vsel %vm650, %v649, 0
    %v652 = vshrl.u32 %v651, 5
    %v653 = vand.u32 %v651, 31
    %v654 = vsub.s32 32, %v653
    %v655 = vshrl.u32 683565275, %v654
    %v656 = vshll.u32 683565275, %v653
    %v657 = vshrl.u32 2475754826, %v654
    %v658 = vor.u32 %v656, %v657
    %v659 = vshll.u32 2475754826, %v653
    %v660 = vshrl.u32 2131351028, %v654
    %v661 = vor.u32 %v659, %v660
    %v662 = vshll.u32 2131351028, %v653
    %v663 = vshrl.u32 2102212464, %v654
    %v664 = vor.u32 %v662, %v663
    %v665 = vshll.u32 2102212464, %v653
    %v666 = vshrl.u32 920167782, %v654
    %v667 = vor.u32 %v665, %v666
    %v668 = vshll.u32 920167782, %v653
    %v669 = vshrl.u32 1326507024, %v654
    %v670 = vor.u32 %v668, %v669
    %vm671 = vcmp.lt.s32.totalorder %v652, 1
    %vm672 = vcmp.lt.s32.totalorder %v652, 2
    %vm673 = vcmp.lt.s32.totalorder %v652, 3
    %vm674 = vcmp.lt.s32.totalorder %v652, 4
    %v675 = vsel %vm671, %v655, %v658
    %v676 = vsel %vm674, %v664, 2102212464
    %v677 = vsel %vm673, %v661, %v676
    %v678 = vsel %vm672, %v675, %v677
    %v679 = vsel %vm671, %v658, %v661
    %v680 = vsel %vm674, %v667, 920167782
    %v681 = vsel %vm673, %v664, %v680
    %v682 = vsel %vm672, %v679, %v681
    %v683 = vsel %vm671, %v661, %v664
    %v684 = vsel %vm674, %v670, 1326507024
    %v685 = vsel %vm673, %v667, %v684
    %v686 = vsel %vm672, %v683, %v685
    %v687 = vshll.u32 %v647, 8
    %v688 = vand.u32 %v687, 65535
    %v689 = vshrl.u32 %v687, 16
    %v690 = vand.u32 %v686, 65535
    %v691 = vshrl.u32 %v686, 16
    %v692 = vmul.u32 %v688, %v690
    %v693 = vmul.u32 %v688, %v691
    %v694 = vmul.u32 %v689, %v690
    %v695 = vmul.u32 %v689, %v691
    %v696 = vshll.u32 %v693, 16
    %v697 = vshrl.u32 %v693, 16
    %v698 = vshll.u32 %v694, 16
    %v699 = vshrl.u32 %v694, 16
    %vm700 = vc.u32 %v692, %v696
    %v701 = vsel %vm700, 1, 0
    %v702 = vadd.s32 %v692, %v696
    %v703 = vadd.s32 %v695, %v701
    %vm704 = vc.u32 %v702, %v698
    %v705 = vsel %vm704, 1, 0
    %v706 = vadd.s32 %v702, %v698
    %v707 = vadd.s32 %v703, %v705
    %v708 = vadd.s32 %v707, %v697
    %v709 = vadd.s32 %v708, %v699
    %v710 = vand.u32 %v687, 65535
    %v711 = vshrl.u32 %v687, 16
    %v712 = vand.u32 %v682, 65535
    %v713 = vshrl.u32 %v682, 16
    %v714 = vmul.u32 %v710, %v712
    %v715 = vmul.u32 %v710, %v713
    %v716 = vmul.u32 %v711, %v712
    %v717 = vmul.u32 %v711, %v713
    %v718 = vshll.u32 %v715, 16
    %v719 = vshrl.u32 %v715, 16
    %v720 = vshll.u32 %v716, 16
    %v721 = vshrl.u32 %v716, 16
    %vm722 = vc.u32 %v714, %v718
    %v723 = vsel %vm722, 1, 0
    %v724 = vadd.s32 %v714, %v718
    %v725 = vadd.s32 %v717, %v723
    %vm726 = vc.u32 %v724, %v720
    %v727 = vsel %vm726, 1, 0
    %v728 = vadd.s32 %v724, %v720
    %v729 = vadd.s32 %v725, %v727
    %v730 = vadd.s32 %v729, %v719
    %v731 = vadd.s32 %v730, %v721
    %v732 = vmul.u32 %v687, %v678
    %v733 = vadd.s32 %v709, %v728
    %vm734 = vc.u32 %v709, %v728
    %v735 = vadd.s32 %v731, 1
    %v736 = vsel %vm734, %v735, %v731
    %v737 = vadd.s32 %v732, %v736
    %v738 = vadd.s32 %v737, 536870912
    %v739 = vshrl.u32 %v738, 30
    %v740 = vshll.u32 %v739, 30
    %v741 = vsub.s32 %v737, %v740
    %vm742 = vcmp.lt.s32.totalorder %v741, 0
    %v743 = vsub.s32 0, %v741
    %v744 = vsel %vm742, %v743, %v741
    %v745 = vclz %v744
    %v746 = vsub.s32 %v745, 2
    %vm747 = vcmp.gt.s32.totalorder 0, %v746
    %v748 = vsel %vm747, 0, %v746
    %v749 = vsub.s32 32, %v748
    %v750 = vshll.u32 %v741, %v748
    %v751 = vshrl.u32 %v733, %v749
    %v752 = vor.u32 %v750, %v751
    %v753 = vsub.s32 4294967266, %v748
    %v754 = vadd.s32 %v753, 127
    %v755 = vshll.u32 %v754, 23
    %v756 = vor.u32 4788187, %v755
    %v757 = vand.u32 2147483647, %v756
    %v759 = vcvt.s32.f32 %v752
    %v760 = vmul.f32 %v759, %v757
    %v761 = vxor.u32 %v760, 2147483648
    %v762 = vsel %vm641, %v761, %v760
    %v763 = vsub.s32 4, %v739
    %v764 = vsel %vm641, %v763, %v739
    %v765 = vsel %vm640, %v169, %v762
    %v766 = vsel %vm640, 0, %v764
    %v767 = vmul.f32 %v765, %v765
    %v768 = vmul.f32 %v767, -0.001358992
    %v769 = vadd.f32 %v768, 0.041655596
    %v770 = vmul.f32 %v767, %v769
    %v771 = vadd.f32 %v770, -0.4999988
    %v772 = vmul.f32 %v767, %v771
    %v773 = vadd.f32 1.0, %v772
    %v774 = vmul.f32 %v765, %v765
    %v775 = vmul.f32 %v774, -0.00019511016
    %v776 = vadd.f32 %v775, 0.008332121
    %v777 = vmul.f32 %v774, %v776
    %v778 = vadd.f32 %v777, -0.16666654
    %v779 = vmul.f32 %v774, %v778
    %v780 = vadd.f32 %v779, 1.0
    %v781 = vmul.f32 %v780, %v765
    %vm782 = vweird.f32 %v169
    %v783 = vadd.s32 %v766, 3
    %v784 = vand.u32 %v783, 3
    %vm785 = vcmp.lt.s32.totalorder %v784, 2
    %vm786 = vcmp.eq.s32.totalorder %v784, 0
    %v787 = vxor.u32 %v781, 2147483648
    %v788 = vsel %vm786, %v773, %v787
    %vm789 = vcmp.eq.s32.totalorder %v784, 2
    %v790 = vxor.u32 %v773, 2147483648
    %v791 = vsel %vm789, %v790, %v781
    %v792 = vsel %vm785, %v788, %v791
    %v793 = vsel %vm782, nan, %v792
    %v794 = vand.u32 2147483647, %v170
    %vm795 = vcmp.le.f32.partialorder %v794, 0.7853982
    %vm796 = vcmp.lt.s32.totalorder %v170, 0
    %v797 = vand.u32 %v170, 2139095040
    %v798 = vshrl.u32 %v797, 23
    %v799 = vsub.s32 %v798, 127
    %v800 = vand.u32 2147483647, %v170
    %v801 = vand.u32 %v800, 8388607
    %v802 = vor.u32 %v801, 8388608
    %v803 = vsub.s32 0, %v802
    %v804 = vadd.s32 %v799, 1
    %vm805 = vcmp.gt.s32.totalorder %v804, 0
    %v806 = vsel %vm805, %v804, 0
    %v807 = vshrl.u32 %v806, 5
    %v808 = vand.u32 %v806, 31
    %v809 = vsub.s32 32, %v808
    %v810 = vshrl.u32 683565275, %v809
    %v811 = vshll.u32 683565275, %v808
    %v812 = vshrl.u32 2475754826, %v809
    %v813 = vor.u32 %v811, %v812
    %v814 = vshll.u32 2475754826, %v808
    %v815 = vshrl.u32 2131351028, %v809
    %v816 = vor.u32 %v814, %v815
    %v817 = vshll.u32 2131351028, %v808
    %v818 = vshrl.u32 2102212464, %v809
    %v819 = vor.u32 %v817, %v818
    %v820 = vshll.u32 2102212464, %v808
    %v821 = vshrl.u32 920167782, %v809
    %v822 = vor.u32 %v820, %v821
    %v823 = vshll.u32 920167782, %v808
    %v824 = vshrl.u32 1326507024, %v809
    %v825 = vor.u32 %v823, %v824
    %vm826 = vcmp.lt.s32.totalorder %v807, 1
    %vm827 = vcmp.lt.s32.totalorder %v807, 2
    %vm828 = vcmp.lt.s32.totalorder %v807, 3
    %vm829 = vcmp.lt.s32.totalorder %v807, 4
    %v830 = vsel %vm826, %v810, %v813
    %v831 = vsel %vm829, %v819, 2102212464
    %v832 = vsel %vm828, %v816, %v831
    %v833 = vsel %vm827, %v830, %v832
    %v834 = vsel %vm826, %v813, %v816
    %v835 = vsel %vm829, %v822, 920167782
    %v836 = vsel %vm828, %v819, %v835
    %v837 = vsel %vm827, %v834, %v836
    %v838 = vsel %vm826, %v816, %v819
    %v839 = vsel %vm829, %v825, 1326507024
    %v840 = vsel %vm828, %v822, %v839
    %v841 = vsel %vm827, %v838, %v840
    %v842 = vshll.u32 %v802, 8
    %v843 = vand.u32 %v842, 65535
    %v844 = vshrl.u32 %v842, 16
    %v845 = vand.u32 %v841, 65535
    %v846 = vshrl.u32 %v841, 16
    %v847 = vmul.u32 %v843, %v845
    %v848 = vmul.u32 %v843, %v846
    %v849 = vmul.u32 %v844, %v845
    %v850 = vmul.u32 %v844, %v846
    %v851 = vshll.u32 %v848, 16
    %v852 = vshrl.u32 %v848, 16
    %v853 = vshll.u32 %v849, 16
    %v854 = vshrl.u32 %v849, 16
    %vm855 = vc.u32 %v847, %v851
    %v856 = vsel %vm855, 1, 0
    %v857 = vadd.s32 %v847, %v851
    %v858 = vadd.s32 %v850, %v856
    %vm859 = vc.u32 %v857, %v853
    %v860 = vsel %vm859, 1, 0
    %v861 = vadd.s32 %v857, %v853
    %v862 = vadd.s32 %v858, %v860
    %v863 = vadd.s32 %v862, %v852
    %v864 = vadd.s32 %v863, %v854
    %v865 = vand.u32 %v842, 65535
    %v866 = vshrl.u32 %v842, 16
    %v867 = vand.u32 %v837, 65535
    %v868 = vshrl.u32 %v837, 16
    %v869 = vmul.u32 %v865, %v867
    %v870 = vmul.u32 %v865, %v868
    %v871 = vmul.u32 %v866, %v867
    %v872 = vmul.u32 %v866, %v868
    %v873 = vshll.u32 %v870, 16
    %v874 = vshrl.u32 %v870, 16
    %v875 = vshll.u32 %v871, 16
    %v876 = vshrl.u32 %v871, 16
    %vm877 = vc.u32 %v869, %v873
    %v878 = vsel %vm877, 1, 0
    %v879 = vadd.s32 %v869, %v873
    %v880 = vadd.s32 %v872, %v878
    %vm881 = vc.u32 %v879, %v875
    %v882 = vsel %vm881, 1, 0
    %v883 = vadd.s32 %v879, %v875
    %v884 = vadd.s32 %v880, %v882
    %v885 = vadd.s32 %v884, %v874
    %v886 = vadd.s32 %v885, %v876
    %v887 = vmul.u32 %v842, %v833
    %v888 = vadd.s32 %v864, %v883
    %vm889 = vc.u32 %v864, %v883
    %v890 = vadd.s32 %v886, 1
    %v891 = vsel %vm889, %v890, %v886
    %v892 = vadd.s32 %v887, %v891
    %v893 = vadd.s32 %v892, 536870912
    %v894 = vshrl.u32 %v893, 30
    %v895 = vshll.u32 %v894, 30
    %v896 = vsub.s32 %v892, %v895
    %vm897 = vcmp.lt.s32.totalorder %v896, 0
    %v898 = vsub.s32 0, %v896
    %v899 = vsel %vm897, %v898, %v896
    %v900 = vclz %v899
    %v901 = vsub.s32 %v900, 2
    %vm902 = vcmp.gt.s32.totalorder 0, %v901
    %v903 = vsel %vm902, 0, %v901
    %v904 = vsub.s32 32, %v903
    %v905 = vshll.u32 %v896, %v903
    %v906 = vshrl.u32 %v888, %v904
    %v907 = vor.u32 %v905, %v906
    %v908 = vsub.s32 4294967266, %v903
    %v909 = vadd.s32 %v908, 127
    %v910 = vshll.u32 %v909, 23
    %v911 = vor.u32 4788187, %v910
    %v912 = vand.u32 2147483647, %v911
    %v914 = vcvt.s32.f32 %v907
    %v915 = vmul.f32 %v914, %v912
    %v916 = vxor.u32 %v915, 2147483648
    %v917 = vsel %vm796, %v916, %v915
    %v918 = vsub.s32 4, %v894
    %v919 = vsel %vm796, %v918, %v894
    %v920 = vsel %vm795, %v170, %v917
    %v921 = vsel %vm795, 0, %v919
    %v922 = vmul.f32 %v920, %v920
    %v923 = vmul.f32 %v922, -0.001358992
    %v924 = vadd.f32 %v923, 0.041655596
    %v925 = vmul.f32 %v922, %v924
    %v926 = vadd.f32 %v925, -0.4999988
    %v927 = vmul.f32 %v922, %v926
    %v928 = vadd.f32 1.0, %v927
    %v929 = vmul.f32 %v920, %v920
    %v930 = vmul.f32 %v929, -0.00019511016
    %v931 = vadd.f32 %v930, 0.008332121
    %v932 = vmul.f32 %v929, %v931
    %v933 = vadd.f32 %v932, -0.16666654
    %v934 = vmul.f32 %v929, %v933
    %v935 = vadd.f32 %v934, 1.0
    %v936 = vmul.f32 %v935, %v920
    %vm937 = vweird.f32 %v170
    %v938 = vadd.s32 %v921, 3
    %v939 = vand.u32 %v938, 3
    %vm940 = vcmp.lt.s32.totalorder %v939, 2
    %vm941 = vcmp.eq.s32.totalorder %v939, 0
    %v942 = vxor.u32 %v936, 2147483648
    %v943 = vsel %vm941, %v928, %v942
    %vm944 = vcmp.eq.s32.totalorder %v939, 2
    %v945 = vxor.u32 %v928, 2147483648
    %v946 = vsel %vm944, %v945, %v936
    %v947 = vsel %vm940, %v943, %v946
    %v948 = vsel %vm937, nan, %v947
    %v949 = vand.u32 2147483647, %v171
    %vm950 = vcmp.le.f32.partialorder %v949, 0.7853982
    %vm951 = vcmp.lt.s32.totalorder %v171, 0
    %v952 = vand.u32 %v171, 2139095040
    %v953 = vshrl.u32 %v952, 23
    %v954 = vsub.s32 %v953, 127
    %v955 = vand.u32 2147483647, %v171
    %v956 = vand.u32 %v955, 8388607
    %v957 = vor.u32 %v956, 8388608
    %v958 = vsub.s32 0, %v957
    %v959 = vadd.s32 %v954, 1
    %vm960 = vcmp.gt.s32.totalorder %v959, 0
    %v961 = vsel %vm960, %v959, 0
    %v962 = vshrl.u32 %v961, 5
    %v963 = vand.u32 %v961, 31
    %v964 = vsub.s32 32, %v963
    %v965 = vshrl.u32 683565275, %v964
    %v966 = vshll.u32 683565275, %v963
    %v967 = vshrl.u32 2475754826, %v964
    %v968 = vor.u32 %v966, %v967
    %v969 = vshll.u32 2475754826, %v963
    %v970 = vshrl.u32 2131351028, %v964
    %v971 = vor.u32 %v969, %v970
    %v972 = vshll.u32 2131351028, %v963
    %v973 = vshrl.u32 2102212464, %v964
    %v974 = vor.u32 %v972, %v973
    %v975 = vshll.u32 2102212464, %v963
    %v976 = vshrl.u32 920167782, %v964
    %v977 = vor.u32 %v975, %v976
    %v978 = vshll.u32 920167782, %v963
    %v979 = vshrl.u32 1326507024, %v964
    %v980 = vor.u32 %v978, %v979
    %vm981 = vcmp.lt.s32.totalorder %v962, 1
    %vm982 = vcmp.lt.s32.totalorder %v962, 2
    %vm983 = vcmp.lt.s32.totalorder %v962, 3
    %vm984 = vcmp.lt.s32.totalorder %v962, 4
    %v985 = vsel %vm981, %v965, %v968
    %v986 = vsel %vm984, %v974, 2102212464
    %v987 = vsel %vm983, %v971, %v986
    %v988 = vsel %vm982, %v985, %v987
    %v989 = vsel %vm981, %v968, %v971
    %v990 = vsel %vm984, %v977, 920167782
    %v991 = vsel %vm983, %v974, %v990
    %v992 = vsel %vm982, %v989, %v991
    %v993 = vsel %vm981, %v971, %v974
    %v994 = vsel %vm984, %v980, 1326507024
    %v995 = vsel %vm983, %v977, %v994
    %v996 = vsel %vm982, %v993, %v995
    %v997 = vshll.u32 %v957, 8
    %v998 = vand.u32 %v997, 65535
    %v999 = vshrl.u32 %v997, 16
    %v1000 = vand.u32 %v996, 65535
    %v1001 = vshrl.u32 %v996, 16
    %v1002 = vmul.u32 %v998, %v1000
    %v1003 = vmul.u32 %v998, %v1001
    %v1004 = vmul.u32 %v999, %v1000
    %v1005 = vmul.u32 %v999, %v1001
    %v1006 = vshll.u32 %v1003, 16
    %v1007 = vshrl.u32 %v1003, 16
    %v1008 = vshll.u32 %v1004, 16
    %v1009 = vshrl.u32 %v1004, 16
    %vm1010 = vc.u32 %v1002, %v1006
    %v1011 = vsel %vm1010, 1, 0
    %v1012 = vadd.s32 %v1002, %v1006
    %v1013 = vadd.s32 %v1005, %v1011
    %vm1014 = vc.u32 %v1012, %v1008
    %v1015 = vsel %vm1014, 1, 0
    %v1016 = vadd.s32 %v1012, %v1008
    %v1017 = vadd.s32 %v1013, %v1015
    %v1018 = vadd.s32 %v1017, %v1007
    %v1019 = vadd.s32 %v1018, %v1009
    %v1020 = vand.u32 %v997, 65535
    %v1021 = vshrl.u32 %v997, 16
    %v1022 = vand.u32 %v992, 65535
    %v1023 = vshrl.u32 %v992, 16
    %v1024 = vmul.u32 %v1020, %v1022
    %v1025 = vmul.u32 %v1020, %v1023
    %v1026 = vmul.u32 %v1021, %v1022
    %v1027 = vmul.u32 %v1021, %v1023
    %v1028 = vshll.u32 %v1025, 16
    %v1029 = vshrl.u32 %v1025, 16
    %v1030 = vshll.u32 %v1026, 16
    %v1031 = vshrl.u32 %v1026, 16
    %vm1032 = vc.u32 %v1024, %v1028
    %v1033 = vsel %vm1032, 1, 0
    %v1034 = vadd.s32 %v1024, %v1028
    %v1035 = vadd.s32 %v1027, %v1033
    %vm1036 = vc.u32 %v1034, %v1030
    %v1037 = vsel %vm1036, 1, 0
    %v1038 = vadd.s32 %v1034, %v1030
    %v1039 = vadd.s32 %v1035, %v1037
    %v1040 = vadd.s32 %v1039, %v1029
    %v1041 = vadd.s32 %v1040, %v1031
    %v1042 = vmul.u32 %v997, %v988
    %v1043 = vadd.s32 %v1019, %v1038
    %vm1044 = vc.u32 %v1019, %v1038
    %v1045 = vadd.s32 %v1041, 1
    %v1046 = vsel %vm1044, %v1045, %v1041
    %v1047 = vadd.s32 %v1042, %v1046
    %v1048 = vadd.s32 %v1047, 536870912
    %v1049 = vshrl.u32 %v1048, 30
    %v1050 = vshll.u32 %v1049, 30
    %v1051 = vsub.s32 %v1047, %v1050
    %vm1052 = vcmp.lt.s32.totalorder %v1051, 0
    %v1053 = vsub.s32 0, %v1051
    %v1054 = vsel %vm1052, %v1053, %v1051
    %v1055 = vclz %v1054
    %v1056 = vsub.s32 %v1055, 2
    %vm1057 = vcmp.gt.s32.totalorder 0, %v1056
    %v1058 = vsel %vm1057, 0, %v1056
    %v1059 = vsub.s32 32, %v1058
    %v1060 = vshll.u32 %v1051, %v1058
    %v1061 = vshrl.u32 %v1043, %v1059
    %v1062 = vor.u32 %v1060, %v1061
    %v1063 = vsub.s32 4294967266, %v1058
    %v1064 = vadd.s32 %v1063, 127
    %v1065 = vshll.u32 %v1064, 23
    %v1066 = vor.u32 4788187, %v1065
    %v1067 = vand.u32 2147483647, %v1066
    %v1069 = vcvt.s32.f32 %v1062
    %v1070 = vmul.f32 %v1069, %v1067
    %v1071 = vxor.u32 %v1070, 2147483648
    %v1072 = vsel %vm951, %v1071, %v1070
    %v1073 = vsub.s32 4, %v1049
    %v1074 = vsel %vm951, %v1073, %v1049
    %v1075 = vsel %vm950, %v171, %v1072
    %v1076 = vsel %vm950, 0, %v1074
    %v1077 = vmul.f32 %v1075, %v1075
    %v1078 = vmul.f32 %v1077, -0.001358992
    %v1079 = vadd.f32 %v1078, 0.041655596
    %v1080 = vmul.f32 %v1077, %v1079
    %v1081 = vadd.f32 %v1080, -0.4999988
    %v1082 = vmul.f32 %v1077, %v1081
    %v1083 = vadd.f32 1.0, %v1082
    %v1084 = vmul.f32 %v1075, %v1075
    %v1085 = vmul.f32 %v1084, -0.00019511016
    %v1086 = vadd.f32 %v1085, 0.008332121
    %v1087 = vmul.f32 %v1084, %v1086
    %v1088 = vadd.f32 %v1087, -0.16666654
    %v1089 = vmul.f32 %v1084, %v1088
    %v1090 = vadd.f32 %v1089, 1.0
    %v1091 = vmul.f32 %v1090, %v1075
    %vm1092 = vweird.f32 %v171
    %v1093 = vadd.s32 %v1076, 3
    %v1094 = vand.u32 %v1093, 3
    %vm1095 = vcmp.lt.s32.totalorder %v1094, 2
    %vm1096 = vcmp.eq.s32.totalorder %v1094, 0
    %v1097 = vxor.u32 %v1091, 2147483648
    %v1098 = vsel %vm1096, %v1083, %v1097
    %vm1099 = vcmp.eq.s32.totalorder %v1094, 2
    %v1100 = vxor.u32 %v1083, 2147483648
    %v1101 = vsel %vm1099, %v1100, %v1091
    %v1102 = vsel %vm1095, %v1098, %v1101
    %v1103 = vsel %vm1092, nan, %v1102
    %v1104 = vand.u32 2147483647, %v172
    %vm1105 = vcmp.le.f32.partialorder %v1104, 0.7853982
    %vm1106 = vcmp.lt.s32.totalorder %v172, 0
    %v1107 = vand.u32 %v172, 2139095040
    %v1108 = vshrl.u32 %v1107, 23
    %v1109 = vsub.s32 %v1108, 127
    %v1110 = vand.u32 2147483647, %v172
    %v1111 = vand.u32 %v1110, 8388607
    %v1112 = vor.u32 %v1111, 8388608
    %v1113 = vsub.s32 0, %v1112
    %v1114 = vadd.s32 %v1109, 1
    %vm1115 = vcmp.gt.s32.totalorder %v1114, 0
    %v1116 = vsel %vm1115, %v1114, 0
    %v1117 = vshrl.u32 %v1116, 5
    %v1118 = vand.u32 %v1116, 31
    %v1119 = vsub.s32 32, %v1118
    %v1120 = vshrl.u32 683565275, %v1119
    %v1121 = vshll.u32 683565275, %v1118
    %v1122 = vshrl.u32 2475754826, %v1119
    %v1123 = vor.u32 %v1121, %v1122
    %v1124 = vshll.u32 2475754826, %v1118
    %v1125 = vshrl.u32 2131351028, %v1119
    %v1126 = vor.u32 %v1124, %v1125
    %v1127 = vshll.u32 2131351028, %v1118
    %v1128 = vshrl.u32 2102212464, %v1119
    %v1129 = vor.u32 %v1127, %v1128
    %v1130 = vshll.u32 2102212464, %v1118
    %v1131 = vshrl.u32 920167782, %v1119
    %v1132 = vor.u32 %v1130, %v1131
    %v1133 = vshll.u32 920167782, %v1118
    %v1134 = vshrl.u32 1326507024, %v1119
    %v1135 = vor.u32 %v1133, %v1134
    %vm1136 = vcmp.lt.s32.totalorder %v1117, 1
    %vm1137 = vcmp.lt.s32.totalorder %v1117, 2
    %vm1138 = vcmp.lt.s32.totalorder %v1117, 3
    %vm1139 = vcmp.lt.s32.totalorder %v1117, 4
    %v1140 = vsel %vm1136, %v1120, %v1123
    %v1141 = vsel %vm1139, %v1129, 2102212464
    %v1142 = vsel %vm1138, %v1126, %v1141
    %v1143 = vsel %vm1137, %v1140, %v1142
    %v1144 = vsel %vm1136, %v1123, %v1126
    %v1145 = vsel %vm1139, %v1132, 920167782
    %v1146 = vsel %vm1138, %v1129, %v1145
    %v1147 = vsel %vm1137, %v1144, %v1146
    %v1148 = vsel %vm1136, %v1126, %v1129
    %v1149 = vsel %vm1139, %v1135, 1326507024
    %v1150 = vsel %vm1138, %v1132, %v1149
    %v1151 = vsel %vm1137, %v1148, %v1150
    %v1152 = vshll.u32 %v1112, 8
    %v1153 = vand.u32 %v1152, 65535
    %v1154 = vshrl.u32 %v1152, 16
    %v1155 = vand.u32 %v1151, 65535
    %v1156 = vshrl.u32 %v1151, 16
    %v1157 = vmul.u32 %v1153, %v1155
    %v1158 = vmul.u32 %v1153, %v1156
    %v1159 = vmul.u32 %v1154, %v1155
    %v1160 = vmul.u32 %v1154, %v1156
    %v1161 = vshll.u32 %v1158, 16
    %v1162 = vshrl.u32 %v1158, 16
    %v1163 = vshll.u32 %v1159, 16
    %v1164 = vshrl.u32 %v1159, 16
    %vm1165 = vc.u32 %v1157, %v1161
    %v1166 = vsel %vm1165, 1, 0
    %v1167 = vadd.s32 %v1157, %v1161
    %v1168 = vadd.s32 %v1160, %v1166
    %vm1169 = vc.u32 %v1167, %v1163
    %v1170 = vsel %vm1169, 1, 0
    %v1171 = vadd.s32 %v1167, %v1163
    %v1172 = vadd.s32 %v1168, %v1170
    %v1173 = vadd.s32 %v1172, %v1162
    %v1174 = vadd.s32 %v1173, %v1164
    %v1175 = vand.u32 %v1152, 65535
    %v1176 = vshrl.u32 %v1152, 16
    %v1177 = vand.u32 %v1147, 65535
    %v1178 = vshrl.u32 %v1147, 16
    %v1179 = vmul.u32 %v1175, %v1177
    %v1180 = vmul.u32 %v1175, %v1178
    %v1181 = vmul.u32 %v1176, %v1177
    %v1182 = vmul.u32 %v1176, %v1178
    %v1183 = vshll.u32 %v1180, 16
    %v1184 = vshrl.u32 %v1180, 16
    %v1185 = vshll.u32 %v1181, 16
    %v1186 = vshrl.u32 %v1181, 16
    %vm1187 = vc.u32 %v1179, %v1183
    %v1188 = vsel %vm1187, 1, 0
    %v1189 = vadd.s32 %v1179, %v1183
    %v1190 = vadd.s32 %v1182, %v1188
    %vm1191 = vc.u32 %v1189, %v1185
    %v1192 = vsel %vm1191, 1, 0
    %v1193 = vadd.s32 %v1189, %v1185
    %v1194 = vadd.s32 %v1190, %v1192
    %v1195 = vadd.s32 %v1194, %v1184
    %v1196 = vadd.s32 %v1195, %v1186
    %v1197 = vmul.u32 %v1152, %v1143
    %v1198 = vadd.s32 %v1174, %v1193
    %vm1199 = vc.u32 %v1174, %v1193
    %v1200 = vadd.s32 %v1196, 1
    %v1201 = vsel %vm1199, %v1200, %v1196
    %v1202 = vadd.s32 %v1197, %v1201
    %v1203 = vadd.s32 %v1202, 536870912
    %v1204 = vshrl.u32 %v1203, 30
    %v1205 = vshll.u32 %v1204, 30
    %v1206 = vsub.s32 %v1202, %v1205
    %vm1207 = vcmp.lt.s32.totalorder %v1206, 0
    %v1208 = vsub.s32 0, %v1206
    %v1209 = vsel %vm1207, %v1208, %v1206
    %v1210 = vclz %v1209
    %v1211 = vsub.s32 %v1210, 2
    %vm1212 = vcmp.gt.s32.totalorder 0, %v1211
    %v1213 = vsel %vm1212, 0, %v1211
    %v1214 = vsub.s32 32, %v1213
    %v1215 = vshll.u32 %v1206, %v1213
    %v1216 = vshrl.u32 %v1198, %v1214
    %v1217 = vor.u32 %v1215, %v1216
    %v1218 = vsub.s32 4294967266, %v1213
    %v1219 = vadd.s32 %v1218, 127
    %v1220 = vshll.u32 %v1219, 23
    %v1221 = vor.u32 4788187, %v1220
    %v1222 = vand.u32 2147483647, %v1221
    %v1224 = vcvt.s32.f32 %v1217
    %v1225 = vmul.f32 %v1224, %v1222
    %v1226 = vxor.u32 %v1225, 2147483648
    %v1227 = vsel %vm1106, %v1226, %v1225
    %v1228 = vsub.s32 4, %v1204
    %v1229 = vsel %vm1106, %v1228, %v1204
    %v1230 = vsel %vm1105, %v172, %v1227
    %v1231 = vsel %vm1105, 0, %v1229
    %v1232 = vmul.f32 %v1230, %v1230
    %v1233 = vmul.f32 %v1232, -0.001358992
    %v1234 = vadd.f32 %v1233, 0.041655596
    %v1235 = vmul.f32 %v1232, %v1234
    %v1236 = vadd.f32 %v1235, -0.4999988
    %v1237 = vmul.f32 %v1232, %v1236
    %v1238 = vadd.f32 1.0, %v1237
    %v1239 = vmul.f32 %v1230, %v1230
    %v1240 = vmul.f32 %v1239, -0.00019511016
    %v1241 = vadd.f32 %v1240, 0.008332121
    %v1242 = vmul.f32 %v1239, %v1241
    %v1243 = vadd.f32 %v1242, -0.16666654
    %v1244 = vmul.f32 %v1239, %v1243
    %v1245 = vadd.f32 %v1244, 1.0
    %v1246 = vmul.f32 %v1245, %v1230
    %vm1247 = vweird.f32 %v172
    %v1248 = vadd.s32 %v1231, 3
    %v1249 = vand.u32 %v1248, 3
    %vm1250 = vcmp.lt.s32.totalorder %v1249, 2
    %vm1251 = vcmp.eq.s32.totalorder %v1249, 0
    %v1252 = vxor.u32 %v1246, 2147483648
    %v1253 = vsel %vm1251, %v1238, %v1252
    %vm1254 = vcmp.eq.s32.totalorder %v1249, 2
    %v1255 = vxor.u32 %v1238, 2147483648
    %v1256 = vsel %vm1254, %v1255, %v1246
    %v1257 = vsel %vm1250, %v1253, %v1256
    %v1258 = vsel %vm1247, nan, %v1257
    %v1259 = vand.u32 2147483647, %v173
    %vm1260 = vcmp.le.f32.partialorder %v1259, 0.7853982
    %vm1261 = vcmp.lt.s32.totalorder %v173, 0
    %v1262 = vand.u32 %v173, 2139095040
    %v1263 = vshrl.u32 %v1262, 23
    %v1264 = vsub.s32 %v1263, 127
    %v1265 = vand.u32 2147483647, %v173
    %v1266 = vand.u32 %v1265, 8388607
    %v1267 = vor.u32 %v1266, 8388608
    %v1268 = vsub.s32 0, %v1267
    %v1269 = vadd.s32 %v1264, 1
    %vm1270 = vcmp.gt.s32.totalorder %v1269, 0
    %v1271 = vsel %vm1270, %v1269, 0
    %v1272 = vshrl.u32 %v1271, 5
    %v1273 = vand.u32 %v1271, 31
    %v1274 = vsub.s32 32, %v1273
    %v1275 = vshrl.u32 683565275, %v1274
    %v1276 = vshll.u32 683565275, %v1273
    %v1277 = vshrl.u32 2475754826, %v1274
    %v1278 = vor.u32 %v1276, %v1277
    %v1279 = vshll.u32 2475754826, %v1273
    %v1280 = vshrl.u32 2131351028, %v1274
    %v1281 = vor.u32 %v1279, %v1280
    %v1282 = vshll.u32 2131351028, %v1273
    %v1283 = vshrl.u32 2102212464, %v1274
    %v1284 = vor.u32 %v1282, %v1283
    %v1285 = vshll.u32 2102212464, %v1273
    %v1286 = vshrl.u32 920167782, %v1274
    %v1287 = vor.u32 %v1285, %v1286
    %v1288 = vshll.u32 920167782, %v1273
    %v1289 = vshrl.u32 1326507024, %v1274
    %v1290 = vor.u32 %v1288, %v1289
    %vm1291 = vcmp.lt.s32.totalorder %v1272, 1
    %vm1292 = vcmp.lt.s32.totalorder %v1272, 2
    %vm1293 = vcmp.lt.s32.totalorder %v1272, 3
    %vm1294 = vcmp.lt.s32.totalorder %v1272, 4
    %v1295 = vsel %vm1291, %v1275, %v1278
    %v1296 = vsel %vm1294, %v1284, 2102212464
    %v1297 = vsel %vm1293, %v1281, %v1296
    %v1298 = vsel %vm1292, %v1295, %v1297
    %v1299 = vsel %vm1291, %v1278, %v1281
    %v1300 = vsel %vm1294, %v1287, 920167782
    %v1301 = vsel %vm1293, %v1284, %v1300
    %v1302 = vsel %vm1292, %v1299, %v1301
    %v1303 = vsel %vm1291, %v1281, %v1284
    %v1304 = vsel %vm1294, %v1290, 1326507024
    %v1305 = vsel %vm1293, %v1287, %v1304
    %v1306 = vsel %vm1292, %v1303, %v1305
    %v1307 = vshll.u32 %v1267, 8
    %v1308 = vand.u32 %v1307, 65535
    %v1309 = vshrl.u32 %v1307, 16
    %v1310 = vand.u32 %v1306, 65535
    %v1311 = vshrl.u32 %v1306, 16
    %v1312 = vmul.u32 %v1308, %v1310
    %v1313 = vmul.u32 %v1308, %v1311
    %v1314 = vmul.u32 %v1309, %v1310
    %v1315 = vmul.u32 %v1309, %v1311
    %v1316 = vshll.u32 %v1313, 16
    %v1317 = vshrl.u32 %v1313, 16
    %v1318 = vshll.u32 %v1314, 16
    %v1319 = vshrl.u32 %v1314, 16
    %vm1320 = vc.u32 %v1312, %v1316
    %v1321 = vsel %vm1320, 1, 0
    %v1322 = vadd.s32 %v1312, %v1316
    %v1323 = vadd.s32 %v1315, %v1321
    %vm1324 = vc.u32 %v1322, %v1318
    %v1325 = vsel %vm1324, 1, 0
    %v1326 = vadd.s32 %v1322, %v1318
    %v1327 = vadd.s32 %v1323, %v1325
    %v1328 = vadd.s32 %v1327, %v1317
    %v1329 = vadd.s32 %v1328, %v1319
    %v1330 = vand.u32 %v1307, 65535
    %v1331 = vshrl.u32 %v1307, 16
    %v1332 = vand.u32 %v1302, 65535
    %v1333 = vshrl.u32 %v1302, 16
    %v1334 = vmul.u32 %v1330, %v1332
    %v1335 = vmul.u32 %v1330, %v1333
    %v1336 = vmul.u32 %v1331, %v1332
    %v1337 = vmul.u32 %v1331, %v1333
    %v1338 = vshll.u32 %v1335, 16
    %v1339 = vshrl.u32 %v1335, 16
    %v1340 = vshll.u32 %v1336, 16
    %v1341 = vshrl.u32 %v1336, 16
    %vm1342 = vc.u32 %v1334, %v1338
    %v1343 = vsel %vm1342, 1, 0
    %v1344 = vadd.s32 %v1334, %v1338
    %v1345 = vadd.s32 %v1337, %v1343
    %vm1346 = vc.u32 %v1344, %v1340
    %v1347 = vsel %vm1346, 1, 0
    %v1348 = vadd.s32 %v1344, %v1340
    %v1349 = vadd.s32 %v1345, %v1347
    %v1350 = vadd.s32 %v1349, %v1339
    %v1351 = vadd.s32 %v1350, %v1341
    %v1352 = vmul.u32 %v1307, %v1298
    %v1353 = vadd.s32 %v1329, %v1348
    %vm1354 = vc.u32 %v1329, %v1348
    %v1355 = vadd.s32 %v1351, 1
    %v1356 = vsel %vm1354, %v1355, %v1351
    %v1357 = vadd.s32 %v1352, %v1356
    %v1358 = vadd.s32 %v1357, 536870912
    %v1359 = vshrl.u32 %v1358, 30
    %v1360 = vshll.u32 %v1359, 30
    %v1361 = vsub.s32 %v1357, %v1360
    %vm1362 = vcmp.lt.s32.totalorder %v1361, 0
    %v1363 = vsub.s32 0, %v1361
    %v1364 = vsel %vm1362, %v1363, %v1361
    %v1365 = vclz %v1364
    %v1366 = vsub.s32 %v1365, 2
    %vm1367 = vcmp.gt.s32.totalorder 0, %v1366
    %v1368 = vsel %vm1367, 0, %v1366
    %v1369 = vsub.s32 32, %v1368
    %v1370 = vshll.u32 %v1361, %v1368
    %v1371 = vshrl.u32 %v1353, %v1369
    %v1372 = vor.u32 %v1370, %v1371
    %v1373 = vsub.s32 4294967266, %v1368
    %v1374 = vadd.s32 %v1373, 127
    %v1375 = vshll.u32 %v1374, 23
    %v1376 = vor.u32 4788187, %v1375
    %v1377 = vand.u32 2147483647, %v1376
    %v1379 = vcvt.s32.f32 %v1372
    %v1380 = vmul.f32 %v1379, %v1377
    %v1381 = vxor.u32 %v1380, 2147483648
    %v1382 = vsel %vm1261, %v1381, %v1380
    %v1383 = vsub.s32 4, %v1359
    %v1384 = vsel %vm1261, %v1383, %v1359
    %v1385 = vsel %vm1260, %v173, %v1382
    %v1386 = vsel %vm1260, 0, %v1384
    %v1387 = vmul.f32 %v1385, %v1385
    %v1388 = vmul.f32 %v1387, -0.001358992
    %v1389 = vadd.f32 %v1388, 0.041655596
    %v1390 = vmul.f32 %v1387, %v1389
    %v1391 = vadd.f32 %v1390, -0.4999988
    %v1392 = vmul.f32 %v1387, %v1391
    %v1393 = vadd.f32 1.0, %v1392
    %v1394 = vmul.f32 %v1385, %v1385
    %v1395 = vmul.f32 %v1394, -0.00019511016
    %v1396 = vadd.f32 %v1395, 0.008332121
    %v1397 = vmul.f32 %v1394, %v1396
    %v1398 = vadd.f32 %v1397, -0.16666654
    %v1399 = vmul.f32 %v1394, %v1398
    %v1400 = vadd.f32 %v1399, 1.0
    %v1401 = vmul.f32 %v1400, %v1385
    %vm1402 = vweird.f32 %v173
    %v1403 = vadd.s32 %v1386, 3
    %v1404 = vand.u32 %v1403, 3
    %vm1405 = vcmp.lt.s32.totalorder %v1404, 2
    %vm1406 = vcmp.eq.s32.totalorder %v1404, 0
    %v1407 = vxor.u32 %v1401, 2147483648
    %v1408 = vsel %vm1406, %v1393, %v1407
    %vm1409 = vcmp.eq.s32.totalorder %v1404, 2
    %v1410 = vxor.u32 %v1393, 2147483648
    %v1411 = vsel %vm1409, %v1410, %v1401
    %v1412 = vsel %vm1405, %v1408, %v1411
    %v1413 = vsel %vm1402, nan, %v1412
    %v1414 = vand.u32 2147483647, %v166
    %vm1415 = vcmp.le.f32.partialorder %v1414, 0.7853982
    %vm1416 = vcmp.lt.s32.totalorder %v166, 0
    %v1417 = vand.u32 %v166, 2139095040
    %v1418 = vshrl.u32 %v1417, 23
    %v1419 = vsub.s32 %v1418, 127
    %v1420 = vand.u32 2147483647, %v166
    %v1421 = vand.u32 %v1420, 8388607
    %v1422 = vor.u32 %v1421, 8388608
    %v1423 = vsub.s32 0, %v1422
    %v1424 = vadd.s32 %v1419, 1
    %vm1425 = vcmp.gt.s32.totalorder %v1424, 0
    %v1426 = vsel %vm1425, %v1424, 0
    %v1427 = vshrl.u32 %v1426, 5
    %v1428 = vand.u32 %v1426, 31
    %v1429 = vsub.s32 32, %v1428
    %v1430 = vshrl.u32 683565275, %v1429
    %v1431 = vshll.u32 683565275, %v1428
    %v1432 = vshrl.u32 2475754826, %v1429
    %v1433 = vor.u32 %v1431, %v1432
    %v1434 = vshll.u32 2475754826, %v1428
    %v1435 = vshrl.u32 2131351028, %v1429
    %v1436 = vor.u32 %v1434, %v1435
    %v1437 = vshll.u32 2131351028, %v1428
    %v1438 = vshrl.u32 2102212464, %v1429
    %v1439 = vor.u32 %v1437, %v1438
    %v1440 = vshll.u32 2102212464, %v1428
    %v1441 = vshrl.u32 920167782, %v1429
    %v1442 = vor.u32 %v1440, %v1441
    %v1443 = vshll.u32 920167782, %v1428
    %v1444 = vshrl.u32 1326507024, %v1429
    %v1445 = vor.u32 %v1443, %v1444
    %vm1446 = vcmp.lt.s32.totalorder %v1427, 1
    %vm1447 = vcmp.lt.s32.totalorder %v1427, 2
    %vm1448 = vcmp.lt.s32.totalorder %v1427, 3
    %vm1449 = vcmp.lt.s32.totalorder %v1427, 4
    %v1450 = vsel %vm1446, %v1430, %v1433
    %v1451 = vsel %vm1449, %v1439, 2102212464
    %v1452 = vsel %vm1448, %v1436, %v1451
    %v1453 = vsel %vm1447, %v1450, %v1452
    %v1454 = vsel %vm1446, %v1433, %v1436
    %v1455 = vsel %vm1449, %v1442, 920167782
    %v1456 = vsel %vm1448, %v1439, %v1455
    %v1457 = vsel %vm1447, %v1454, %v1456
    %v1458 = vsel %vm1446, %v1436, %v1439
    %v1459 = vsel %vm1449, %v1445, 1326507024
    %v1460 = vsel %vm1448, %v1442, %v1459
    %v1461 = vsel %vm1447, %v1458, %v1460
    %v1462 = vshll.u32 %v1422, 8
    %v1463 = vand.u32 %v1462, 65535
    %v1464 = vshrl.u32 %v1462, 16
    %v1465 = vand.u32 %v1461, 65535
    %v1466 = vshrl.u32 %v1461, 16
    %v1467 = vmul.u32 %v1463, %v1465
    %v1468 = vmul.u32 %v1463, %v1466
    %v1469 = vmul.u32 %v1464, %v1465
    %v1470 = vmul.u32 %v1464, %v1466
    %v1471 = vshll.u32 %v1468, 16
    %v1472 = vshrl.u32 %v1468, 16
    %v1473 = vshll.u32 %v1469, 16
    %v1474 = vshrl.u32 %v1469, 16
    %vm1475 = vc.u32 %v1467, %v1471
    %v1476 = vsel %vm1475, 1, 0
    %v1477 = vadd.s32 %v1467, %v1471
    %v1478 = vadd.s32 %v1470, %v1476
    %vm1479 = vc.u32 %v1477, %v1473
    %v1480 = vsel %vm1479, 1, 0
    %v1481 = vadd.s32 %v1477, %v1473
    %v1482 = vadd.s32 %v1478, %v1480
    %v1483 = vadd.s32 %v1482, %v1472
    %v1484 = vadd.s32 %v1483, %v1474
    %v1485 = vand.u32 %v1462, 65535
    %v1486 = vshrl.u32 %v1462, 16
    %v1487 = vand.u32 %v1457, 65535
    %v1488 = vshrl.u32 %v1457, 16
    %v1489 = vmul.u32 %v1485, %v1487
    %v1490 = vmul.u32 %v1485, %v1488
    %v1491 = vmul.u32 %v1486, %v1487
    %v1492 = vmul.u32 %v1486, %v1488
    %v1493 = vshll.u32 %v1490, 16
    %v1494 = vshrl.u32 %v1490, 16
    %v1495 = vshll.u32 %v1491, 16
    %v1496 = vshrl.u32 %v1491, 16
    %vm1497 = vc.u32 %v1489, %v1493
    %v1498 = vsel %vm1497, 1, 0
    %v1499 = vadd.s32 %v1489, %v1493
    %v1500 = vadd.s32 %v1492, %v1498
    %vm1501 = vc.u32 %v1499, %v1495
    %v1502 = vsel %vm1501, 1, 0
    %v1503 = vadd.s32 %v1499, %v1495
    %v1504 = vadd.s32 %v1500, %v1502
    %v1505 = vadd.s32 %v1504, %v1494
    %v1506 = vadd.s32 %v1505, %v1496
    %v1507 = vmul.u32 %v1462, %v1453
    %v1508 = vadd.s32 %v1484, %v1503
    %vm1509 = vc.u32 %v1484, %v1503
    %v1510 = vadd.s32 %v1506, 1
    %v1511 = vsel %vm1509, %v1510, %v1506
    %v1512 = vadd.s32 %v1507, %v1511
    %v1513 = vadd.s32 %v1512, 536870912
    %v1514 = vshrl.u32 %v1513, 30
    %v1515 = vshll.u32 %v1514, 30
    %v1516 = vsub.s32 %v1512, %v1515
    %vm1517 = vcmp.lt.s32.totalorder %v1516, 0
    %v1518 = vsub.s32 0, %v1516
    %v1519 = vsel %vm1517, %v1518, %v1516
    %v1520 = vclz %v1519
    %v1521 = vsub.s32 %v1520, 2
    %vm1522 = vcmp.gt.s32.totalorder 0, %v1521
    %v1523 = vsel %vm1522, 0, %v1521
    %v1524 = vsub.s32 32, %v1523
    %v1525 = vshll.u32 %v1516, %v1523
    %v1526 = vshrl.u32 %v1508, %v1524
    %v1527 = vor.u32 %v1525, %v1526
    %v1528 = vsub.s32 4294967266, %v1523
    %v1529 = vadd.s32 %v1528, 127
    %v1530 = vshll.u32 %v1529, 23
    %v1531 = vor.u32 4788187, %v1530
    %v1532 = vand.u32 2147483647, %v1531
    %v1534 = vcvt.s32.f32 %v1527
    %v1535 = vmul.f32 %v1534, %v1532
    %v1536 = vxor.u32 %v1535, 2147483648
    %v1537 = vsel %vm1416, %v1536, %v1535
    %v1538 = vsub.s32 4, %v1514
    %v1539 = vsel %vm1416, %v1538, %v1514
    %v1540 = vsel %vm1415, %v166, %v1537
    %v1541 = vsel %vm1415, 0, %v1539
    %v1542 = vmul.f32 %v1540, %v1540
    %v1543 = vmul.f32 %v1542, -0.001358992
    %v1544 = vadd.f32 %v1543, 0.041655596
    %v1545 = vmul.f32 %v1542, %v1544
    %v1546 = vadd.f32 %v1545, -0.4999988
    %v1547 = vmul.f32 %v1542, %v1546
    %v1548 = vadd.f32 1.0, %v1547
    %v1549 = vmul.f32 %v1540, %v1540
    %v1550 = vmul.f32 %v1549, -0.00019511016
    %v1551 = vadd.f32 %v1550, 0.008332121
    %v1552 = vmul.f32 %v1549, %v1551
    %v1553 = vadd.f32 %v1552, -0.16666654
    %v1554 = vmul.f32 %v1549, %v1553
    %v1555 = vadd.f32 %v1554, 1.0
    %v1556 = vmul.f32 %v1555, %v1540
    %vm1557 = vweird.f32 %v166
    %v1558 = vand.u32 %v1541, 3
    %vm1559 = vcmp.lt.s32.totalorder %v1558, 2
    %vm1560 = vcmp.eq.s32.totalorder %v1558, 0
    %v1561 = vxor.u32 %v1556, 2147483648
    %v1562 = vsel %vm1560, %v1548, %v1561
    %vm1563 = vcmp.eq.s32.totalorder %v1558, 2
    %v1564 = vxor.u32 %v1548, 2147483648
    %v1565 = vsel %vm1563, %v1564, %v1556
    %v1566 = vsel %vm1559, %v1562, %v1565
    %v1567 = vsel %vm1557, nan, %v1566
    %v1568 = vand.u32 2147483647, %v167
    %vm1569 = vcmp.le.f32.partialorder %v1568, 0.7853982
    %vm1570 = vcmp.lt.s32.totalorder %v167, 0
    %v1571 = vand.u32 %v167, 2139095040
    %v1572 = vshrl.u32 %v1571, 23
    %v1573 = vsub.s32 %v1572, 127
    %v1574 = vand.u32 2147483647, %v167
    %v1575 = vand.u32 %v1574, 8388607
    %v1576 = vor.u32 %v1575, 8388608
    %v1577 = vsub.s32 0, %v1576
    %v1578 = vadd.s32 %v1573, 1
    %vm1579 = vcmp.gt.s32.totalorder %v1578, 0
    %v1580 = vsel %vm1579, %v1578, 0
    %v1581 = vshrl.u32 %v1580, 5
    %v1582 = vand.u32 %v1580, 31
    %v1583 = vsub.s32 32, %v1582
    %v1584 = vshrl.u32 683565275, %v1583
    %v1585 = vshll.u32 683565275, %v1582
    %v1586 = vshrl.u32 2475754826, %v1583
    %v1587 = vor.u32 %v1585, %v1586
    %v1588 = vshll.u32 2475754826, %v1582
    %v1589 = vshrl.u32 2131351028, %v1583
    %v1590 = vor.u32 %v1588, %v1589
    %v1591 = vshll.u32 2131351028, %v1582
    %v1592 = vshrl.u32 2102212464, %v1583
    %v1593 = vor.u32 %v1591, %v1592
    %v1594 = vshll.u32 2102212464, %v1582
    %v1595 = vshrl.u32 920167782, %v1583
    %v1596 = vor.u32 %v1594, %v1595
    %v1597 = vshll.u32 920167782, %v1582
    %v1598 = vshrl.u32 1326507024, %v1583
    %v1599 = vor.u32 %v1597, %v1598
    %vm1600 = vcmp.lt.s32.totalorder %v1581, 1
    %vm1601 = vcmp.lt.s32.totalorder %v1581, 2
    %vm1602 = vcmp.lt.s32.totalorder %v1581, 3
    %vm1603 = vcmp.lt.s32.totalorder %v1581, 4
    %v1604 = vsel %vm1600, %v1584, %v1587
    %v1605 = vsel %vm1603, %v1593, 2102212464
    %v1606 = vsel %vm1602, %v1590, %v1605
    %v1607 = vsel %vm1601, %v1604, %v1606
    %v1608 = vsel %vm1600, %v1587, %v1590
    %v1609 = vsel %vm1603, %v1596, 920167782
    %v1610 = vsel %vm1602, %v1593, %v1609
    %v1611 = vsel %vm1601, %v1608, %v1610
    %v1612 = vsel %vm1600, %v1590, %v1593
    %v1613 = vsel %vm1603, %v1599, 1326507024
    %v1614 = vsel %vm1602, %v1596, %v1613
    %v1615 = vsel %vm1601, %v1612, %v1614
    %v1616 = vshll.u32 %v1576, 8
    %v1617 = vand.u32 %v1616, 65535
    %v1618 = vshrl.u32 %v1616, 16
    %v1619 = vand.u32 %v1615, 65535
    %v1620 = vshrl.u32 %v1615, 16
    %v1621 = vmul.u32 %v1617, %v1619
    %v1622 = vmul.u32 %v1617, %v1620
    %v1623 = vmul.u32 %v1618, %v1619
    %v1624 = vmul.u32 %v1618, %v1620
    %v1625 = vshll.u32 %v1622, 16
    %v1626 = vshrl.u32 %v1622, 16
    %v1627 = vshll.u32 %v1623, 16
    %v1628 = vshrl.u32 %v1623, 16
    %vm1629 = vc.u32 %v1621, %v1625
    %v1630 = vsel %vm1629, 1, 0
    %v1631 = vadd.s32 %v1621, %v1625
    %v1632 = vadd.s32 %v1624, %v1630
    %vm1633 = vc.u32 %v1631, %v1627
    %v1634 = vsel %vm1633, 1, 0
    %v1635 = vadd.s32 %v1631, %v1627
    %v1636 = vadd.s32 %v1632, %v1634
    %v1637 = vadd.s32 %v1636, %v1626
    %v1638 = vadd.s32 %v1637, %v1628
    %v1639 = vand.u32 %v1616, 65535
    %v1640 = vshrl.u32 %v1616, 16
    %v1641 = vand.u32 %v1611, 65535
    %v1642 = vshrl.u32 %v1611, 16
    %v1643 = vmul.u32 %v1639, %v1641
    %v1644 = vmul.u32 %v1639, %v1642
    %v1645 = vmul.u32 %v1640, %v1641
    %v1646 = vmul.u32 %v1640, %v1642
    %v1647 = vshll.u32 %v1644, 16
    %v1648 = vshrl.u32 %v1644, 16
    %v1649 = vshll.u32 %v1645, 16
    %v1650 = vshrl.u32 %v1645, 16
    %vm1651 = vc.u32 %v1643, %v1647
    %v1652 = vsel %vm1651, 1, 0
    %v1653 = vadd.s32 %v1643, %v1647
    %v1654 = vadd.s32 %v1646, %v1652
    %vm1655 = vc.u32 %v1653, %v1649
    %v1656 = vsel %vm1655, 1, 0
    %v1657 = vadd.s32 %v1653, %v1649
    %v1658 = vadd.s32 %v1654, %v1656
    %v1659 = vadd.s32 %v1658, %v1648
    %v1660 = vadd.s32 %v1659, %v1650
    %v1661 = vmul.u32 %v1616, %v1607
    %v1662 = vadd.s32 %v1638, %v1657
    %vm1663 = vc.u32 %v1638, %v1657
    %v1664 = vadd.s32 %v1660, 1
    %v1665 = vsel %vm1663, %v1664, %v1660
    %v1666 = vadd.s32 %v1661, %v1665
    %v1667 = vadd.s32 %v1666, 536870912
    %v1668 = vshrl.u32 %v1667, 30
    %v1669 = vshll.u32 %v1668, 30
    %v1670 = vsub.s32 %v1666, %v1669
    %vm1671 = vcmp.lt.s32.totalorder %v1670, 0
    %v1672 = vsub.s32 0, %v1670
    %v1673 = vsel %vm1671, %v1672, %v1670
    %v1674 = vclz %v1673
    %v1675 = vsub.s32 %v1674, 2
    %vm1676 = vcmp.gt.s32.totalorder 0, %v1675
    %v1677 = vsel %vm1676, 0, %v1675
    %v1678 = vsub.s32 32, %v1677
    %v1679 = vshll.u32 %v1670, %v1677
    %v1680 = vshrl.u32 %v1662, %v1678
    %v1681 = vor.u32 %v1679, %v1680
    %v1682 = vsub.s32 4294967266, %v1677
    %v1683 = vadd.s32 %v1682, 127
    %v1684 = vshll.u32 %v1683, 23
    %v1685 = vor.u32 4788187, %v1684
    %v1686 = vand.u32 2147483647, %v1685
    %v1688 = vcvt.s32.f32 %v1681
    %v1689 = vmul.f32 %v1688, %v1686
    %v1690 = vxor.u32 %v1689, 2147483648
    %v1691 = vsel %vm1570, %v1690, %v1689
    %v1692 = vsub.s32 4, %v1668
    %v1693 = vsel %vm1570, %v1692, %v1668
    %v1694 = vsel %vm1569, %v167, %v1691
    %v1695 = vsel %vm1569, 0, %v1693
    %v1696 = vmul.f32 %v1694, %v1694
    %v1697 = vmul.f32 %v1696, -0.001358992
    %v1698 = vadd.f32 %v1697, 0.041655596
    %v1699 = vmul.f32 %v1696, %v1698
    %v1700 = vadd.f32 %v1699, -0.4999988
    %v1701 = vmul.f32 %v1696, %v1700
    %v1702 = vadd.f32 1.0, %v1701
    %v1703 = vmul.f32 %v1694, %v1694
    %v1704 = vmul.f32 %v1703, -0.00019511016
    %v1705 = vadd.f32 %v1704, 0.008332121
    %v1706 = vmul.f32 %v1703, %v1705
    %v1707 = vadd.f32 %v1706, -0.16666654
    %v1708 = vmul.f32 %v1703, %v1707
    %v1709 = vadd.f32 %v1708, 1.0
    %v1710 = vmul.f32 %v1709, %v1694
    %vm1711 = vweird.f32 %v167
    %v1712 = vand.u32 %v1695, 3
    %vm1713 = vcmp.lt.s32.totalorder %v1712, 2
    %vm1714 = vcmp.eq.s32.totalorder %v1712, 0
    %v1715 = vxor.u32 %v1710, 2147483648
    %v1716 = vsel %vm1714, %v1702, %v1715
    %vm1717 = vcmp.eq.s32.totalorder %v1712, 2
    %v1718 = vxor.u32 %v1702, 2147483648
    %v1719 = vsel %vm1717, %v1718, %v1710
    %v1720 = vsel %vm1713, %v1716, %v1719
    %v1721 = vsel %vm1711, nan, %v1720
    %v1722 = vand.u32 2147483647, %v168
    %vm1723 = vcmp.le.f32.partialorder %v1722, 0.7853982
    %vm1724 = vcmp.lt.s32.totalorder %v168, 0
    %v1725 = vand.u32 %v168, 2139095040
    %v1726 = vshrl.u32 %v1725, 23
    %v1727 = vsub.s32 %v1726, 127
    %v1728 = vand.u32 2147483647, %v168
    %v1729 = vand.u32 %v1728, 8388607
    %v1730 = vor.u32 %v1729, 8388608
    %v1731 = vsub.s32 0, %v1730
    %v1732 = vadd.s32 %v1727, 1
    %vm1733 = vcmp.gt.s32.totalorder %v1732, 0
    %v1734 = vsel %vm1733, %v1732, 0
    %v1735 = vshrl.u32 %v1734, 5
    %v1736 = vand.u32 %v1734, 31
    %v1737 = vsub.s32 32, %v1736
    %v1738 = vshrl.u32 683565275, %v1737
    %v1739 = vshll.u32 683565275, %v1736
    %v1740 = vshrl.u32 2475754826, %v1737
    %v1741 = vor.u32 %v1739, %v1740
    %v1742 = vshll.u32 2475754826, %v1736
    %v1743 = vshrl.u32 2131351028, %v1737
    %v1744 = vor.u32 %v1742, %v1743
    %v1745 = vshll.u32 2131351028, %v1736
    %v1746 = vshrl.u32 2102212464, %v1737
    %v1747 = vor.u32 %v1745, %v1746
    %v1748 = vshll.u32 2102212464, %v1736
    %v1749 = vshrl.u32 920167782, %v1737
    %v1750 = vor.u32 %v1748, %v1749
    %v1751 = vshll.u32 920167782, %v1736
    %v1752 = vshrl.u32 1326507024, %v1737
    %v1753 = vor.u32 %v1751, %v1752
    %vm1754 = vcmp.lt.s32.totalorder %v1735, 1
    %vm1755 = vcmp.lt.s32.totalorder %v1735, 2
    %vm1756 = vcmp.lt.s32.totalorder %v1735, 3
    %vm1757 = vcmp.lt.s32.totalorder %v1735, 4
    %v1758 = vsel %vm1754, %v1738, %v1741
    %v1759 = vsel %vm1757, %v1747, 2102212464
    %v1760 = vsel %vm1756, %v1744, %v1759
    %v1761 = vsel %vm1755, %v1758, %v1760
    %v1762 = vsel %vm1754, %v1741, %v1744
    %v1763 = vsel %vm1757, %v1750, 920167782
    %v1764 = vsel %vm1756, %v1747, %v1763
    %v1765 = vsel %vm1755, %v1762, %v1764
    %v1766 = vsel %vm1754, %v1744, %v1747
    %v1767 = vsel %vm1757, %v1753, 1326507024
    %v1768 = vsel %vm1756, %v1750, %v1767
    %v1769 = vsel %vm1755, %v1766, %v1768
    %v1770 = vshll.u32 %v1730, 8
    %v1771 = vand.u32 %v1770, 65535
    %v1772 = vshrl.u32 %v1770, 16
    %v1773 = vand.u32 %v1769, 65535
    %v1774 = vshrl.u32 %v1769, 16
    %v1775 = vmul.u32 %v1771, %v1773
    %v1776 = vmul.u32 %v1771, %v1774
    %v1777 = vmul.u32 %v1772, %v1773
    %v1778 = vmul.u32 %v1772, %v1774
    %v1779 = vshll.u32 %v1776, 16
    %v1780 = vshrl.u32 %v1776, 16
    %v1781 = vshll.u32 %v1777, 16
    %v1782 = vshrl.u32 %v1777, 16
    %vm1783 = vc.u32 %v1775, %v1779
    %v1784 = vsel %vm1783, 1, 0
    %v1785 = vadd.s32 %v1775, %v1779
    %v1786 = vadd.s32 %v1778, %v1784
    %vm1787 = vc.u32 %v1785, %v1781
    %v1788 = vsel %vm1787, 1, 0
    %v1789 = vadd.s32 %v1785, %v1781
    %v1790 = vadd.s32 %v1786, %v1788
    %v1791 = vadd.s32 %v1790, %v1780
    %v1792 = vadd.s32 %v1791, %v1782
    %v1793 = vand.u32 %v1770, 65535
    %v1794 = vshrl.u32 %v1770, 16
    %v1795 = vand.u32 %v1765, 65535
    %v1796 = vshrl.u32 %v1765, 16
    %v1797 = vmul.u32 %v1793, %v1795
    %v1798 = vmul.u32 %v1793, %v1796
    %v1799 = vmul.u32 %v1794, %v1795
    %v1800 = vmul.u32 %v1794, %v1796
    %v1801 = vshll.u32 %v1798, 16
    %v1802 = vshrl.u32 %v1798, 16
    %v1803 = vshll.u32 %v1799, 16
    %v1804 = vshrl.u32 %v1799, 16
    %vm1805 = vc.u32 %v1797, %v1801
    %v1806 = vsel %vm1805, 1, 0
    %v1807 = vadd.s32 %v1797, %v1801
    %v1808 = vadd.s32 %v1800, %v1806
    %vm1809 = vc.u32 %v1807, %v1803
    %v1810 = vsel %vm1809, 1, 0
    %v1811 = vadd.s32 %v1807, %v1803
    %v1812 = vadd.s32 %v1808, %v1810
    %v1813 = vadd.s32 %v1812, %v1802
    %v1814 = vadd.s32 %v1813, %v1804
    %v1815 = vmul.u32 %v1770, %v1761
    %v1816 = vadd.s32 %v1792, %v1811
    %vm1817 = vc.u32 %v1792, %v1811
    %v1818 = vadd.s32 %v1814, 1
    %v1819 = vsel %vm1817, %v1818, %v1814
    %v1820 = vadd.s32 %v1815, %v1819
    %v1821 = vadd.s32 %v1820, 536870912
    %v1822 = vshrl.u32 %v1821, 30
    %v1823 = vshll.u32 %v1822, 30
    %v1824 = vsub.s32 %v1820, %v1823
    %vm1825 = vcmp.lt.s32.totalorder %v1824, 0
    %v1826 = vsub.s32 0, %v1824
    %v1827 = vsel %vm1825, %v1826, %v1824
    %v1828 = vclz %v1827
    %v1829 = vsub.s32 %v1828, 2
    %vm1830 = vcmp.gt.s32.totalorder 0, %v1829
    %v1831 = vsel %vm1830, 0, %v1829
    %v1832 = vsub.s32 32, %v1831
    %v1833 = vshll.u32 %v1824, %v1831
    %v1834 = vshrl.u32 %v1816, %v1832
    %v1835 = vor.u32 %v1833, %v1834
    %v1836 = vsub.s32 4294967266, %v1831
    %v1837 = vadd.s32 %v1836, 127
    %v1838 = vshll.u32 %v1837, 23
    %v1839 = vor.u32 4788187, %v1838
    %v1840 = vand.u32 2147483647, %v1839
    %v1842 = vcvt.s32.f32 %v1835
    %v1843 = vmul.f32 %v1842, %v1840
    %v1844 = vxor.u32 %v1843, 2147483648
    %v1845 = vsel %vm1724, %v1844, %v1843
    %v1846 = vsub.s32 4, %v1822
    %v1847 = vsel %vm1724, %v1846, %v1822
    %v1848 = vsel %vm1723, %v168, %v1845
    %v1849 = vsel %vm1723, 0, %v1847
    %v1850 = vmul.f32 %v1848, %v1848
    %v1851 = vmul.f32 %v1850, -0.001358992
    %v1852 = vadd.f32 %v1851, 0.041655596
    %v1853 = vmul.f32 %v1850, %v1852
    %v1854 = vadd.f32 %v1853, -0.4999988
    %v1855 = vmul.f32 %v1850, %v1854
    %v1856 = vadd.f32 1.0, %v1855
    %v1857 = vmul.f32 %v1848, %v1848
    %v1858 = vmul.f32 %v1857, -0.00019511016
    %v1859 = vadd.f32 %v1858, 0.008332121
    %v1860 = vmul.f32 %v1857, %v1859
    %v1861 = vadd.f32 %v1860, -0.16666654
    %v1862 = vmul.f32 %v1857, %v1861
    %v1863 = vadd.f32 %v1862, 1.0
    %v1864 = vmul.f32 %v1863, %v1848
    %vm1865 = vweird.f32 %v168
    %v1866 = vand.u32 %v1849, 3
    %vm1867 = vcmp.lt.s32.totalorder %v1866, 2
    %vm1868 = vcmp.eq.s32.totalorder %v1866, 0
    %v1869 = vxor.u32 %v1864, 2147483648
    %v1870 = vsel %vm1868, %v1856, %v1869
    %vm1871 = vcmp.eq.s32.totalorder %v1866, 2
    %v1872 = vxor.u32 %v1856, 2147483648
    %v1873 = vsel %vm1871, %v1872, %v1864
    %v1874 = vsel %vm1867, %v1870, %v1873
    %v1875 = vsel %vm1865, nan, %v1874
    %v1876 = vand.u32 2147483647, %v169
    %vm1877 = vcmp.le.f32.partialorder %v1876, 0.7853982
    %vm1878 = vcmp.lt.s32.totalorder %v169, 0
    %v1879 = vand.u32 %v169, 2139095040
    %v1880 = vshrl.u32 %v1879, 23
    %v1881 = vsub.s32 %v1880, 127
    %v1882 = vand.u32 2147483647, %v169
    %v1883 = vand.u32 %v1882, 8388607
    %v1884 = vor.u32 %v1883, 8388608
    %v1885 = vsub.s32 0, %v1884
    %v1886 = vadd.s32 %v1881, 1
    %vm1887 = vcmp.gt.s32.totalorder %v1886, 0
    %v1888 = vsel %vm1887, %v1886, 0
    %v1889 = vshrl.u32 %v1888, 5
    %v1890 = vand.u32 %v1888, 31
    %v1891 = vsub.s32 32, %v1890
    %v1892 = vshrl.u32 683565275, %v1891
    %v1893 = vshll.u32 683565275, %v1890
    %v1894 = vshrl.u32 2475754826, %v1891
    %v1895 = vor.u32 %v1893, %v1894
    %v1896 = vshll.u32 2475754826, %v1890
    %v1897 = vshrl.u32 2131351028, %v1891
    %v1898 = vor.u32 %v1896, %v1897
    %v1899 = vshll.u32 2131351028, %v1890
    %v1900 = vshrl.u32 2102212464, %v1891
    %v1901 = vor.u32 %v1899, %v1900
    %v1902 = vshll.u32 2102212464, %v1890
    %v1903 = vshrl.u32 920167782, %v1891
    %v1904 = vor.u32 %v1902, %v1903
    %v1905 = vshll.u32 920167782, %v1890
    %v1906 = vshrl.u32 1326507024, %v1891
    %v1907 = vor.u32 %v1905, %v1906
    %vm1908 = vcmp.lt.s32.totalorder %v1889, 1
    %vm1909 = vcmp.lt.s32.totalorder %v1889, 2
    %vm1910 = vcmp.lt.s32.totalorder %v1889, 3
    %vm1911 = vcmp.lt.s32.totalorder %v1889, 4
    %v1912 = vsel %vm1908, %v1892, %v1895
    %v1913 = vsel %vm1911, %v1901, 2102212464
    %v1914 = vsel %vm1910, %v1898, %v1913
    %v1915 = vsel %vm1909, %v1912, %v1914
    %v1916 = vsel %vm1908, %v1895, %v1898
    %v1917 = vsel %vm1911, %v1904, 920167782
    %v1918 = vsel %vm1910, %v1901, %v1917
    %v1919 = vsel %vm1909, %v1916, %v1918
    %v1920 = vsel %vm1908, %v1898, %v1901
    %v1921 = vsel %vm1911, %v1907, 1326507024
    %v1922 = vsel %vm1910, %v1904, %v1921
    %v1923 = vsel %vm1909, %v1920, %v1922
    %v1924 = vshll.u32 %v1884, 8
    %v1925 = vand.u32 %v1924, 65535
    %v1926 = vshrl.u32 %v1924, 16
    %v1927 = vand.u32 %v1923, 65535
    %v1928 = vshrl.u32 %v1923, 16
    %v1929 = vmul.u32 %v1925, %v1927
    %v1930 = vmul.u32 %v1925, %v1928
    %v1931 = vmul.u32 %v1926, %v1927
    %v1932 = vmul.u32 %v1926, %v1928
    %v1933 = vshll.u32 %v1930, 16
    %v1934 = vshrl.u32 %v1930, 16
    %v1935 = vshll.u32 %v1931, 16
    %v1936 = vshrl.u32 %v1931, 16
    %vm1937 = vc.u32 %v1929, %v1933
    %v1938 = vsel %vm1937, 1, 0
    %v1939 = vadd.s32 %v1929, %v1933
    %v1940 = vadd.s32 %v1932, %v1938
    %vm1941 = vc.u32 %v1939, %v1935
    %v1942 = vsel %vm1941, 1, 0
    %v1943 = vadd.s32 %v1939, %v1935
    %v1944 = vadd.s32 %v1940, %v1942
    %v1945 = vadd.s32 %v1944, %v1934
    %v1946 = vadd.s32 %v1945, %v1936
    %v1947 = vand.u32 %v1924, 65535
    %v1948 = vshrl.u32 %v1924, 16
    %v1949 = vand.u32 %v1919, 65535
    %v1950 = vshrl.u32 %v1919, 16
    %v1951 = vmul.u32 %v1947, %v1949
    %v1952 = vmul.u32 %v1947, %v1950
    %v1953 = vmul.u32 %v1948, %v1949
    %v1954 = vmul.u32 %v1948, %v1950
    %v1955 = vshll.u32 %v1952, 16
    %v1956 = vshrl.u32 %v1952, 16
    %v1957 = vshll.u32 %v1953, 16
    %v1958 = vshrl.u32 %v1953, 16
    %vm1959 = vc.u32 %v1951, %v1955
    %v1960 = vsel %vm1959, 1, 0
    %v1961 = vadd.s32 %v1951, %v1955
    %v1962 = vadd.s32 %v1954, %v1960
    %vm1963 = vc.u32 %v1961, %v1957
    %v1964 = vsel %vm1963, 1, 0
    %v1965 = vadd.s32 %v1961, %v1957
    %v1966 = vadd.s32 %v1962, %v1964
    %v1967 = vadd.s32 %v1966, %v1956
    %v1968 = vadd.s32 %v1967, %v1958
    %v1969 = vmul.u32 %v1924, %v1915
    %v1970 = vadd.s32 %v1946, %v1965
    %vm1971 = vc.u32 %v1946, %v1965
    %v1972 = vadd.s32 %v1968, 1
    %v1973 = vsel %vm1971, %v1972, %v1968
    %v1974 = vadd.s32 %v1969, %v1973
    %v1975 = vadd.s32 %v1974, 536870912
    %v1976 = vshrl.u32 %v1975, 30
    %v1977 = vshll.u32 %v1976, 30
    %v1978 = vsub.s32 %v1974, %v1977
    %vm1979 = vcmp.lt.s32.totalorder %v1978, 0
    %v1980 = vsub.s32 0, %v1978
    %v1981 = vsel %vm1979, %v1980, %v1978
    %v1982 = vclz %v1981
    %v1983 = vsub.s32 %v1982, 2
    %vm1984 = vcmp.gt.s32.totalorder 0, %v1983
    %v1985 = vsel %vm1984, 0, %v1983
    %v1986 = vsub.s32 32, %v1985
    %v1987 = vshll.u32 %v1978, %v1985
    %v1988 = vshrl.u32 %v1970, %v1986
    %v1989 = vor.u32 %v1987, %v1988
    %v1990 = vsub.s32 4294967266, %v1985
    %v1991 = vadd.s32 %v1990, 127
    %v1992 = vshll.u32 %v1991, 23
    %v1993 = vor.u32 4788187, %v1992
    %v1994 = vand.u32 2147483647, %v1993
    %v1996 = vcvt.s32.f32 %v1989
    %v1997 = vmul.f32 %v1996, %v1994
    %v1998 = vxor.u32 %v1997, 2147483648
    %v1999 = vsel %vm1878, %v1998, %v1997
    %v2000 = vsub.s32 4, %v1976
    %v2001 = vsel %vm1878, %v2000, %v1976
    %v2002 = vsel %vm1877, %v169, %v1999
    %v2003 = vsel %vm1877, 0, %v2001
    %v2004 = vmul.f32 %v2002, %v2002
    %v2005 = vmul.f32 %v2004, -0.001358992
    %v2006 = vadd.f32 %v2005, 0.041655596
    %v2007 = vmul.f32 %v2004, %v2006
    %v2008 = vadd.f32 %v2007, -0.4999988
    %v2009 = vmul.f32 %v2004, %v2008
    %v2010 = vadd.f32 1.0, %v2009
    %v2011 = vmul.f32 %v2002, %v2002
    %v2012 = vmul.f32 %v2011, -0.00019511016
    %v2013 = vadd.f32 %v2012, 0.008332121
    %v2014 = vmul.f32 %v2011, %v2013
    %v2015 = vadd.f32 %v2014, -0.16666654
    %v2016 = vmul.f32 %v2011, %v2015
    %v2017 = vadd.f32 %v2016, 1.0
    %v2018 = vmul.f32 %v2017, %v2002
    %vm2019 = vweird.f32 %v169
    %v2020 = vand.u32 %v2003, 3
    %vm2021 = vcmp.lt.s32.totalorder %v2020, 2
    %vm2022 = vcmp.eq.s32.totalorder %v2020, 0
    %v2023 = vxor.u32 %v2018, 2147483648
    %v2024 = vsel %vm2022, %v2010, %v2023
    %vm2025 = vcmp.eq.s32.totalorder %v2020, 2
    %v2026 = vxor.u32 %v2010, 2147483648
    %v2027 = vsel %vm2025, %v2026, %v2018
    %v2028 = vsel %vm2021, %v2024, %v2027
    %v2029 = vsel %vm2019, nan, %v2028
    %v2030 = vand.u32 2147483647, %v170
    %vm2031 = vcmp.le.f32.partialorder %v2030, 0.7853982
    %vm2032 = vcmp.lt.s32.totalorder %v170, 0
    %v2033 = vand.u32 %v170, 2139095040
    %v2034 = vshrl.u32 %v2033, 23
    %v2035 = vsub.s32 %v2034, 127
    %v2036 = vand.u32 2147483647, %v170
    %v2037 = vand.u32 %v2036, 8388607
    %v2038 = vor.u32 %v2037, 8388608
    %v2039 = vsub.s32 0, %v2038
    %v2040 = vadd.s32 %v2035, 1
    %vm2041 = vcmp.gt.s32.totalorder %v2040, 0
    %v2042 = vsel %vm2041, %v2040, 0
    %v2043 = vshrl.u32 %v2042, 5
    %v2044 = vand.u32 %v2042, 31
    %v2045 = vsub.s32 32, %v2044
    %v2046 = vshrl.u32 683565275, %v2045
    %v2047 = vshll.u32 683565275, %v2044
    %v2048 = vshrl.u32 2475754826, %v2045
    %v2049 = vor.u32 %v2047, %v2048
    %v2050 = vshll.u32 2475754826, %v2044
    %v2051 = vshrl.u32 2131351028, %v2045
    %v2052 = vor.u32 %v2050, %v2051
    %v2053 = vshll.u32 2131351028, %v2044
    %v2054 = vshrl.u32 2102212464, %v2045
    %v2055 = vor.u32 %v2053, %v2054
    %v2056 = vshll.u32 2102212464, %v2044
    %v2057 = vshrl.u32 920167782, %v2045
    %v2058 = vor.u32 %v2056, %v2057
    %v2059 = vshll.u32 920167782, %v2044
    %v2060 = vshrl.u32 1326507024, %v2045
    %v2061 = vor.u32 %v2059, %v2060
    %vm2062 = vcmp.lt.s32.totalorder %v2043, 1
    %vm2063 = vcmp.lt.s32.totalorder %v2043, 2
    %vm2064 = vcmp.lt.s32.totalorder %v2043, 3
    %vm2065 = vcmp.lt.s32.totalorder %v2043, 4
    %v2066 = vsel %vm2062, %v2046, %v2049
    %v2067 = vsel %vm2065, %v2055, 2102212464
    %v2068 = vsel %vm2064, %v2052, %v2067
    %v2069 = vsel %vm2063, %v2066, %v2068
    %v2070 = vsel %vm2062, %v2049, %v2052
    %v2071 = vsel %vm2065, %v2058, 920167782
    %v2072 = vsel %vm2064, %v2055, %v2071
    %v2073 = vsel %vm2063, %v2070, %v2072
    %v2074 = vsel %vm2062, %v2052, %v2055
    %v2075 = vsel %vm2065, %v2061, 1326507024
    %v2076 = vsel %vm2064, %v2058, %v2075
    %v2077 = vsel %vm2063, %v2074, %v2076
    %v2078 = vshll.u32 %v2038, 8
    %v2079 = vand.u32 %v2078, 65535
    %v2080 = vshrl.u32 %v2078, 16
    %v2081 = vand.u32 %v2077, 65535
    %v2082 = vshrl.u32 %v2077, 16
    %v2083 = vmul.u32 %v2079, %v2081
    %v2084 = vmul.u32 %v2079, %v2082
    %v2085 = vmul.u32 %v2080, %v2081
    %v2086 = vmul.u32 %v2080, %v2082
    %v2087 = vshll.u32 %v2084, 16
    %v2088 = vshrl.u32 %v2084, 16
    %v2089 = vshll.u32 %v2085, 16
    %v2090 = vshrl.u32 %v2085, 16
    %vm2091 = vc.u32 %v2083, %v2087
    %v2092 = vsel %vm2091, 1, 0
    %v2093 = vadd.s32 %v2083, %v2087
    %v2094 = vadd.s32 %v2086, %v2092
    %vm2095 = vc.u32 %v2093, %v2089
    %v2096 = vsel %vm2095, 1, 0
    %v2097 = vadd.s32 %v2093, %v2089
    %v2098 = vadd.s32 %v2094, %v2096
    %v2099 = vadd.s32 %v2098, %v2088
    %v2100 = vadd.s32 %v2099, %v2090
    %v2101 = vand.u32 %v2078, 65535
    %v2102 = vshrl.u32 %v2078, 16
    %v2103 = vand.u32 %v2073, 65535
    %v2104 = vshrl.u32 %v2073, 16
    %v2105 = vmul.u32 %v2101, %v2103
    %v2106 = vmul.u32 %v2101, %v2104
    %v2107 = vmul.u32 %v2102, %v2103
    %v2108 = vmul.u32 %v2102, %v2104
    %v2109 = vshll.u32 %v2106, 16
    %v2110 = vshrl.u32 %v2106, 16
    %v2111 = vshll.u32 %v2107, 16
    %v2112 = vshrl.u32 %v2107, 16
    %vm2113 = vc.u32 %v2105, %v2109
    %v2114 = vsel %vm2113, 1, 0
    %v2115 = vadd.s32 %v2105, %v2109
    %v2116 = vadd.s32 %v2108, %v2114
    %vm2117 = vc.u32 %v2115, %v2111
    %v2118 = vsel %vm2117, 1, 0
    %v2119 = vadd.s32 %v2115, %v2111
    %v2120 = vadd.s32 %v2116, %v2118
    %v2121 = vadd.s32 %v2120, %v2110
    %v2122 = vadd.s32 %v2121, %v2112
    %v2123 = vmul.u32 %v2078, %v2069
    %v2124 = vadd.s32 %v2100, %v2119
    %vm2125 = vc.u32 %v2100, %v2119
    %v2126 = vadd.s32 %v2122, 1
    %v2127 = vsel %vm2125, %v2126, %v2122
    %v2128 = vadd.s32 %v2123, %v2127
    %v2129 = vadd.s32 %v2128, 536870912
    %v2130 = vshrl.u32 %v2129, 30
    %v2131 = vshll.u32 %v2130, 30
    %v2132 = vsub.s32 %v2128, %v2131
    %vm2133 = vcmp.lt.s32.totalorder %v2132, 0
    %v2134 = vsub.s32 0, %v2132
    %v2135 = vsel %vm2133, %v2134, %v2132
    %v2136 = vclz %v2135
    %v2137 = vsub.s32 %v2136, 2
    %vm2138 = vcmp.gt.s32.totalorder 0, %v2137
    %v2139 = vsel %vm2138, 0, %v2137
    %v2140 = vsub.s32 32, %v2139
    %v2141 = vshll.u32 %v2132, %v2139
    %v2142 = vshrl.u32 %v2124, %v2140
    %v2143 = vor.u32 %v2141, %v2142
    %v2144 = vsub.s32 4294967266, %v2139
    %v2145 = vadd.s32 %v2144, 127
    %v2146 = vshll.u32 %v2145, 23
    %v2147 = vor.u32 4788187, %v2146
    %v2148 = vand.u32 2147483647, %v2147
    %v2150 = vcvt.s32.f32 %v2143
    %v2151 = vmul.f32 %v2150, %v2148
    %v2152 = vxor.u32 %v2151, 2147483648
    %v2153 = vsel %vm2032, %v2152, %v2151
    %v2154 = vsub.s32 4, %v2130
    %v2155 = vsel %vm2032, %v2154, %v2130
    %v2156 = vsel %vm2031, %v170, %v2153
    %v2157 = vsel %vm2031, 0, %v2155
    %v2158 = vmul.f32 %v2156, %v2156
    %v2159 = vmul.f32 %v2158, -0.001358992
    %v2160 = vadd.f32 %v2159, 0.041655596
    %v2161 = vmul.f32 %v2158, %v2160
    %v2162 = vadd.f32 %v2161, -0.4999988
    %v2163 = vmul.f32 %v2158, %v2162
    %v2164 = vadd.f32 1.0, %v2163
    %v2165 = vmul.f32 %v2156, %v2156
    %v2166 = vmul.f32 %v2165, -0.00019511016
    %v2167 = vadd.f32 %v2166, 0.008332121
    %v2168 = vmul.f32 %v2165, %v2167
    %v2169 = vadd.f32 %v2168, -0.16666654
    %v2170 = vmul.f32 %v2165, %v2169
    %v2171 = vadd.f32 %v2170, 1.0
    %v2172 = vmul.f32 %v2171, %v2156
    %vm2173 = vweird.f32 %v170
    %v2174 = vand.u32 %v2157, 3
    %vm2175 = vcmp.lt.s32.totalorder %v2174, 2
    %vm2176 = vcmp.eq.s32.totalorder %v2174, 0
    %v2177 = vxor.u32 %v2172, 2147483648
    %v2178 = vsel %vm2176, %v2164, %v2177
    %vm2179 = vcmp.eq.s32.totalorder %v2174, 2
    %v2180 = vxor.u32 %v2164, 2147483648
    %v2181 = vsel %vm2179, %v2180, %v2172
    %v2182 = vsel %vm2175, %v2178, %v2181
    %v2183 = vsel %vm2173, nan, %v2182
    %v2184 = vand.u32 2147483647, %v171
    %vm2185 = vcmp.le.f32.partialorder %v2184, 0.7853982
    %vm2186 = vcmp.lt.s32.totalorder %v171, 0
    %v2187 = vand.u32 %v171, 2139095040
    %v2188 = vshrl.u32 %v2187, 23
    %v2189 = vsub.s32 %v2188, 127
    %v2190 = vand.u32 2147483647, %v171
    %v2191 = vand.u32 %v2190, 8388607
    %v2192 = vor.u32 %v2191, 8388608
    %v2193 = vsub.s32 0, %v2192
    %v2194 = vadd.s32 %v2189, 1
    %vm2195 = vcmp.gt.s32.totalorder %v2194, 0
    %v2196 = vsel %vm2195, %v2194, 0
    %v2197 = vshrl.u32 %v2196, 5
    %v2198 = vand.u32 %v2196, 31
    %v2199 = vsub.s32 32, %v2198
    %v2200 = vshrl.u32 683565275, %v2199
    %v2201 = vshll.u32 683565275, %v2198
    %v2202 = vshrl.u32 2475754826, %v2199
    %v2203 = vor.u32 %v2201, %v2202
    %v2204 = vshll.u32 2475754826, %v2198
    %v2205 = vshrl.u32 2131351028, %v2199
    %v2206 = vor.u32 %v2204, %v2205
    %v2207 = vshll.u32 2131351028, %v2198
    %v2208 = vshrl.u32 2102212464, %v2199
    %v2209 = vor.u32 %v2207, %v2208
    %v2210 = vshll.u32 2102212464, %v2198
    %v2211 = vshrl.u32 920167782, %v2199
    %v2212 = vor.u32 %v2210, %v2211
    %v2213 = vshll.u32 920167782, %v2198
    %v2214 = vshrl.u32 1326507024, %v2199
    %v2215 = vor.u32 %v2213, %v2214
    %vm2216 = vcmp.lt.s32.totalorder %v2197, 1
    %vm2217 = vcmp.lt.s32.totalorder %v2197, 2
    %vm2218 = vcmp.lt.s32.totalorder %v2197, 3
    %vm2219 = vcmp.lt.s32.totalorder %v2197, 4
    %v2220 = vsel %vm2216, %v2200, %v2203
    %v2221 = vsel %vm2219, %v2209, 2102212464
    %v2222 = vsel %vm2218, %v2206, %v2221
    %v2223 = vsel %vm2217, %v2220, %v2222
    %v2224 = vsel %vm2216, %v2203, %v2206
    %v2225 = vsel %vm2219, %v2212, 920167782
    %v2226 = vsel %vm2218, %v2209, %v2225
    %v2227 = vsel %vm2217, %v2224, %v2226
    %v2228 = vsel %vm2216, %v2206, %v2209
    %v2229 = vsel %vm2219, %v2215, 1326507024
    %v2230 = vsel %vm2218, %v2212, %v2229
    %v2231 = vsel %vm2217, %v2228, %v2230
    %v2232 = vshll.u32 %v2192, 8
    %v2233 = vand.u32 %v2232, 65535
    %v2234 = vshrl.u32 %v2232, 16
    %v2235 = vand.u32 %v2231, 65535
    %v2236 = vshrl.u32 %v2231, 16
    %v2237 = vmul.u32 %v2233, %v2235
    %v2238 = vmul.u32 %v2233, %v2236
    %v2239 = vmul.u32 %v2234, %v2235
    %v2240 = vmul.u32 %v2234, %v2236
    %v2241 = vshll.u32 %v2238, 16
    %v2242 = vshrl.u32 %v2238, 16
    %v2243 = vshll.u32 %v2239, 16
    %v2244 = vshrl.u32 %v2239, 16
    %vm2245 = vc.u32 %v2237, %v2241
    %v2246 = vsel %vm2245, 1, 0
    %v2247 = vadd.s32 %v2237, %v2241
    %v2248 = vadd.s32 %v2240, %v2246
    %vm2249 = vc.u32 %v2247, %v2243
    %v2250 = vsel %vm2249, 1, 0
    %v2251 = vadd.s32 %v2247, %v2243
    %v2252 = vadd.s32 %v2248, %v2250
    %v2253 = vadd.s32 %v2252, %v2242
    %v2254 = vadd.s32 %v2253, %v2244
    %v2255 = vand.u32 %v2232, 65535
    %v2256 = vshrl.u32 %v2232, 16
    %v2257 = vand.u32 %v2227, 65535
    %v2258 = vshrl.u32 %v2227, 16
    %v2259 = vmul.u32 %v2255, %v2257
    %v2260 = vmul.u32 %v2255, %v2258
    %v2261 = vmul.u32 %v2256, %v2257
    %v2262 = vmul.u32 %v2256, %v2258
    %v2263 = vshll.u32 %v2260, 16
    %v2264 = vshrl.u32 %v2260, 16
    %v2265 = vshll.u32 %v2261, 16
    %v2266 = vshrl.u32 %v2261, 16
    %vm2267 = vc.u32 %v2259, %v2263
    %v2268 = vsel %vm2267, 1, 0
    %v2269 = vadd.s32 %v2259, %v2263
    %v2270 = vadd.s32 %v2262, %v2268
    %vm2271 = vc.u32 %v2269, %v2265
    %v2272 = vsel %vm2271, 1, 0
    %v2273 = vadd.s32 %v2269, %v2265
    %v2274 = vadd.s32 %v2270, %v2272
    %v2275 = vadd.s32 %v2274, %v2264
    %v2276 = vadd.s32 %v2275, %v2266
    %v2277 = vmul.u32 %v2232, %v2223
    %v2278 = vadd.s32 %v2254, %v2273
    %vm2279 = vc.u32 %v2254, %v2273
    %v2280 = vadd.s32 %v2276, 1
    %v2281 = vsel %vm2279, %v2280, %v2276
    %v2282 = vadd.s32 %v2277, %v2281
    %v2283 = vadd.s32 %v2282, 536870912
    %v2284 = vshrl.u32 %v2283, 30
    %v2285 = vshll.u32 %v2284, 30
    %v2286 = vsub.s32 %v2282, %v2285
    %vm2287 = vcmp.lt.s32.totalorder %v2286, 0
    %v2288 = vsub.s32 0, %v2286
    %v2289 = vsel %vm2287, %v2288, %v2286
    %v2290 = vclz %v2289
    %v2291 = vsub.s32 %v2290, 2
    %vm2292 = vcmp.gt.s32.totalorder 0, %v2291
    %v2293 = vsel %vm2292, 0, %v2291
    %v2294 = vsub.s32 32, %v2293
    %v2295 = vshll.u32 %v2286, %v2293
    %v2296 = vshrl.u32 %v2278, %v2294
    %v2297 = vor.u32 %v2295, %v2296
    %v2298 = vsub.s32 4294967266, %v2293
    %v2299 = vadd.s32 %v2298, 127
    %v2300 = vshll.u32 %v2299, 23
    %v2301 = vor.u32 4788187, %v2300
    %v2302 = vand.u32 2147483647, %v2301
    %v2304 = vcvt.s32.f32 %v2297
    %v2305 = vmul.f32 %v2304, %v2302
    %v2306 = vxor.u32 %v2305, 2147483648
    %v2307 = vsel %vm2186, %v2306, %v2305
    %v2308 = vsub.s32 4, %v2284
    %v2309 = vsel %vm2186, %v2308, %v2284
    %v2310 = vsel %vm2185, %v171, %v2307
    %v2311 = vsel %vm2185, 0, %v2309
    %v2312 = vmul.f32 %v2310, %v2310
    %v2313 = vmul.f32 %v2312, -0.001358992
    %v2314 = vadd.f32 %v2313, 0.041655596
    %v2315 = vmul.f32 %v2312, %v2314
    %v2316 = vadd.f32 %v2315, -0.4999988
    %v2317 = vmul.f32 %v2312, %v2316
    %v2318 = vadd.f32 1.0, %v2317
    %v2319 = vmul.f32 %v2310, %v2310
    %v2320 = vmul.f32 %v2319, -0.00019511016
    %v2321 = vadd.f32 %v2320, 0.008332121
    %v2322 = vmul.f32 %v2319, %v2321
    %v2323 = vadd.f32 %v2322, -0.16666654
    %v2324 = vmul.f32 %v2319, %v2323
    %v2325 = vadd.f32 %v2324, 1.0
    %v2326 = vmul.f32 %v2325, %v2310
    %vm2327 = vweird.f32 %v171
    %v2328 = vand.u32 %v2311, 3
    %vm2329 = vcmp.lt.s32.totalorder %v2328, 2
    %vm2330 = vcmp.eq.s32.totalorder %v2328, 0
    %v2331 = vxor.u32 %v2326, 2147483648
    %v2332 = vsel %vm2330, %v2318, %v2331
    %vm2333 = vcmp.eq.s32.totalorder %v2328, 2
    %v2334 = vxor.u32 %v2318, 2147483648
    %v2335 = vsel %vm2333, %v2334, %v2326
    %v2336 = vsel %vm2329, %v2332, %v2335
    %v2337 = vsel %vm2327, nan, %v2336
    %v2338 = vand.u32 2147483647, %v172
    %vm2339 = vcmp.le.f32.partialorder %v2338, 0.7853982
    %vm2340 = vcmp.lt.s32.totalorder %v172, 0
    %v2341 = vand.u32 %v172, 2139095040
    %v2342 = vshrl.u32 %v2341, 23
    %v2343 = vsub.s32 %v2342, 127
    %v2344 = vand.u32 2147483647, %v172
    %v2345 = vand.u32 %v2344, 8388607
    %v2346 = vor.u32 %v2345, 8388608
    %v2347 = vsub.s32 0, %v2346
    %v2348 = vadd.s32 %v2343, 1
    %vm2349 = vcmp.gt.s32.totalorder %v2348, 0
    %v2350 = vsel %vm2349, %v2348, 0
    %v2351 = vshrl.u32 %v2350, 5
    %v2352 = vand.u32 %v2350, 31
    %v2353 = vsub.s32 32, %v2352
    %v2354 = vshrl.u32 683565275, %v2353
    %v2355 = vshll.u32 683565275, %v2352
    %v2356 = vshrl.u32 2475754826, %v2353
    %v2357 = vor.u32 %v2355, %v2356
    %v2358 = vshll.u32 2475754826, %v2352
    %v2359 = vshrl.u32 2131351028, %v2353
    %v2360 = vor.u32 %v2358, %v2359
    %v2361 = vshll.u32 2131351028, %v2352
    %v2362 = vshrl.u32 2102212464, %v2353
    %v2363 = vor.u32 %v2361, %v2362
    %v2364 = vshll.u32 2102212464, %v2352
    %v2365 = vshrl.u32 920167782, %v2353
    %v2366 = vor.u32 %v2364, %v2365
    %v2367 = vshll.u32 920167782, %v2352
    %v2368 = vshrl.u32 1326507024, %v2353
    %v2369 = vor.u32 %v2367, %v2368
    %vm2370 = vcmp.lt.s32.totalorder %v2351, 1
    %vm2371 = vcmp.lt.s32.totalorder %v2351, 2
    %vm2372 = vcmp.lt.s32.totalorder %v2351, 3
    %vm2373 = vcmp.lt.s32.totalorder %v2351, 4
    %v2374 = vsel %vm2370, %v2354, %v2357
    %v2375 = vsel %vm2373, %v2363, 2102212464
    %v2376 = vsel %vm2372, %v2360, %v2375
    %v2377 = vsel %vm2371, %v2374, %v2376
    %v2378 = vsel %vm2370, %v2357, %v2360
    %v2379 = vsel %vm2373, %v2366, 920167782
    %v2380 = vsel %vm2372, %v2363, %v2379
    %v2381 = vsel %vm2371, %v2378, %v2380
    %v2382 = vsel %vm2370, %v2360, %v2363
    %v2383 = vsel %vm2373, %v2369, 1326507024
    %v2384 = vsel %vm2372, %v2366, %v2383
    %v2385 = vsel %vm2371, %v2382, %v2384
    %v2386 = vshll.u32 %v2346, 8
    %v2387 = vand.u32 %v2386, 65535
    %v2388 = vshrl.u32 %v2386, 16
    %v2389 = vand.u32 %v2385, 65535
    %v2390 = vshrl.u32 %v2385, 16
    %v2391 = vmul.u32 %v2387, %v2389
    %v2392 = vmul.u32 %v2387, %v2390
    %v2393 = vmul.u32 %v2388, %v2389
    %v2394 = vmul.u32 %v2388, %v2390
    %v2395 = vshll.u32 %v2392, 16
    %v2396 = vshrl.u32 %v2392, 16
    %v2397 = vshll.u32 %v2393, 16
    %v2398 = vshrl.u32 %v2393, 16
    %vm2399 = vc.u32 %v2391, %v2395
    %v2400 = vsel %vm2399, 1, 0
    %v2401 = vadd.s32 %v2391, %v2395
    %v2402 = vadd.s32 %v2394, %v2400
    %vm2403 = vc.u32 %v2401, %v2397
    %v2404 = vsel %vm2403, 1, 0
    %v2405 = vadd.s32 %v2401, %v2397
    %v2406 = vadd.s32 %v2402, %v2404
    %v2407 = vadd.s32 %v2406, %v2396
    %v2408 = vadd.s32 %v2407, %v2398
    %v2409 = vand.u32 %v2386, 65535
    %v2410 = vshrl.u32 %v2386, 16
    %v2411 = vand.u32 %v2381, 65535
    %v2412 = vshrl.u32 %v2381, 16
    %v2413 = vmul.u32 %v2409, %v2411
    %v2414 = vmul.u32 %v2409, %v2412
    %v2415 = vmul.u32 %v2410, %v2411
    %v2416 = vmul.u32 %v2410, %v2412
    %v2417 = vshll.u32 %v2414, 16
    %v2418 = vshrl.u32 %v2414, 16
    %v2419 = vshll.u32 %v2415, 16
    %v2420 = vshrl.u32 %v2415, 16
    %vm2421 = vc.u32 %v2413, %v2417
    %v2422 = vsel %vm2421, 1, 0
    %v2423 = vadd.s32 %v2413, %v2417
    %v2424 = vadd.s32 %v2416, %v2422
    %vm2425 = vc.u32 %v2423, %v2419
    %v2426 = vsel %vm2425, 1, 0
    %v2427 = vadd.s32 %v2423, %v2419
    %v2428 = vadd.s32 %v2424, %v2426
    %v2429 = vadd.s32 %v2428, %v2418
    %v2430 = vadd.s32 %v2429, %v2420
    %v2431 = vmul.u32 %v2386, %v2377
    %v2432 = vadd.s32 %v2408, %v2427
    %vm2433 = vc.u32 %v2408, %v2427
    %v2434 = vadd.s32 %v2430, 1
    %v2435 = vsel %vm2433, %v2434, %v2430
    %v2436 = vadd.s32 %v2431, %v2435
    %v2437 = vadd.s32 %v2436, 536870912
    %v2438 = vshrl.u32 %v2437, 30
    %v2439 = vshll.u32 %v2438, 30
    %v2440 = vsub.s32 %v2436, %v2439
    %vm2441 = vcmp.lt.s32.totalorder %v2440, 0
    %v2442 = vsub.s32 0, %v2440
    %v2443 = vsel %vm2441, %v2442, %v2440
    %v2444 = vclz %v2443
    %v2445 = vsub.s32 %v2444, 2
    %vm2446 = vcmp.gt.s32.totalorder 0, %v2445
    %v2447 = vsel %vm2446, 0, %v2445
    %v2448 = vsub.s32 32, %v2447
    %v2449 = vshll.u32 %v2440, %v2447
    %v2450 = vshrl.u32 %v2432, %v2448
    %v2451 = vor.u32 %v2449, %v2450
    %v2452 = vsub.s32 4294967266, %v2447
    %v2453 = vadd.s32 %v2452, 127
    %v2454 = vshll.u32 %v2453, 23
    %v2455 = vor.u32 4788187, %v2454
    %v2456 = vand.u32 2147483647, %v2455
    %v2458 = vcvt.s32.f32 %v2451
    %v2459 = vmul.f32 %v2458, %v2456
    %v2460 = vxor.u32 %v2459, 2147483648
    %v2461 = vsel %vm2340, %v2460, %v2459
    %v2462 = vsub.s32 4, %v2438
    %v2463 = vsel %vm2340, %v2462, %v2438
    %v2464 = vsel %vm2339, %v172, %v2461
    %v2465 = vsel %vm2339, 0, %v2463
    %v2466 = vmul.f32 %v2464, %v2464
    %v2467 = vmul.f32 %v2466, -0.001358992
    %v2468 = vadd.f32 %v2467, 0.041655596
    %v2469 = vmul.f32 %v2466, %v2468
    %v2470 = vadd.f32 %v2469, -0.4999988
    %v2471 = vmul.f32 %v2466, %v2470
    %v2472 = vadd.f32 1.0, %v2471
    %v2473 = vmul.f32 %v2464, %v2464
    %v2474 = vmul.f32 %v2473, -0.00019511016
    %v2475 = vadd.f32 %v2474, 0.008332121
    %v2476 = vmul.f32 %v2473, %v2475
    %v2477 = vadd.f32 %v2476, -0.16666654
    %v2478 = vmul.f32 %v2473, %v2477
    %v2479 = vadd.f32 %v2478, 1.0
    %v2480 = vmul.f32 %v2479, %v2464
    %vm2481 = vweird.f32 %v172
    %v2482 = vand.u32 %v2465, 3
    %vm2483 = vcmp.lt.s32.totalorder %v2482, 2
    %vm2484 = vcmp.eq.s32.totalorder %v2482, 0
    %v2485 = vxor.u32 %v2480, 2147483648
    %v2486 = vsel %vm2484, %v2472, %v2485
    %vm2487 = vcmp.eq.s32.totalorder %v2482, 2
    %v2488 = vxor.u32 %v2472, 2147483648
    %v2489 = vsel %vm2487, %v2488, %v2480
    %v2490 = vsel %vm2483, %v2486, %v2489
    %v2491 = vsel %vm2481, nan, %v2490
    %v2492 = vand.u32 2147483647, %v173
    %vm2493 = vcmp.le.f32.partialorder %v2492, 0.7853982
    %vm2494 = vcmp.lt.s32.totalorder %v173, 0
    %v2495 = vand.u32 %v173, 2139095040
    %v2496 = vshrl.u32 %v2495, 23
    %v2497 = vsub.s32 %v2496, 127
    %v2498 = vand.u32 2147483647, %v173
    %v2499 = vand.u32 %v2498, 8388607
    %v2500 = vor.u32 %v2499, 8388608
    %v2501 = vsub.s32 0, %v2500
    %v2502 = vadd.s32 %v2497, 1
    %vm2503 = vcmp.gt.s32.totalorder %v2502, 0
    %v2504 = vsel %vm2503, %v2502, 0
    %v2505 = vshrl.u32 %v2504, 5
    %v2506 = vand.u32 %v2504, 31
    %v2507 = vsub.s32 32, %v2506
    %v2508 = vshrl.u32 683565275, %v2507
    %v2509 = vshll.u32 683565275, %v2506
    %v2510 = vshrl.u32 2475754826, %v2507
    %v2511 = vor.u32 %v2509, %v2510
    %v2512 = vshll.u32 2475754826, %v2506
    %v2513 = vshrl.u32 2131351028, %v2507
    %v2514 = vor.u32 %v2512, %v2513
    %v2515 = vshll.u32 2131351028, %v2506
    %v2516 = vshrl.u32 2102212464, %v2507
    %v2517 = vor.u32 %v2515, %v2516
    %v2518 = vshll.u32 2102212464, %v2506
    %v2519 = vshrl.u32 920167782, %v2507
    %v2520 = vor.u32 %v2518, %v2519
    %v2521 = vshll.u32 920167782, %v2506
    %v2522 = vshrl.u32 1326507024, %v2507
    %v2523 = vor.u32 %v2521, %v2522
    %vm2524 = vcmp.lt.s32.totalorder %v2505, 1
    %vm2525 = vcmp.lt.s32.totalorder %v2505, 2
    %vm2526 = vcmp.lt.s32.totalorder %v2505, 3
    %vm2527 = vcmp.lt.s32.totalorder %v2505, 4
    %v2528 = vsel %vm2524, %v2508, %v2511
    %v2529 = vsel %vm2527, %v2517, 2102212464
    %v2530 = vsel %vm2526, %v2514, %v2529
    %v2531 = vsel %vm2525, %v2528, %v2530
    %v2532 = vsel %vm2524, %v2511, %v2514
    %v2533 = vsel %vm2527, %v2520, 920167782
    %v2534 = vsel %vm2526, %v2517, %v2533
    %v2535 = vsel %vm2525, %v2532, %v2534
    %v2536 = vsel %vm2524, %v2514, %v2517
    %v2537 = vsel %vm2527, %v2523, 1326507024
    %v2538 = vsel %vm2526, %v2520, %v2537
    %v2539 = vsel %vm2525, %v2536, %v2538
    %v2540 = vshll.u32 %v2500, 8
    %v2541 = vand.u32 %v2540, 65535
    %v2542 = vshrl.u32 %v2540, 16
    %v2543 = vand.u32 %v2539, 65535
    %v2544 = vshrl.u32 %v2539, 16
    %v2545 = vmul.u32 %v2541, %v2543
    %v2546 = vmul.u32 %v2541, %v2544
    %v2547 = vmul.u32 %v2542, %v2543
    %v2548 = vmul.u32 %v2542, %v2544
    %v2549 = vshll.u32 %v2546, 16
    %v2550 = vshrl.u32 %v2546, 16
    %v2551 = vshll.u32 %v2547, 16
    %v2552 = vshrl.u32 %v2547, 16
    %vm2553 = vc.u32 %v2545, %v2549
    %v2554 = vsel %vm2553, 1, 0
    %v2555 = vadd.s32 %v2545, %v2549
    %v2556 = vadd.s32 %v2548, %v2554
    %vm2557 = vc.u32 %v2555, %v2551
    %v2558 = vsel %vm2557, 1, 0
    %v2559 = vadd.s32 %v2555, %v2551
    %v2560 = vadd.s32 %v2556, %v2558
    %v2561 = vadd.s32 %v2560, %v2550
    %v2562 = vadd.s32 %v2561, %v2552
    %v2563 = vand.u32 %v2540, 65535
    %v2564 = vshrl.u32 %v2540, 16
    %v2565 = vand.u32 %v2535, 65535
    %v2566 = vshrl.u32 %v2535, 16
    %v2567 = vmul.u32 %v2563, %v2565
    %v2568 = vmul.u32 %v2563, %v2566
    %v2569 = vmul.u32 %v2564, %v2565
    %v2570 = vmul.u32 %v2564, %v2566
    %v2571 = vshll.u32 %v2568, 16
    %v2572 = vshrl.u32 %v2568, 16
    %v2573 = vshll.u32 %v2569, 16
    %v2574 = vshrl.u32 %v2569, 16
    %vm2575 = vc.u32 %v2567, %v2571
    %v2576 = vsel %vm2575, 1, 0
    %v2577 = vadd.s32 %v2567, %v2571
    %v2578 = vadd.s32 %v2570, %v2576
    %vm2579 = vc.u32 %v2577, %v2573
    %v2580 = vsel %vm2579, 1, 0
    %v2581 = vadd.s32 %v2577, %v2573
    %v2582 = vadd.s32 %v2578, %v2580
    %v2583 = vadd.s32 %v2582, %v2572
    %v2584 = vadd.s32 %v2583, %v2574
    %v2585 = vmul.u32 %v2540, %v2531
    %v2586 = vadd.s32 %v2562, %v2581
    %vm2587 = vc.u32 %v2562, %v2581
    %v2588 = vadd.s32 %v2584, 1
    %v2589 = vsel %vm2587, %v2588, %v2584
    %v2590 = vadd.s32 %v2585, %v2589
    %v2591 = vadd.s32 %v2590, 536870912
    %v2592 = vshrl.u32 %v2591, 30
    %v2593 = vshll.u32 %v2592, 30
    %v2594 = vsub.s32 %v2590, %v2593
    %vm2595 = vcmp.lt.s32.totalorder %v2594, 0
    %v2596 = vsub.s32 0, %v2594
    %v2597 = vsel %vm2595, %v2596, %v2594
    %v2598 = vclz %v2597
    %v2599 = vsub.s32 %v2598, 2
    %vm2600 = vcmp.gt.s32.totalorder 0, %v2599
    %v2601 = vsel %vm2600, 0, %v2599
    %v2602 = vsub.s32 32, %v2601
    %v2603 = vshll.u32 %v2594, %v2601
    %v2604 = vshrl.u32 %v2586, %v2602
    %v2605 = vor.u32 %v2603, %v2604
    %v2606 = vsub.s32 4294967266, %v2601
    %v2607 = vadd.s32 %v2606, 127
    %v2608 = vshll.u32 %v2607, 23
    %v2609 = vor.u32 4788187, %v2608
    %v2610 = vand.u32 2147483647, %v2609
    %v2612 = vcvt.s32.f32 %v2605
    %v2613 = vmul.f32 %v2612, %v2610
    %v2614 = vxor.u32 %v2613, 2147483648
    %v2615 = vsel %vm2494, %v2614, %v2613
    %v2616 = vsub.s32 4, %v2592
    %v2617 = vsel %vm2494, %v2616, %v2592
    %v2618 = vsel %vm2493, %v173, %v2615
    %v2619 = vsel %vm2493, 0, %v2617
    %v2620 = vmul.f32 %v2618, %v2618
    %v2621 = vmul.f32 %v2620, -0.001358992
    %v2622 = vadd.f32 %v2621, 0.041655596
    %v2623 = vmul.f32 %v2620, %v2622
    %v2624 = vadd.f32 %v2623, -0.4999988
    %v2625 = vmul.f32 %v2620, %v2624
    %v2626 = vadd.f32 1.0, %v2625
    %v2627 = vmul.f32 %v2618, %v2618
    %v2628 = vmul.f32 %v2627, -0.00019511016
    %v2629 = vadd.f32 %v2628, 0.008332121
    %v2630 = vmul.f32 %v2627, %v2629
    %v2631 = vadd.f32 %v2630, -0.16666654
    %v2632 = vmul.f32 %v2627, %v2631
    %v2633 = vadd.f32 %v2632, 1.0
    %v2634 = vmul.f32 %v2633, %v2618
    %vm2635 = vweird.f32 %v173
    %v2636 = vand.u32 %v2619, 3
    %vm2637 = vcmp.lt.s32.totalorder %v2636, 2
    %vm2638 = vcmp.eq.s32.totalorder %v2636, 0
    %v2639 = vxor.u32 %v2634, 2147483648
    %v2640 = vsel %vm2638, %v2626, %v2639
    %vm2641 = vcmp.eq.s32.totalorder %v2636, 2
    %v2642 = vxor.u32 %v2626, 2147483648
    %v2643 = vsel %vm2641, %v2642, %v2634
    %v2644 = vsel %vm2637, %v2640, %v2643
    %v2645 = vsel %vm2635, nan, %v2644
    %2654 = vrot.lane.b32.xlu0 %v1567, 16
    %v2655 = vpop.permute.xlu0 %2654
    %2656 = vrot.lane.b32.xlu0 %v1721, 16
    %v2657 = vpop.permute.xlu0 %2656
    %2658 = vrot.lane.b32.xlu0 %v1875, 16
    %v2659 = vpop.permute.xlu0 %2658
    %2660 = vrot.lane.b32.xlu0 %v2029, 16
    %v2661 = vpop.permute.xlu0 %2660
    %2662 = vrot.lane.b32.xlu0 %v2183, 16
    %v2663 = vpop.permute.xlu0 %2662
    %2664 = vrot.lane.b32.xlu0 %v2337, 16
    %v2665 = vpop.permute.xlu0 %2664
    %2666 = vrot.lane.b32.xlu0 %v2491, 16
    %v2667 = vpop.permute.xlu0 %2666
    %2668 = vrot.lane.b32.xlu0 %v2645, 16
    %v2669 = vpop.permute.xlu0 %2668
    %v2678 = vsel %vm68, %v328, %v2655
    %v2679 = vsel %vm68, %v483, %v2657
    %v2680 = vsel %vm68, %v638, %v2659
    %v2681 = vsel %vm68, %v793, %v2661
    %v2682 = vsel %vm68, %v948, %v2663
    %v2683 = vsel %vm68, %v1103, %v2665
    %v2684 = vsel %vm68, %v1258, %v2667
    %v2685 = vsel %vm68, %v1413, %v2669
    %v2686 = vpack.c.bf16 %v2679, %v2678
    %v2687 = vpack.c.bf16 %v2681, %v2680
    %v2688 = vpack.c.bf16 %v2683, %v2682
    %v2689 = vpack.c.bf16 %v2685, %v2684
    %v2690 = vld [vmem:[%s5] sm:$0xf]
    %v2691 = vld [vmem:[%s5 + $0x4] sm:$0xf]
    %v2692 = vld [vmem:[%s5 + $0x8] sm:$0xf]
    %v2693 = vld [vmem:[%s5 + $0xc] sm:$0xf]
    %v2694 = vld [vmem:[%s7] sm:$0x1]
    %v2696 = vperm.slane %v2694, 0
    %v2702 = vunpack.c.l.b16 %v2690
    %v2703 = vunpack.c.l.b16 %v2691
    %v2704 = vunpack.c.l.b16 %v2692
    %v2705 = vunpack.c.l.b16 %v2693
    %v2706 = vpack.c.b16 %v2703, %v2702
    %v2707 = vpack.c.b16 %v2705, %v2704
    %vm2710 = vcmask 261120
    %v2712 = vsel %vm2710, %v2686, 0
    %v2715 = vsel %vm2710, %v2687, 0
    %v2718 = vsel %vm2710, %v2688, 0
    %v2721 = vsel %vm2710, %v2689, 0
    %2723 = vmatpush.bf16.msra.mxu0 0
    %2724 = vmatpush.bf16.msra.mxu0 0
    %2725 = vmatpush.bf16.msra.mxu0 0
    %2726 = vmatpush.bf16.msra.mxu0 0
    %2727 = vmatpush.bf16.msra.mxu0 0
    %2728 = vmatpush.bf16.msra.mxu0 0
    %2729 = vmatpush.bf16.msra.mxu0 %v2707
    %2730 = vmatpush.bf16.msra.mxu0 %v2706
    %2731 = vmatmul.bf16.gmra.mxu0 %v2712
    %v2732 = vpop.f32.mrf.mxu0
    %v2733 = vadd.f32 %v2696, %v2732
    %v2734 = vpop.f32.mrf.mxu0
    %v2735 = vadd.f32 %v2696, %v2734
    %2736 = vmatmul.bf16.gmra.mxu0 %v2715
    %v2737 = vpop.f32.mrf.mxu0
    %v2738 = vadd.f32 %v2696, %v2737
    %v2739 = vpop.f32.mrf.mxu0
    %v2740 = vadd.f32 %v2696, %v2739
    %2741 = vmatmul.bf16.gmra.mxu0 %v2718
    %v2742 = vpop.f32.mrf.mxu0
    %v2743 = vadd.f32 %v2696, %v2742
    %v2744 = vpop.f32.mrf.mxu0
    %v2745 = vadd.f32 %v2696, %v2744
    %2746 = vmatmul.bf16.gmra.mxu0 %v2721
    %v2747 = vpop.f32.mrf.mxu0
    %v2748 = vadd.f32 %v2696, %v2747
    %v2749 = vpop.f32.mrf.mxu0
    %v2750 = vadd.f32 %v2696, %v2749
    %2751 = vdwg.mxu0
    %v2752 = vld [vmem:[%s6] sm:$0xf]
    %v2753 = vld [vmem:[%s6 + $0x4] sm:$0xf]
    %v2754 = vld [vmem:[%s8] sm:$0x1]
    %v2756 = vperm.slane %v2754, 0
    %v2759 = vunpack.c.l.b16 %v2752
    %v2760 = vunpack.c.l.b16 %v2753
    %v2761 = vpack.c.b16 %v2760, %v2759
    %v2764 = vsel %vm68, 0, 0
    %2766 = vmatpush.bf16.msra.mxu0 0
    %2767 = vmatpush.bf16.msra.mxu0 0
    %2768 = vmatpush.bf16.msra.mxu0 0
    %2769 = vmatpush.bf16.msra.mxu0 0
    %2770 = vmatpush.bf16.msra.mxu0 0
    %2771 = vmatpush.bf16.msra.mxu0 0
    %2772 = vmatpush.bf16.msra.mxu0 0
    %2773 = vmatpush.bf16.msra.mxu0 %v2761
    %2774 = vmatmul.bf16.gmra.mxu0 %v2764
    %v2775 = vpop.f32.mrf.mxu0
    %v2776 = vadd.f32 0.0, %v2775
    %v2777 = vpop.f32.mrf.mxu0
    %2778 = vdwg.mxu0
    %v2779 = vadd.f32 %v2733, %v2776
    %v2780 = vxor.u32 %v2779, 2147483648
    %v2781 = vmul.f32 %v2780, 1.442695
    %v2782 = vpow.pop %v2781
    %v2783 = vadd.f32 %v2782, 1.0
    %v2784 = vrcp.pop %v2783
    %v2785 = vmul.f32 %v2783, %v2784
    %v2786 = vsub.f32 1.0, %v2785
    %v2787 = vmul.f32 %v2784, %v2786
    %v2788 = vadd.f32 %v2784, %v2787
    %vm2789 = vweird.f32 %v2783
    %vm2790 = vweird.f32 %v2784
    %vm2791 = vmor %vm2789, %vm2790
    %v2792 = vsel %vm2791, %v2784, %v2788
    %v2793 = vand.u32 2147483647, %v2783
    %vm2794 = vcmp.eq.f32.partialorder %v2793, 8.507059e+37
    %v2795 = vand.u32 %v2783, 2147483648
    %v2796 = vor.u32 1.1754944e-38, %v2795
    %v2797 = vsel %vm2794, %v2796, %v2792
    %v2798 = vmul.f32 1.0, %v2797
    %2799 = vrot.lane.b32.xlu0 %v2756, 32
    %v2800 = vpop.permute.xlu0 %2799
    %v2802 = vadd.f32 %v2776, %v2800
    %2804 = vrot.lane.b32.xlu0 %v2802, 96
    %v2805 = vpop.permute.xlu0 %2804
    %v2807 = vmul.f32 %v2798, %v2805
    %2809 = vrot.lane.b32.xlu0 %v2807, 32
    %v2810 = vpop.permute.xlu0 %2809
    %v2812 = vadd.f32 %v2733, %v2810
    %v2813 = vtanh.pop %v2812
    %v2814 = vsub.f32 0.0, %v2813
    %2816 = vrot.lane.b32.xlu0 %v2814, 112
    %v2817 = vpop.permute.xlu0 %2816
    %v2819 = vmul.f32 %v2798, %v2817
    %2821 = vrot.lane.b32.xlu0 %v2819, 16
    %v2822 = vpop.permute.xlu0 %2821
    %v2824 = vadd.f32 %v2813, %v2822
    %v2825 = vpack.c.bf16 %v2824, %v2824
    %2827 = vrot.lane.b32.xlu0 %v2825, 96
    %v2828 = vpop.permute.xlu0 %2827
    %v2830 = vsel %vm68, %v2828, 0
    %2832 = vmatpush.bf16.msra.mxu0 0
    %2833 = vmatpush.bf16.msra.mxu0 0
    %2834 = vmatpush.bf16.msra.mxu0 0
    %2835 = vmatpush.bf16.msra.mxu0 0
    %2836 = vmatpush.bf16.msra.mxu0 0
    %2837 = vmatpush.bf16.msra.mxu0 0
    %2838 = vmatpush.bf16.msra.mxu0 0
    %2839 = vmatpush.bf16.msra.mxu0 %v2761
    %2840 = vmatmul.bf16.gmra.mxu0 %v2830
    %v2841 = vpop.f32.mrf.mxu0
    %v2842 = vadd.f32 0.0, %v2841
    %v2843 = vpop.f32.mrf.mxu0
    %2844 = vdwg.mxu0
    %v2845 = vadd.f32 %v2735, %v2842
    %v2846 = vxor.u32 %v2845, 2147483648
    %v2847 = vmul.f32 %v2846, 1.442695
    %v2848 = vpow.pop %v2847
    %v2849 = vadd.f32 %v2848, 1.0
    %v2850 = vrcp.pop %v2849
    %v2851 = vmul.f32 %v2849, %v2850
    %v2852 = vsub.f32 1.0, %v2851
    %v2853 = vmul.f32 %v2850, %v2852
    %v2854 = vadd.f32 %v2850, %v2853
    %vm2855 = vweird.f32 %v2849
    %vm2856 = vweird.f32 %v2850
    %vm2857 = vmor %vm2855, %vm2856
    %v2858 = vsel %vm2857, %v2850, %v2854
    %v2859 = vand.u32 2147483647, %v2849
    %vm2860 = vcmp.eq.f32.partialorder %v2859, 8.507059e+37
    %v2861 = vand.u32 %v2849, 2147483648
    %v2862 = vor.u32 1.1754944e-38, %v2861
    %v2863 = vsel %vm2860, %v2862, %v2858
    %v2864 = vmul.f32 1.0, %v2863
    %v2865 = vadd.f32 %v2842, %v2800
    %2867 = vrot.lane.b32.xlu0 %v2865, 96
    %v2868 = vpop.permute.xlu0 %2867
    %v2870 = vmul.f32 %v2864, %v2868
    %2872 = vrot.lane.b32.xlu0 %v2870, 32
    %v2873 = vpop.permute.xlu0 %2872
    %v2875 = vadd.f32 %v2735, %v2873
    %v2876 = vtanh.pop %v2875
    %v2877 = vsub.f32 %v2824, %v2876
    %2879 = vrot.lane.b32.xlu0 %v2877, 112
    %v2880 = vpop.permute.xlu0 %2879
    %v2882 = vmul.f32 %v2864, %v2880
    %2884 = vrot.lane.b32.xlu0 %v2882, 16
    %v2885 = vpop.permute.xlu0 %2884
    %v2887 = vadd.f32 %v2876, %v2885
    %v2888 = vpack.c.bf16 %v2887, %v2887
    %2890 = vrot.lane.b32.xlu0 %v2888, 96
    %v2891 = vpop.permute.xlu0 %2890
    %v2893 = vsel %vm68, %v2891, 0
    %2895 = vmatpush.bf16.msra.mxu0 0
    %2896 = vmatpush.bf16.msra.mxu0 0
    %2897 = vmatpush.bf16.msra.mxu0 0
    %2898 = vmatpush.bf16.msra.mxu0 0
    %2899 = vmatpush.bf16.msra.mxu0 0
    %2900 = vmatpush.bf16.msra.mxu0 0
    %2901 = vmatpush.bf16.msra.mxu0 0
    %2902 = vmatpush.bf16.msra.mxu0 %v2761
    %2903 = vmatmul.bf16.gmra.mxu0 %v2893
    %v2904 = vpop.f32.mrf.mxu0
    %v2905 = vadd.f32 0.0, %v2904
    %v2906 = vpop.f32.mrf.mxu0
    %2907 = vdwg.mxu0
    %v2908 = vadd.f32 %v2738, %v2905
    %v2909 = vxor.u32 %v2908, 2147483648
    %v2910 = vmul.f32 %v2909, 1.442695
    %v2911 = vpow.pop %v2910
    %v2912 = vadd.f32 %v2911, 1.0
    %v2913 = vrcp.pop %v2912
    %v2914 = vmul.f32 %v2912, %v2913
    %v2915 = vsub.f32 1.0, %v2914
    %v2916 = vmul.f32 %v2913, %v2915
    %v2917 = vadd.f32 %v2913, %v2916
    %vm2918 = vweird.f32 %v2912
    %vm2919 = vweird.f32 %v2913
    %vm2920 = vmor %vm2918, %vm2919
    %v2921 = vsel %vm2920, %v2913, %v2917
    %v2922 = vand.u32 2147483647, %v2912
    %vm2923 = vcmp.eq.f32.partialorder %v2922, 8.507059e+37
    %v2924 = vand.u32 %v2912, 2147483648
    %v2925 = vor.u32 1.1754944e-38, %v2924
    %v2926 = vsel %vm2923, %v2925, %v2921
    %v2927 = vmul.f32 1.0, %v2926
    %v2928 = vadd.f32 %v2905, %v2800
    %2930 = vrot.lane.b32.xlu0 %v2928, 96
    %v2931 = vpop.permute.xlu0 %2930
    %v2933 = vmul.f32 %v2927, %v2931
    %2935 = vrot.lane.b32.xlu0 %v2933, 32
    %v2936 = vpop.permute.xlu0 %2935
    %v2938 = vadd.f32 %v2738, %v2936
    %v2939 = vtanh.pop %v2938
    %v2940 = vsub.f32 %v2887, %v2939
    %2942 = vrot.lane.b32.xlu0 %v2940, 112
    %v2943 = vpop.permute.xlu0 %2942
    %v2945 = vmul.f32 %v2927, %v2943
    %2947 = vrot.lane.b32.xlu0 %v2945, 16
    %v2948 = vpop.permute.xlu0 %2947
    %v2950 = vadd.f32 %v2939, %v2948
    %v2951 = vpack.c.bf16 %v2950, %v2950
    %2953 = vrot.lane.b32.xlu0 %v2951, 96
    %v2954 = vpop.permute.xlu0 %2953
    %v2956 = vsel %vm68, %v2954, 0
    %2958 = vmatpush.bf16.msra.mxu0 0
    %2959 = vmatpush.bf16.msra.mxu0 0
    %2960 = vmatpush.bf16.msra.mxu0 0
    %2961 = vmatpush.bf16.msra.mxu0 0
    %2962 = vmatpush.bf16.msra.mxu0 0
    %2963 = vmatpush.bf16.msra.mxu0 0
    %2964 = vmatpush.bf16.msra.mxu0 0
    %2965 = vmatpush.bf16.msra.mxu0 %v2761
    %2966 = vmatmul.bf16.gmra.mxu0 %v2956
    %v2967 = vpop.f32.mrf.mxu0
    %v2968 = vadd.f32 0.0, %v2967
    %v2969 = vpop.f32.mrf.mxu0
    %2970 = vdwg.mxu0
    %v2971 = vadd.f32 %v2740, %v2968
    %v2972 = vxor.u32 %v2971, 2147483648
    %v2973 = vmul.f32 %v2972, 1.442695
    %v2974 = vpow.pop %v2973
    %v2975 = vadd.f32 %v2974, 1.0
    %v2976 = vrcp.pop %v2975
    %v2977 = vmul.f32 %v2975, %v2976
    %v2978 = vsub.f32 1.0, %v2977
    %v2979 = vmul.f32 %v2976, %v2978
    %v2980 = vadd.f32 %v2976, %v2979
    %vm2981 = vweird.f32 %v2975
    %vm2982 = vweird.f32 %v2976
    %vm2983 = vmor %vm2981, %vm2982
    %v2984 = vsel %vm2983, %v2976, %v2980
    %v2985 = vand.u32 2147483647, %v2975
    %vm2986 = vcmp.eq.f32.partialorder %v2985, 8.507059e+37
    %v2987 = vand.u32 %v2975, 2147483648
    %v2988 = vor.u32 1.1754944e-38, %v2987
    %v2989 = vsel %vm2986, %v2988, %v2984
    %v2990 = vmul.f32 1.0, %v2989
    %v2991 = vadd.f32 %v2968, %v2800
    %2993 = vrot.lane.b32.xlu0 %v2991, 96
    %v2994 = vpop.permute.xlu0 %2993
    %v2996 = vmul.f32 %v2990, %v2994
    %2998 = vrot.lane.b32.xlu0 %v2996, 32
    %v2999 = vpop.permute.xlu0 %2998
    %v3001 = vadd.f32 %v2740, %v2999
    %v3002 = vtanh.pop %v3001
    %v3003 = vsub.f32 %v2950, %v3002
    %3005 = vrot.lane.b32.xlu0 %v3003, 112
    %v3006 = vpop.permute.xlu0 %3005
    %v3008 = vmul.f32 %v2990, %v3006
    %3010 = vrot.lane.b32.xlu0 %v3008, 16
    %v3011 = vpop.permute.xlu0 %3010
    %v3013 = vadd.f32 %v3002, %v3011
    %v3014 = vpack.c.bf16 %v3013, %v3013
    %3016 = vrot.lane.b32.xlu0 %v3014, 96
    %v3017 = vpop.permute.xlu0 %3016
    %v3019 = vsel %vm68, %v3017, 0
    %3021 = vmatpush.bf16.msra.mxu0 0
    %3022 = vmatpush.bf16.msra.mxu0 0
    %3023 = vmatpush.bf16.msra.mxu0 0
    %3024 = vmatpush.bf16.msra.mxu0 0
    %3025 = vmatpush.bf16.msra.mxu0 0
    %3026 = vmatpush.bf16.msra.mxu0 0
    %3027 = vmatpush.bf16.msra.mxu0 0
    %3028 = vmatpush.bf16.msra.mxu0 %v2761
    %3029 = vmatmul.bf16.gmra.mxu0 %v3019
    %v3030 = vpop.f32.mrf.mxu0
    %v3031 = vadd.f32 0.0, %v3030
    %v3032 = vpop.f32.mrf.mxu0
    %3033 = vdwg.mxu0
    %v3034 = vadd.f32 %v2743, %v3031
    %v3035 = vxor.u32 %v3034, 2147483648
    %v3036 = vmul.f32 %v3035, 1.442695
    %v3037 = vpow.pop %v3036
    %v3038 = vadd.f32 %v3037, 1.0
    %v3039 = vrcp.pop %v3038
    %v3040 = vmul.f32 %v3038, %v3039
    %v3041 = vsub.f32 1.0, %v3040
    %v3042 = vmul.f32 %v3039, %v3041
    %v3043 = vadd.f32 %v3039, %v3042
    %vm3044 = vweird.f32 %v3038
    %vm3045 = vweird.f32 %v3039
    %vm3046 = vmor %vm3044, %vm3045
    %v3047 = vsel %vm3046, %v3039, %v3043
    %v3048 = vand.u32 2147483647, %v3038
    %vm3049 = vcmp.eq.f32.partialorder %v3048, 8.507059e+37
    %v3050 = vand.u32 %v3038, 2147483648
    %v3051 = vor.u32 1.1754944e-38, %v3050
    %v3052 = vsel %vm3049, %v3051, %v3047
    %v3053 = vmul.f32 1.0, %v3052
    %v3054 = vadd.f32 %v3031, %v2800
    %3056 = vrot.lane.b32.xlu0 %v3054, 96
    %v3057 = vpop.permute.xlu0 %3056
    %v3059 = vmul.f32 %v3053, %v3057
    %3061 = vrot.lane.b32.xlu0 %v3059, 32
    %v3062 = vpop.permute.xlu0 %3061
    %v3064 = vadd.f32 %v2743, %v3062
    %v3065 = vtanh.pop %v3064
    %v3066 = vsub.f32 %v3013, %v3065
    %3068 = vrot.lane.b32.xlu0 %v3066, 112
    %v3069 = vpop.permute.xlu0 %3068
    %v3071 = vmul.f32 %v3053, %v3069
    %3073 = vrot.lane.b32.xlu0 %v3071, 16
    %v3074 = vpop.permute.xlu0 %3073
    %v3076 = vadd.f32 %v3065, %v3074
    %v3077 = vpack.c.bf16 %v3076, %v3076
    %3079 = vrot.lane.b32.xlu0 %v3077, 96
    %v3080 = vpop.permute.xlu0 %3079
    %v3082 = vsel %vm68, %v3080, 0
    %3084 = vmatpush.bf16.msra.mxu0 0
    %3085 = vmatpush.bf16.msra.mxu0 0
    %3086 = vmatpush.bf16.msra.mxu0 0
    %3087 = vmatpush.bf16.msra.mxu0 0
    %3088 = vmatpush.bf16.msra.mxu0 0
    %3089 = vmatpush.bf16.msra.mxu0 0
    %3090 = vmatpush.bf16.msra.mxu0 0
    %3091 = vmatpush.bf16.msra.mxu0 %v2761
    %3092 = vmatmul.bf16.gmra.mxu0 %v3082
    %v3093 = vpop.f32.mrf.mxu0
    %v3094 = vadd.f32 0.0, %v3093
    %v3095 = vpop.f32.mrf.mxu0
    %3096 = vdwg.mxu0
    %v3097 = vadd.f32 %v2745, %v3094
    %v3098 = vxor.u32 %v3097, 2147483648
    %v3099 = vmul.f32 %v3098, 1.442695
    %v3100 = vpow.pop %v3099
    %v3101 = vadd.f32 %v3100, 1.0
    %v3102 = vrcp.pop %v3101
    %v3103 = vmul.f32 %v3101, %v3102
    %v3104 = vsub.f32 1.0, %v3103
    %v3105 = vmul.f32 %v3102, %v3104
    %v3106 = vadd.f32 %v3102, %v3105
    %vm3107 = vweird.f32 %v3101
    %vm3108 = vweird.f32 %v3102
    %vm3109 = vmor %vm3107, %vm3108
    %v3110 = vsel %vm3109, %v3102, %v3106
    %v3111 = vand.u32 2147483647, %v3101
    %vm3112 = vcmp.eq.f32.partialorder %v3111, 8.507059e+37
    %v3113 = vand.u32 %v3101, 2147483648
    %v3114 = vor.u32 1.1754944e-38, %v3113
    %v3115 = vsel %vm3112, %v3114, %v3110
    %v3116 = vmul.f32 1.0, %v3115
    %v3117 = vadd.f32 %v3094, %v2800
    %3119 = vrot.lane.b32.xlu0 %v3117, 96
    %v3120 = vpop.permute.xlu0 %3119
    %v3122 = vmul.f32 %v3116, %v3120
    %3124 = vrot.lane.b32.xlu0 %v3122, 32
    %v3125 = vpop.permute.xlu0 %3124
    %v3127 = vadd.f32 %v2745, %v3125
    %v3128 = vtanh.pop %v3127
    %v3129 = vsub.f32 %v3076, %v3128
    %3131 = vrot.lane.b32.xlu0 %v3129, 112
    %v3132 = vpop.permute.xlu0 %3131
    %v3134 = vmul.f32 %v3116, %v3132
    %3136 = vrot.lane.b32.xlu0 %v3134, 16
    %v3137 = vpop.permute.xlu0 %3136
    %v3139 = vadd.f32 %v3128, %v3137
    %v3140 = vpack.c.bf16 %v3139, %v3139
    %3142 = vrot.lane.b32.xlu0 %v3140, 96
    %v3143 = vpop.permute.xlu0 %3142
    %v3145 = vsel %vm68, %v3143, 0
    %3147 = vmatpush.bf16.msra.mxu0 0
    %3148 = vmatpush.bf16.msra.mxu0 0
    %3149 = vmatpush.bf16.msra.mxu0 0
    %3150 = vmatpush.bf16.msra.mxu0 0
    %3151 = vmatpush.bf16.msra.mxu0 0
    %3152 = vmatpush.bf16.msra.mxu0 0
    %3153 = vmatpush.bf16.msra.mxu0 0
    %3154 = vmatpush.bf16.msra.mxu0 %v2761
    %3155 = vmatmul.bf16.gmra.mxu0 %v3145
    %v3156 = vpop.f32.mrf.mxu0
    %v3157 = vadd.f32 0.0, %v3156
    %v3158 = vpop.f32.mrf.mxu0
    %3159 = vdwg.mxu0
    %v3160 = vadd.f32 %v2748, %v3157
    %v3161 = vxor.u32 %v3160, 2147483648
    %v3162 = vmul.f32 %v3161, 1.442695
    %v3163 = vpow.pop %v3162
    %v3164 = vadd.f32 %v3163, 1.0
    %v3165 = vrcp.pop %v3164
    %v3166 = vmul.f32 %v3164, %v3165
    %v3167 = vsub.f32 1.0, %v3166
    %v3168 = vmul.f32 %v3165, %v3167
    %v3169 = vadd.f32 %v3165, %v3168
    %vm3170 = vweird.f32 %v3164
    %vm3171 = vweird.f32 %v3165
    %vm3172 = vmor %vm3170, %vm3171
    %v3173 = vsel %vm3172, %v3165, %v3169
    %v3174 = vand.u32 2147483647, %v3164
    %vm3175 = vcmp.eq.f32.partialorder %v3174, 8.507059e+37
    %v3176 = vand.u32 %v3164, 2147483648
    %v3177 = vor.u32 1.1754944e-38, %v3176
    %v3178 = vsel %vm3175, %v3177, %v3173
    %v3179 = vmul.f32 1.0, %v3178
    %v3180 = vadd.f32 %v3157, %v2800
    %3182 = vrot.lane.b32.xlu0 %v3180, 96
    %v3183 = vpop.permute.xlu0 %3182
    %v3185 = vmul.f32 %v3179, %v3183
    %3187 = vrot.lane.b32.xlu0 %v3185, 32
    %v3188 = vpop.permute.xlu0 %3187
    %v3190 = vadd.f32 %v2748, %v3188
    %v3191 = vtanh.pop %v3190
    %v3192 = vsub.f32 %v3139, %v3191
    %3194 = vrot.lane.b32.xlu0 %v3192, 112
    %v3195 = vpop.permute.xlu0 %3194
    %v3197 = vmul.f32 %v3179, %v3195
    %3199 = vrot.lane.b32.xlu0 %v3197, 16
    %v3200 = vpop.permute.xlu0 %3199
    %v3202 = vadd.f32 %v3191, %v3200
    %v3203 = vpack.c.bf16 %v3202, %v3202
    %3205 = vrot.lane.b32.xlu0 %v3203, 96
    %v3206 = vpop.permute.xlu0 %3205
    %v3208 = vsel %vm68, %v3206, 0
    %3210 = vmatpush.bf16.msra.mxu0 0
    %3211 = vmatpush.bf16.msra.mxu0 0
    %3212 = vmatpush.bf16.msra.mxu0 0
    %3213 = vmatpush.bf16.msra.mxu0 0
    %3214 = vmatpush.bf16.msra.mxu0 0
    %3215 = vmatpush.bf16.msra.mxu0 0
    %3216 = vmatpush.bf16.msra.mxu0 0
    %3217 = vmatpush.bf16.msra.mxu0 %v2761
    %3218 = vmatmul.bf16.gmra.mxu0 %v3208
    %v3219 = vpop.f32.mrf.mxu0
    %v3220 = vadd.f32 0.0, %v3219
    %v3221 = vpop.f32.mrf.mxu0
    %3222 = vdwg.mxu0
    %v3223 = vadd.f32 %v2750, %v3220
    %v3224 = vxor.u32 %v3223, 2147483648
    %v3225 = vmul.f32 %v3224, 1.442695
    %v3226 = vpow.pop %v3225
    %v3227 = vadd.f32 %v3226, 1.0
    %v3228 = vrcp.pop %v3227
    %v3229 = vmul.f32 %v3227, %v3228
    %v3230 = vsub.f32 1.0, %v3229
    %v3231 = vmul.f32 %v3228, %v3230
    %v3232 = vadd.f32 %v3228, %v3231
    %vm3233 = vweird.f32 %v3227
    %vm3234 = vweird.f32 %v3228
    %vm3235 = vmor %vm3233, %vm3234
    %v3236 = vsel %vm3235, %v3228, %v3232
    %v3237 = vand.u32 2147483647, %v3227
    %vm3238 = vcmp.eq.f32.partialorder %v3237, 8.507059e+37
    %v3239 = vand.u32 %v3227, 2147483648
    %v3240 = vor.u32 1.1754944e-38, %v3239
    %v3241 = vsel %vm3238, %v3240, %v3236
    %v3242 = vmul.f32 1.0, %v3241
    %v3243 = vadd.f32 %v3220, %v2800
    %3245 = vrot.lane.b32.xlu0 %v3243, 96
    %v3246 = vpop.permute.xlu0 %3245
    %v3248 = vmul.f32 %v3242, %v3246
    %3250 = vrot.lane.b32.xlu0 %v3248, 32
    %v3251 = vpop.permute.xlu0 %3250
    %v3253 = vadd.f32 %v2750, %v3251
    %v3254 = vtanh.pop %v3253
    %v3255 = vsub.f32 %v3202, %v3254
    %3257 = vrot.lane.b32.xlu0 %v3255, 112
    %v3258 = vpop.permute.xlu0 %3257
    %v3260 = vmul.f32 %v3242, %v3258
    %3262 = vrot.lane.b32.xlu0 %v3260, 16
    %v3263 = vpop.permute.xlu0 %3262
    %v3265 = vadd.f32 %v3254, %v3263
    %s3266 = sld [smem:[#allocation3]]
    %v3267 = vstv %s3266
    %v3268 = vmul.f32 %v2824, %v3267
    %s3269 = sld [smem:[#allocation3 + $0x1]]
    %v3270 = vstv %s3269
    %v3271 = vmul.f32 %v2887, %v3270
    %v3272 = vadd.f32 %v3268, %v3271
    %s3273 = sld [smem:[#allocation3 + $0x2]]
    %v3274 = vstv %s3273
    %v3275 = vmul.f32 %v2950, %v3274
    %v3276 = vadd.f32 %v3272, %v3275
    %s3277 = sld [smem:[#allocation3 + $0x3]]
    %v3278 = vstv %s3277
    %v3279 = vmul.f32 %v3013, %v3278
    %v3280 = vadd.f32 %v3276, %v3279
    %s3281 = sld [smem:[#allocation3 + $0x4]]
    %v3282 = vstv %s3281
    %v3283 = vmul.f32 %v3076, %v3282
    %v3284 = vadd.f32 %v3280, %v3283
    %s3285 = sld [smem:[#allocation3 + $0x5]]
    %v3286 = vstv %s3285
    %v3287 = vmul.f32 %v3139, %v3286
    %v3288 = vadd.f32 %v3284, %v3287
    %s3289 = sld [smem:[#allocation3 + $0x6]]
    %v3290 = vstv %s3289
    %v3291 = vmul.f32 %v3202, %v3290
    %v3292 = vadd.f32 %v3288, %v3291
    %s3293 = sld [smem:[#allocation3 + $0x7]]
    %v3294 = vstv %s3293
    %v3295 = vmul.f32 %v3265, %v3294
    %v3296 = vadd.f32 %v3292, %v3295
    %3298 = vrot.lane.b32.xlu0 %v3296, 96
    %v3299 = vpop.permute.xlu0 %3298
    %v3301 = vadd.f32 %v113, %v3299
    %s3302 = sld [smem:[#allocation2]]
    %v3303 = vstv %s3302
    %v3304 = vadd.f32 %v3301, %v3303
    %3306 = vrot.lane.b32.xlu0 %v3304, 16
    %v3307 = vpop.permute.xlu0 %3306
    %v3309 = vsel %vm68, %v54, %v3307
    %vm3310 = vcmask 257024
    %3311 = vst.msk [vmem:[#allocation6] sm:$0xf] %vm3310, %v3309
    // Predicated region
    $region50: #{tpu_custom_call.1} parent=1 // pred_check
      _
    $region51: #{tpu_custom_call.1} parent=1 // pred_check_branch
      %3313 = sbr.rel (0) target = $region53
    $region52: #{tpu_custom_call.1} parent=1 // pred_region
      %3315 = vsyncadd [#allocation4], 0
      %s3317 = sshll.u32 [#allocation6], 4
      %s3318 = int_to_ptr.vmem [resolvable:$true] %s3317
      %s3319 = sshll.u32 %s11, 4
      %s3320 = int_to_ptr.hbm [resolvable:$true] %s3319
      %3322 = dma.vmem_to_hbm [thread:$0]  %s3318, 64, %s3320, [#allocation4]
    $region53: #{tpu_custom_call.1} parent=1 // pred_fallthru
      _
    // Predicated region
    $region54: #{tpu_custom_call.1} parent=1 // pred_check
      _
    $region55: #{tpu_custom_call.1} parent=1 // pred_check_branch
      %3324 = sbr.rel (0) target = $region57
    $region56: #{tpu_custom_call.1} parent=1 // pred_region
      %3326 = dma.done [#allocation4], 64
    $region57: #{tpu_custom_call.1} parent=1 // pred_fallthru
      _
    %3327 = vsyncpa [#allocation4], 1
    %3328 = vsyncpa [#allocation5], 1

</llo_original>
